<compile_context>
chip_gen: v5e
topology: v5e:2x2
jax: 0.10.0
libtpu: 0.0.40
codegen_flags: <defaults>
</compile_context>

<pallas_src>
import math

import jax
import jax.numpy as jnp
from jax import lax
from jax.experimental import pallas as pl
from jax.experimental.pallas import tpu as pltpu


def _round_up(x, m):
    return (x + m - 1) // m * m


def _nbytes(shape, itemsize):
    return math.prod(shape) * itemsize


def _vmem_limit(nbytes):
    # Honest buffer estimate + headroom, clamped to v7x's 64 MiB physical VMEM.
    # At realistic model sizes re-derive tile sizes per TPU generation so the
    # budget stays <= ~48 MiB on v7x and well under 128 MiB on v5e/v6e.
    return int(min(max(2 * nbytes + (2 << 20), 32 << 20), 64 << 20))


def _pick_v_tile(vp, cap=2048):
    t = min(vp, cap)
    while vp % t != 0:
        t -= 128
    return t


def _sigmoid(x):
    # sigmoid(x) = 0.5 * (tanh(0.5 x) + 1): one EUP transcendental per gate.
    return 0.5 * (jnp.tanh(0.5 * x) + 1.0)


# --------------------------------------------------------------------------
# Kernel 1: batched input projection + serial LSTM recurrence.
# --------------------------------------------------------------------------
def lstm_recurrence_kernel(x_ref, h0_ref, c0_ref, w_ih_ref, w_hh_ref, b_ref,
                           hs_ref, hn_ref, cn_ref, xg_sc):
    S, Bp, Ep = x_ref.shape
    Hp = h0_ref.shape[-1]

    # (1) Input projection for all time steps (off the serial path), bf16 scratch.
    x_all = x_ref[...].reshape(S * Bp, Ep)                      # bf16
    xg = jnp.dot(x_all, w_ih_ref[...], preferred_element_type=jnp.float32)
    xg_sc[...] = (xg + b_ref[...]).astype(jnp.bfloat16).reshape(S, Bp, 4 * Hp)

    # (2) Serial recurrence: h/c are fori_loop carries (live in vregs);
    #     unrolled so the LLO scheduler can overlap step t+1's gate load with
    #     step t's MXU drain and EUP transcendentals.
    def step(t, carry):
        h, c = carry
        gates = xg_sc[t].astype(jnp.float32) + jnp.dot(
            h.astype(jnp.bfloat16), w_hh_ref[...],
            preferred_element_type=jnp.float32)
        # Hp is a multiple of 128 -> each gate slice is lane-tile aligned.
        i_g = _sigmoid(gates[:, 0 * Hp:1 * Hp])
        f_g = _sigmoid(gates[:, 1 * Hp:2 * Hp])
        g_g = jnp.tanh(gates[:, 2 * Hp:3 * Hp])
        o_g = _sigmoid(gates[:, 3 * Hp:4 * Hp])
        c_new = f_g * c + i_g * g_g
        h_new = o_g * jnp.tanh(c_new)
        hs_ref[t] = h_new.astype(jnp.bfloat16)
        return (h_new, c_new)

    h_fin, c_fin = lax.fori_loop(0, S, step, (h0_ref[...], c0_ref[...]),
                                 unroll=True)
    hn_ref[...] = h_fin           # written exactly once
    cn_ref[...] = c_fin


# --------------------------------------------------------------------------
# Kernel 2: dense projection, tiled over vocab (parallel -> v7x megacore).
# --------------------------------------------------------------------------
def dense_proj_kernel(hs_ref, w_ref, b_ref, out_ref):
    Bp, S, Hp = hs_ref.shape
    tile_v = out_ref.shape[-1]
    h2 = hs_ref[...].reshape(Bp * S, Hp)                        # bf16
    logits = jnp.dot(h2, w_ref[...], preferred_element_type=jnp.float32)
    out_ref[...] = (logits + b_ref[...]).reshape(Bp, S, tile_v)


# --------------------------------------------------------------------------
# Parameter construction / preparation.
# --------------------------------------------------------------------------
def init_raw_params(key, n_vocab, embedding_size, lstm_size):
    """Raw params with the PyTorch module's shapes / gate order [i,f,g,o]."""
    keys = jax.random.split(key, 7)
    H, E, V = lstm_size, embedding_size, n_vocab
    k = 1.0 / jnp.sqrt(H)
    return {
        "embedding": jax.random.normal(keys[0], (V, E), jnp.float32),
        "w_ih": jax.random.uniform(keys[1], (4 * H, E), jnp.float32, -k, k),
        "w_hh": jax.random.uniform(keys[2], (4 * H, H), jnp.float32, -k, k),
        "b_ih": jax.random.uniform(keys[3], (4 * H,), jnp.float32, -k, k),
        "b_hh": jax.random.uniform(keys[4], (4 * H,), jnp.float32, -k, k),
        "w_dense": jax.random.uniform(keys[5], (V, H), jnp.float32, -k, k),
        "b_dense": jax.random.uniform(keys[6], (V,), jnp.float32, -k, k),
    }


def prepare_kernel_params(raw):
    """Pre-transpose, lane-pad (E,H,V -> x128), cast MXU operands to bf16."""
    V, E = raw["embedding"].shape
    H = raw["w_hh"].shape[1]
    Hp, Vp, Ep = _round_up(H, 128), _round_up(V, 128), _round_up(E, 128)

    def pad_gate_cols(w_t):           # (rows, 4H) -> (rows, 4Hp), per-gate pad
        rows = w_t.shape[0]
        out = jnp.zeros((rows, 4, Hp), w_t.dtype)
        return out.at[:, :, :H].set(w_t.reshape(rows, 4, H)).reshape(rows, 4 * Hp)

    w_ih_p = jnp.zeros((Ep, 4 * Hp), jnp.float32).at[:E].set(pad_gate_cols(raw["w_ih"].T))
    w_hh_p = jnp.zeros((Hp, 4 * Hp), jnp.float32).at[:H].set(pad_gate_cols(raw["w_hh"].T))
    b_p = pad_gate_cols((raw["b_ih"] + raw["b_hh"])[None, :])        # (1, 4Hp)
    w_d_p = jnp.zeros((Hp, Vp), jnp.float32).at[:H, :V].set(raw["w_dense"].T)
    b_d_p = jnp.zeros((1, Vp), jnp.float32).at[0, :V].set(raw["b_dense"])
    emb_p = jnp.zeros((V, Ep), jnp.float32).at[:, :E].set(raw["embedding"])

    return {
        "embedding": emb_p.astype(jnp.bfloat16),     # (V, Ep)   bf16
        "w_ih_t": w_ih_p.astype(jnp.bfloat16),       # (Ep, 4Hp) bf16
        "w_hh_t": w_hh_p.astype(jnp.bfloat16),       # (Hp, 4Hp) bf16
        "b_gates": b_p,                              # (1, 4Hp)  f32
        "w_dense_t": w_d_p.astype(jnp.bfloat16),     # (Hp, Vp)  bf16
        "b_dense": b_d_p,                            # (1, Vp)   f32
        "dims": (V, E, H, Vp, Ep, Hp),
    }


# --------------------------------------------------------------------------
# Forward wrapper (matches RNNModule.forward semantics).
# --------------------------------------------------------------------------
def rnn_module_forward(x_tokens, prev_state, kp):
    """x_tokens: int32 (B, S); prev_state: (h0, c0) each (1, B, H).
    Returns (dnn_out (B, S, V), (h_n (1, B, H), c_n (1, B, H)))."""
    V, E, H, Vp, Ep, Hp = kp["dims"]
    B, S = x_tokens.shape
    Bp = _round_up(B, 16)          # bf16 sublane tile: 16 rows per vreg

    h0 = prev_state[0][0].astype(jnp.float32)
    c0 = prev_state[1][0].astype(jnp.float32)
    h0p = jnp.zeros((Bp, Hp), jnp.float32).at[:B, :H].set(h0)
    c0p = jnp.zeros((Bp, Hp), jnp.float32).at[:B, :H].set(c0)

    tok = jnp.zeros((Bp, S), jnp.int32).at[:B].set(x_tokens)
    # bf16 embedding gather straight into time-major layout (halves HBM traffic).
    # TODO(synk): move the gather in-kernel via scalar-prefetched token ids.
    x_tm = jnp.take(kp["embedding"], tok.T, axis=0)            # (S, Bp, Ep) bf16

    def vmem_spec():
        return pl.BlockSpec(memory_space=pltpu.MemorySpace.VMEM)

    k1_bytes = (_nbytes((S, Bp, Ep), 2) + 2 * _nbytes((Bp, Hp), 4)
                + _nbytes((Ep, 4 * Hp), 2) + _nbytes((Hp, 4 * Hp), 2)
                + _nbytes((1, 4 * Hp), 4)
                + _nbytes((S, Bp, Hp), 2) + 2 * _nbytes((Bp, Hp), 4)
                + _nbytes((S, Bp, 4 * Hp), 2))

    hs_tm, hn_p, cn_p = pl.pallas_call(
        lstm_recurrence_kernel,
        out_shape=(
            jax.ShapeDtypeStruct((S, Bp, Hp), jnp.bfloat16),
            jax.ShapeDtypeStruct((Bp, Hp), jnp.float32),
            jax.ShapeDtypeStruct((Bp, Hp), jnp.float32),
        ),
        in_specs=[vmem_spec() for _ in range(6)],
        out_specs=(vmem_spec(), vmem_spec(), vmem_spec()),
        scratch_shapes=[pltpu.VMEM((S, Bp, 4 * Hp), jnp.bfloat16)],
        compiler_params=pltpu.CompilerParams(
            vmem_limit_bytes=_vmem_limit(k1_bytes)),
    )(x_tm, h0p, c0p, kp["w_ih_t"], kp["w_hh_t"], kp["b_gates"])

    # Batch-major hidden states for the dense projection: relayout the SMALL
    # bf16 hs tensor here instead of transposing the (B, S, V) f32 logits.
    # TODO(synk): fold this relayout into kernel 1's hs store.
    hs_bm = jnp.transpose(hs_tm, (1, 0, 2))                    # (Bp, S, Hp) bf16

    tile_v = _pick_v_tile(Vp)
    n_v = Vp // tile_v
    k2_bytes = (2 * _nbytes((Bp, S, Hp), 2) + 2 * _nbytes((Hp, tile_v), 2)
                + 2 * _nbytes((1, tile_v), 4) + 2 * _nbytes((Bp, S, tile_v), 4))

    out_bm = pl.pallas_call(
        dense_proj_kernel,
        out_shape=jax.ShapeDtypeStruct((Bp, S, Vp), jnp.float32),
        grid=(n_v,),
        in_specs=[
            pl.BlockSpec((Bp, S, Hp), lambda v: (0, 0, 0)),    # fetched once
            pl.BlockSpec((Hp, tile_v), lambda v: (0, v)),      # streamed per tile
            pl.BlockSpec((1, tile_v), lambda v: (0, v)),
        ],
        out_specs=pl.BlockSpec((Bp, S, tile_v), lambda v: (0, 0, v)),
        compiler_params=pltpu.CompilerParams(
            dimension_semantics=("parallel",),                 # v7x: 2 TCs
            vmem_limit_bytes=_vmem_limit(k2_bytes)),
    )(hs_bm, kp["w_dense_t"], kp["b_dense"])

    dnn_out = out_bm[:B, :, :V]                 # already (B, S, V); slice only
    return dnn_out, (hn_p[:B, :H][None], cn_p[:B, :H][None])


# --------------------------------------------------------------------------
# Pure-JAX f32 reference (matches the PyTorch module's math).
# --------------------------------------------------------------------------
def reference_forward(x_tokens, prev_state, raw):
    emb = jnp.take(raw["embedding"], x_tokens, axis=0)        # (B, S, E)
    H = raw["w_hh"].shape[1]
    w_ih_t, w_hh_t = raw["w_ih"].T, raw["w_hh"].T
    b = (raw["b_ih"] + raw["b_hh"])[None, :]
    h, c = prev_state[0][0], prev_state[1][0]

    def step(carry, x_t):
        h, c = carry
        gates = x_t @ w_ih_t + h @ w_hh_t + b
        i = jax.nn.sigmoid(gates[:, 0 * H:1 * H])
        f = jax.nn.sigmoid(gates[:, 1 * H:2 * H])
        g = jnp.tanh(gates[:, 2 * H:3 * H])
        o = jax.nn.sigmoid(gates[:, 3 * H:4 * H])
        c_new = f * c + i * g
        h_new = o * jnp.tanh(c_new)
        return (h_new, c_new), h_new

    (h_n, c_n), hs = lax.scan(step, (h, c), jnp.transpose(emb, (1, 0, 2)))
    out = jnp.einsum("sbh,vh->sbv", hs, raw["w_dense"]) + raw["b_dense"]
    return jnp.transpose(out, (1, 0, 2)), (h_n[None], c_n[None])


if __name__ == "__main__":
    n_vocab = 32
    seq_size = 8
    embedding_size = 16
    lstm_size = 32
    batch = 2

    key = jax.random.PRNGKey(0)
    k_param, k_x = jax.random.split(key)
    raw = init_raw_params(k_param, n_vocab, embedding_size, lstm_size)
    kp = prepare_kernel_params(raw)

    x = jax.random.randint(k_x, (batch, seq_size), 0, n_vocab, jnp.int32)
    prev_state = (jnp.zeros((1, batch, lstm_size), jnp.float32),
                  jnp.zeros((1, batch, lstm_size), jnp.float32))

    dnn_out, (h_n, c_n) = rnn_module_forward(x, prev_state, kp)
    jax.block_until_ready((dnn_out, h_n, c_n))

    ref_out, (ref_h, ref_c) = reference_forward(x, prev_state, raw)
    assert dnn_out.shape == (batch, seq_size, n_vocab)
    assert h_n.shape == (1, batch, lstm_size) and c_n.shape == (1, batch, lstm_size)
    # bf16 MXU operands / bf16 activation storage (f32 gate math) -> loosened
    # tolerances vs the f32 reference.
    assert jnp.allclose(dnn_out, ref_out, atol=5e-2, rtol=5e-2)
    assert jnp.allclose(h_n, ref_h, atol=5e-2, rtol=5e-2)
    assert jnp.allclose(c_n, ref_c, atol=5e-2, rtol=5e-2)

    print("KERNEL_OK")
</pallas_src>

<mosaic_0001>
module attributes {stable_mosaic.version = 11 : i64} {
  func.func @lstm_recurrence_kernel(%arg0: memref<8x16x128xbf16, #tpu.memory_space<vmem>>, %arg1: memref<16x128xf32, #tpu.memory_space<vmem>>, %arg2: memref<16x128xf32, #tpu.memory_space<vmem>>, %arg3: memref<128x512xbf16, #tpu.memory_space<vmem>>, %arg4: memref<128x512xbf16, #tpu.memory_space<vmem>>, %arg5: memref<1x512xf32, #tpu.memory_space<vmem>>, %arg6: memref<8x16x128xbf16, #tpu.memory_space<vmem>>, %arg7: memref<16x128xf32, #tpu.memory_space<vmem>>, %arg8: memref<16x128xf32, #tpu.memory_space<vmem>>, %arg9: memref<8x16x512xbf16, #tpu.memory_space<vmem>>) attributes {dimension_semantics = [], scalar_prefetch = 0 : i64, scratch_operands = 1 : i64, tpu.core_type = #tpu.core_type<tc>} {
    %c0 = arith.constant 0 : index
    %c0_0 = arith.constant 0 : index
    %c0_1 = arith.constant 0 : index
    %0 = vector.load %arg0[%c0, %c0_0, %c0_1] : memref<8x16x128xbf16, #tpu.memory_space<vmem>>, vector<8x16x128xbf16>
    %1 = vector.shape_cast %0 : vector<8x16x128xbf16> to vector<128x128xbf16>
    %c0_2 = arith.constant 0 : index
    %c0_3 = arith.constant 0 : index
    %2 = vector.load %arg3[%c0_2, %c0_3] : memref<128x512xbf16, #tpu.memory_space<vmem>>, vector<128x512xbf16>
    %cst = arith.constant dense<0.000000e+00> : vector<128x512xf32>
    %3 = tpu.matmul %1, %2, %cst {dimension_numbers = #tpu.dot_dimension_numbers<[1], [0], [0], [1], [0, 0, 1, 1], [], []>} : vector<128x128xbf16>, vector<128x512xbf16>, vector<128x512xf32> -> vector<128x512xf32>
    %c0_4 = arith.constant 0 : index
    %c0_5 = arith.constant 0 : index
    %4 = vector.load %arg5[%c0_4, %c0_5] : memref<1x512xf32, #tpu.memory_space<vmem>>, vector<1x512xf32>
    %5 = vector.broadcast %4 : vector<1x512xf32> to vector<128x512xf32>
    %6 = arith.addf %3, %5 : vector<128x512xf32>
    %7 = arith.truncf %6 : vector<128x512xf32> to vector<128x512xbf16>
    %8 = vector.shape_cast %7 : vector<128x512xbf16> to vector<8x16x512xbf16>
    %c0_6 = arith.constant 0 : index
    %c0_7 = arith.constant 0 : index
    %c0_8 = arith.constant 0 : index
    %9 = vector.load %arg9[%c0_6, %c0_7, %c0_8] : memref<8x16x512xbf16, #tpu.memory_space<vmem>>, vector<8x16x512xbf16>
    tpu.vector_store %arg9[%c0_6, %c0_7, %c0_8], %8 {strides = array<i32>} : memref<8x16x512xbf16, #tpu.memory_space<vmem>>, vector<8x16x512xbf16>,
    %c0_9 = arith.constant 0 : index
    %c0_10 = arith.constant 0 : index
    %10 = vector.load %arg1[%c0_9, %c0_10] : memref<16x128xf32, #tpu.memory_space<vmem>>, vector<16x128xf32>
    %c0_11 = arith.constant 0 : index
    %c0_12 = arith.constant 0 : index
    %11 = vector.load %arg2[%c0_11, %c0_12] : memref<16x128xf32, #tpu.memory_space<vmem>>, vector<16x128xf32>
    %c0_i32 = arith.constant 0 : i32
    %12 = arith.index_cast %c0_i32 : i32 to index
    %c0_13 = arith.constant 0 : index
    %c0_14 = arith.constant 0 : index
    %13 = vector.load %arg9[%12, %c0_13, %c0_14] : memref<8x16x512xbf16, #tpu.memory_space<vmem>>, vector<1x16x512xbf16>
    %14 = vector.shape_cast %13 : vector<1x16x512xbf16> to vector<16x512xbf16>
    %15 = arith.extf %14 : vector<16x512xbf16> to vector<16x512xf32>
    %16 = arith.truncf %10 : vector<16x128xf32> to vector<16x128xbf16>
    %c0_15 = arith.constant 0 : index
    %c0_16 = arith.constant 0 : index
    %17 = vector.load %arg4[%c0_15, %c0_16] : memref<128x512xbf16, #tpu.memory_space<vmem>>, vector<128x512xbf16>
    %cst_17 = arith.constant dense<0.000000e+00> : vector<16x512xf32>
    %18 = tpu.matmul %16, %17, %cst_17 {dimension_numbers = #tpu.dot_dimension_numbers<[1], [0], [0], [1], [0, 0, 1, 1], [], []>} : vector<16x128xbf16>, vector<128x512xbf16>, vector<16x512xf32> -> vector<16x512xf32>
    %19 = arith.addf %15, %18 : vector<16x512xf32>
    %20 = vector.extract_strided_slice %19 {offsets = [0, 0], sizes = [16, 128], strides = [1, 1]} : vector<16x512xf32> to vector<16x128xf32>
    %cst_18 = arith.constant 5.000000e-01 : f32
    %21 = vector.broadcast %cst_18 : f32 to vector<16x128xf32>
    %22 = arith.mulf %21, %20 : vector<16x128xf32>
    %23 = math.tanh %22 : vector<16x128xf32>
    %cst_19 = arith.constant 1.000000e+00 : f32
    %24 = vector.broadcast %cst_19 : f32 to vector<16x128xf32>
    %25 = arith.addf %23, %24 : vector<16x128xf32>
    %cst_20 = arith.constant 5.000000e-01 : f32
    %26 = vector.broadcast %cst_20 : f32 to vector<16x128xf32>
    %27 = arith.mulf %26, %25 : vector<16x128xf32>
    %28 = vector.extract_strided_slice %19 {offsets = [0, 128], sizes = [16, 128], strides = [1, 1]} : vector<16x512xf32> to vector<16x128xf32>
    %cst_21 = arith.constant 5.000000e-01 : f32
    %29 = vector.broadcast %cst_21 : f32 to vector<16x128xf32>
    %30 = arith.mulf %29, %28 : vector<16x128xf32>
    %31 = math.tanh %30 : vector<16x128xf32>
    %cst_22 = arith.constant 1.000000e+00 : f32
    %32 = vector.broadcast %cst_22 : f32 to vector<16x128xf32>
    %33 = arith.addf %31, %32 : vector<16x128xf32>
    %cst_23 = arith.constant 5.000000e-01 : f32
    %34 = vector.broadcast %cst_23 : f32 to vector<16x128xf32>
    %35 = arith.mulf %34, %33 : vector<16x128xf32>
    %36 = vector.extract_strided_slice %19 {offsets = [0, 256], sizes = [16, 128], strides = [1, 1]} : vector<16x512xf32> to vector<16x128xf32>
    %37 = math.tanh %36 : vector<16x128xf32>
    %38 = vector.extract_strided_slice %19 {offsets = [0, 384], sizes = [16, 128], strides = [1, 1]} : vector<16x512xf32> to vector<16x128xf32>
    %cst_24 = arith.constant 5.000000e-01 : f32
    %39 = vector.broadcast %cst_24 : f32 to vector<16x128xf32>
    %40 = arith.mulf %39, %38 : vector<16x128xf32>
    %41 = math.tanh %40 : vector<16x128xf32>
    %cst_25 = arith.constant 1.000000e+00 : f32
    %42 = vector.broadcast %cst_25 : f32 to vector<16x128xf32>
    %43 = arith.addf %41, %42 : vector<16x128xf32>
    %cst_26 = arith.constant 5.000000e-01 : f32
    %44 = vector.broadcast %cst_26 : f32 to vector<16x128xf32>
    %45 = arith.mulf %44, %43 : vector<16x128xf32>
    %46 = arith.mulf %35, %11 : vector<16x128xf32>
    %47 = arith.mulf %27, %37 : vector<16x128xf32>
    %48 = arith.addf %46, %47 : vector<16x128xf32>
    %49 = math.tanh %48 : vector<16x128xf32>
    %50 = arith.mulf %45, %49 : vector<16x128xf32>
    %51 = arith.truncf %50 : vector<16x128xf32> to vector<16x128xbf16>
    %52 = arith.index_cast %c0_i32 : i32 to index
    %c0_27 = arith.constant 0 : index
    %c0_28 = arith.constant 0 : index
    %53 = vector.load %arg6[%52, %c0_27, %c0_28] : memref<8x16x128xbf16, #tpu.memory_space<vmem>>, vector<1x16x128xbf16>
    %54 = vector.shape_cast %53 : vector<1x16x128xbf16> to vector<16x128xbf16>
    %55 = vector.shape_cast %51 : vector<16x128xbf16> to vector<1x16x128xbf16>
    tpu.vector_store %arg6[%52, %c0_27, %c0_28], %55 {strides = array<i32>} : memref<8x16x128xbf16, #tpu.memory_space<vmem>>, vector<1x16x128xbf16>,
    %c1_i32 = arith.constant 1 : i32
    %56 = arith.index_cast %c1_i32 : i32 to index
    %c0_29 = arith.constant 0 : index
    %c0_30 = arith.constant 0 : index
    %57 = vector.load %arg9[%56, %c0_29, %c0_30] : memref<8x16x512xbf16, #tpu.memory_space<vmem>>, vector<1x16x512xbf16>
    %58 = vector.shape_cast %57 : vector<1x16x512xbf16> to vector<16x512xbf16>
    %59 = arith.extf %58 : vector<16x512xbf16> to vector<16x512xf32>
    %60 = arith.truncf %50 : vector<16x128xf32> to vector<16x128xbf16>
    %c0_31 = arith.constant 0 : index
    %c0_32 = arith.constant 0 : index
    %61 = vector.load %arg4[%c0_31, %c0_32] : memref<128x512xbf16, #tpu.memory_space<vmem>>, vector<128x512xbf16>
    %cst_33 = arith.constant dense<0.000000e+00> : vector<16x512xf32>
    %62 = tpu.matmul %60, %61, %cst_33 {dimension_numbers = #tpu.dot_dimension_numbers<[1], [0], [0], [1], [0, 0, 1, 1], [], []>} : vector<16x128xbf16>, vector<128x512xbf16>, vector<16x512xf32> -> vector<16x512xf32>
    %63 = arith.addf %59, %62 : vector<16x512xf32>
    %64 = vector.extract_strided_slice %63 {offsets = [0, 0], sizes = [16, 128], strides = [1, 1]} : vector<16x512xf32> to vector<16x128xf32>
    %cst_34 = arith.constant 5.000000e-01 : f32
    %65 = vector.broadcast %cst_34 : f32 to vector<16x128xf32>
    %66 = arith.mulf %65, %64 : vector<16x128xf32>
    %67 = math.tanh %66 : vector<16x128xf32>
    %cst_35 = arith.constant 1.000000e+00 : f32
    %68 = vector.broadcast %cst_35 : f32 to vector<16x128xf32>
    %69 = arith.addf %67, %68 : vector<16x128xf32>
    %cst_36 = arith.constant 5.000000e-01 : f32
    %70 = vector.broadcast %cst_36 : f32 to vector<16x128xf32>
    %71 = arith.mulf %70, %69 : vector<16x128xf32>
    %72 = vector.extract_strided_slice %63 {offsets = [0, 128], sizes = [16, 128], strides = [1, 1]} : vector<16x512xf32> to vector<16x128xf32>
    %cst_37 = arith.constant 5.000000e-01 : f32
    %73 = vector.broadcast %cst_37 : f32 to vector<16x128xf32>
    %74 = arith.mulf %73, %72 : vector<16x128xf32>
    %75 = math.tanh %74 : vector<16x128xf32>
    %cst_38 = arith.constant 1.000000e+00 : f32
    %76 = vector.broadcast %cst_38 : f32 to vector<16x128xf32>
    %77 = arith.addf %75, %76 : vector<16x128xf32>
    %cst_39 = arith.constant 5.000000e-01 : f32
    %78 = vector.broadcast %cst_39 : f32 to vector<16x128xf32>
    %79 = arith.mulf %78, %77 : vector<16x128xf32>
    %80 = vector.extract_strided_slice %63 {offsets = [0, 256], sizes = [16, 128], strides = [1, 1]} : vector<16x512xf32> to vector<16x128xf32>
    %81 = math.tanh %80 : vector<16x128xf32>
    %82 = vector.extract_strided_slice %63 {offsets = [0, 384], sizes = [16, 128], strides = [1, 1]} : vector<16x512xf32> to vector<16x128xf32>
    %cst_40 = arith.constant 5.000000e-01 : f32
    %83 = vector.broadcast %cst_40 : f32 to vector<16x128xf32>
    %84 = arith.mulf %83, %82 : vector<16x128xf32>
    %85 = math.tanh %84 : vector<16x128xf32>
    %cst_41 = arith.constant 1.000000e+00 : f32
    %86 = vector.broadcast %cst_41 : f32 to vector<16x128xf32>
    %87 = arith.addf %85, %86 : vector<16x128xf32>
    %cst_42 = arith.constant 5.000000e-01 : f32
    %88 = vector.broadcast %cst_42 : f32 to vector<16x128xf32>
    %89 = arith.mulf %88, %87 : vector<16x128xf32>
    %90 = arith.mulf %79, %48 : vector<16x128xf32>
    %91 = arith.mulf %71, %81 : vector<16x128xf32>
    %92 = arith.addf %90, %91 : vector<16x128xf32>
    %93 = math.tanh %92 : vector<16x128xf32>
    %94 = arith.mulf %89, %93 : vector<16x128xf32>
    %95 = arith.truncf %94 : vector<16x128xf32> to vector<16x128xbf16>
    %96 = arith.index_cast %c1_i32 : i32 to index
    %c0_43 = arith.constant 0 : index
    %c0_44 = arith.constant 0 : index
    %97 = vector.load %arg6[%96, %c0_43, %c0_44] : memref<8x16x128xbf16, #tpu.memory_space<vmem>>, vector<1x16x128xbf16>
    %98 = vector.shape_cast %97 : vector<1x16x128xbf16> to vector<16x128xbf16>
    %99 = vector.shape_cast %95 : vector<16x128xbf16> to vector<1x16x128xbf16>
    tpu.vector_store %arg6[%96, %c0_43, %c0_44], %99 {strides = array<i32>} : memref<8x16x128xbf16, #tpu.memory_space<vmem>>, vector<1x16x128xbf16>,
    %c2_i32 = arith.constant 2 : i32
    %100 = arith.index_cast %c2_i32 : i32 to index
    %c0_45 = arith.constant 0 : index
    %c0_46 = arith.constant 0 : index
    %101 = vector.load %arg9[%100, %c0_45, %c0_46] : memref<8x16x512xbf16, #tpu.memory_space<vmem>>, vector<1x16x512xbf16>
    %102 = vector.shape_cast %101 : vector<1x16x512xbf16> to vector<16x512xbf16>
    %103 = arith.extf %102 : vector<16x512xbf16> to vector<16x512xf32>
    %104 = arith.truncf %94 : vector<16x128xf32> to vector<16x128xbf16>
    %c0_47 = arith.constant 0 : index
    %c0_48 = arith.constant 0 : index
    %105 = vector.load %arg4[%c0_47, %c0_48] : memref<128x512xbf16, #tpu.memory_space<vmem>>, vector<128x512xbf16>
    %cst_49 = arith.constant dense<0.000000e+00> : vector<16x512xf32>
    %106 = tpu.matmul %104, %105, %cst_49 {dimension_numbers = #tpu.dot_dimension_numbers<[1], [0], [0], [1], [0, 0, 1, 1], [], []>} : vector<16x128xbf16>, vector<128x512xbf16>, vector<16x512xf32> -> vector<16x512xf32>
    %107 = arith.addf %103, %106 : vector<16x512xf32>
    %108 = vector.extract_strided_slice %107 {offsets = [0, 0], sizes = [16, 128], strides = [1, 1]} : vector<16x512xf32> to vector<16x128xf32>
    %cst_50 = arith.constant 5.000000e-01 : f32
    %109 = vector.broadcast %cst_50 : f32 to vector<16x128xf32>
    %110 = arith.mulf %109, %108 : vector<16x128xf32>
    %111 = math.tanh %110 : vector<16x128xf32>
    %cst_51 = arith.constant 1.000000e+00 : f32
    %112 = vector.broadcast %cst_51 : f32 to vector<16x128xf32>
    %113 = arith.addf %111, %112 : vector<16x128xf32>
    %cst_52 = arith.constant 5.000000e-01 : f32
    %114 = vector.broadcast %cst_52 : f32 to vector<16x128xf32>
    %115 = arith.mulf %114, %113 : vector<16x128xf32>
    %116 = vector.extract_strided_slice %107 {offsets = [0, 128], sizes = [16, 128], strides = [1, 1]} : vector<16x512xf32> to vector<16x128xf32>
    %cst_53 = arith.constant 5.000000e-01 : f32
    %117 = vector.broadcast %cst_53 : f32 to vector<16x128xf32>
    %118 = arith.mulf %117, %116 : vector<16x128xf32>
    %119 = math.tanh %118 : vector<16x128xf32>
    %cst_54 = arith.constant 1.000000e+00 : f32
    %120 = vector.broadcast %cst_54 : f32 to vector<16x128xf32>
    %121 = arith.addf %119, %120 : vector<16x128xf32>
    %cst_55 = arith.constant 5.000000e-01 : f32
    %122 = vector.broadcast %cst_55 : f32 to vector<16x128xf32>
    %123 = arith.mulf %122, %121 : vector<16x128xf32>
    %124 = vector.extract_strided_slice %107 {offsets = [0, 256], sizes = [16, 128], strides = [1, 1]} : vector<16x512xf32> to vector<16x128xf32>
    %125 = math.tanh %124 : vector<16x128xf32>
    %126 = vector.extract_strided_slice %107 {offsets = [0, 384], sizes = [16, 128], strides = [1, 1]} : vector<16x512xf32> to vector<16x128xf32>
    %cst_56 = arith.constant 5.000000e-01 : f32
    %127 = vector.broadcast %cst_56 : f32 to vector<16x128xf32>
    %128 = arith.mulf %127, %126 : vector<16x128xf32>
    %129 = math.tanh %128 : vector<16x128xf32>
    %cst_57 = arith.constant 1.000000e+00 : f32
    %130 = vector.broadcast %cst_57 : f32 to vector<16x128xf32>
    %131 = arith.addf %129, %130 : vector<16x128xf32>
    %cst_58 = arith.constant 5.000000e-01 : f32
    %132 = vector.broadcast %cst_58 : f32 to vector<16x128xf32>
    %133 = arith.mulf %132, %131 : vector<16x128xf32>
    %134 = arith.mulf %123, %92 : vector<16x128xf32>
    %135 = arith.mulf %115, %125 : vector<16x128xf32>
    %136 = arith.addf %134, %135 : vector<16x128xf32>
    %137 = math.tanh %136 : vector<16x128xf32>
    %138 = arith.mulf %133, %137 : vector<16x128xf32>
    %139 = arith.truncf %138 : vector<16x128xf32> to vector<16x128xbf16>
    %140 = arith.index_cast %c2_i32 : i32 to index
    %c0_59 = arith.constant 0 : index
    %c0_60 = arith.constant 0 : index
    %141 = vector.load %arg6[%140, %c0_59, %c0_60] : memref<8x16x128xbf16, #tpu.memory_space<vmem>>, vector<1x16x128xbf16>
    %142 = vector.shape_cast %141 : vector<1x16x128xbf16> to vector<16x128xbf16>
    %143 = vector.shape_cast %139 : vector<16x128xbf16> to vector<1x16x128xbf16>
    tpu.vector_store %arg6[%140, %c0_59, %c0_60], %143 {strides = array<i32>} : memref<8x16x128xbf16, #tpu.memory_space<vmem>>, vector<1x16x128xbf16>,
    %c3_i32 = arith.constant 3 : i32
    %144 = arith.index_cast %c3_i32 : i32 to index
    %c0_61 = arith.constant 0 : index
    %c0_62 = arith.constant 0 : index
    %145 = vector.load %arg9[%144, %c0_61, %c0_62] : memref<8x16x512xbf16, #tpu.memory_space<vmem>>, vector<1x16x512xbf16>
    %146 = vector.shape_cast %145 : vector<1x16x512xbf16> to vector<16x512xbf16>
    %147 = arith.extf %146 : vector<16x512xbf16> to vector<16x512xf32>
    %148 = arith.truncf %138 : vector<16x128xf32> to vector<16x128xbf16>
    %c0_63 = arith.constant 0 : index
    %c0_64 = arith.constant 0 : index
    %149 = vector.load %arg4[%c0_63, %c0_64] : memref<128x512xbf16, #tpu.memory_space<vmem>>, vector<128x512xbf16>
    %cst_65 = arith.constant dense<0.000000e+00> : vector<16x512xf32>
    %150 = tpu.matmul %148, %149, %cst_65 {dimension_numbers = #tpu.dot_dimension_numbers<[1], [0], [0], [1], [0, 0, 1, 1], [], []>} : vector<16x128xbf16>, vector<128x512xbf16>, vector<16x512xf32> -> vector<16x512xf32>
    %151 = arith.addf %147, %150 : vector<16x512xf32>
    %152 = vector.extract_strided_slice %151 {offsets = [0, 0], sizes = [16, 128], strides = [1, 1]} : vector<16x512xf32> to vector<16x128xf32>
    %cst_66 = arith.constant 5.000000e-01 : f32
    %153 = vector.broadcast %cst_66 : f32 to vector<16x128xf32>
    %154 = arith.mulf %153, %152 : vector<16x128xf32>
    %155 = math.tanh %154 : vector<16x128xf32>
    %cst_67 = arith.constant 1.000000e+00 : f32
    %156 = vector.broadcast %cst_67 : f32 to vector<16x128xf32>
    %157 = arith.addf %155, %156 : vector<16x128xf32>
    %cst_68 = arith.constant 5.000000e-01 : f32
    %158 = vector.broadcast %cst_68 : f32 to vector<16x128xf32>
    %159 = arith.mulf %158, %157 : vector<16x128xf32>
    %160 = vector.extract_strided_slice %151 {offsets = [0, 128], sizes = [16, 128], strides = [1, 1]} : vector<16x512xf32> to vector<16x128xf32>
    %cst_69 = arith.constant 5.000000e-01 : f32
    %161 = vector.broadcast %cst_69 : f32 to vector<16x128xf32>
    %162 = arith.mulf %161, %160 : vector<16x128xf32>
    %163 = math.tanh %162 : vector<16x128xf32>
    %cst_70 = arith.constant 1.000000e+00 : f32
    %164 = vector.broadcast %cst_70 : f32 to vector<16x128xf32>
    %165 = arith.addf %163, %164 : vector<16x128xf32>
    %cst_71 = arith.constant 5.000000e-01 : f32
    %166 = vector.broadcast %cst_71 : f32 to vector<16x128xf32>
    %167 = arith.mulf %166, %165 : vector<16x128xf32>
    %168 = vector.extract_strided_slice %151 {offsets = [0, 256], sizes = [16, 128], strides = [1, 1]} : vector<16x512xf32> to vector<16x128xf32>
    %169 = math.tanh %168 : vector<16x128xf32>
    %170 = vector.extract_strided_slice %151 {offsets = [0, 384], sizes = [16, 128], strides = [1, 1]} : vector<16x512xf32> to vector<16x128xf32>
    %cst_72 = arith.constant 5.000000e-01 : f32
    %171 = vector.broadcast %cst_72 : f32 to vector<16x128xf32>
    %172 = arith.mulf %171, %170 : vector<16x128xf32>
    %173 = math.tanh %172 : vector<16x128xf32>
    %cst_73 = arith.constant 1.000000e+00 : f32
    %174 = vector.broadcast %cst_73 : f32 to vector<16x128xf32>
    %175 = arith.addf %173, %174 : vector<16x128xf32>
    %cst_74 = arith.constant 5.000000e-01 : f32
    %176 = vector.broadcast %cst_74 : f32 to vector<16x128xf32>
    %177 = arith.mulf %176, %175 : vector<16x128xf32>
    %178 = arith.mulf %167, %136 : vector<16x128xf32>
    %179 = arith.mulf %159, %169 : vector<16x128xf32>
    %180 = arith.addf %178, %179 : vector<16x128xf32>
    %181 = math.tanh %180 : vector<16x128xf32>
    %182 = arith.mulf %177, %181 : vector<16x128xf32>
    %183 = arith.truncf %182 : vector<16x128xf32> to vector<16x128xbf16>
    %184 = arith.index_cast %c3_i32 : i32 to index
    %c0_75 = arith.constant 0 : index
    %c0_76 = arith.constant 0 : index
    %185 = vector.load %arg6[%184, %c0_75, %c0_76] : memref<8x16x128xbf16, #tpu.memory_space<vmem>>, vector<1x16x128xbf16>
    %186 = vector.shape_cast %185 : vector<1x16x128xbf16> to vector<16x128xbf16>
    %187 = vector.shape_cast %183 : vector<16x128xbf16> to vector<1x16x128xbf16>
    tpu.vector_store %arg6[%184, %c0_75, %c0_76], %187 {strides = array<i32>} : memref<8x16x128xbf16, #tpu.memory_space<vmem>>, vector<1x16x128xbf16>,
    %c4_i32 = arith.constant 4 : i32
    %188 = arith.index_cast %c4_i32 : i32 to index
    %c0_77 = arith.constant 0 : index
    %c0_78 = arith.constant 0 : index
    %189 = vector.load %arg9[%188, %c0_77, %c0_78] : memref<8x16x512xbf16, #tpu.memory_space<vmem>>, vector<1x16x512xbf16>
    %190 = vector.shape_cast %189 : vector<1x16x512xbf16> to vector<16x512xbf16>
    %191 = arith.extf %190 : vector<16x512xbf16> to vector<16x512xf32>
    %192 = arith.truncf %182 : vector<16x128xf32> to vector<16x128xbf16>
    %c0_79 = arith.constant 0 : index
    %c0_80 = arith.constant 0 : index
    %193 = vector.load %arg4[%c0_79, %c0_80] : memref<128x512xbf16, #tpu.memory_space<vmem>>, vector<128x512xbf16>
    %cst_81 = arith.constant dense<0.000000e+00> : vector<16x512xf32>
    %194 = tpu.matmul %192, %193, %cst_81 {dimension_numbers = #tpu.dot_dimension_numbers<[1], [0], [0], [1], [0, 0, 1, 1], [], []>} : vector<16x128xbf16>, vector<128x512xbf16>, vector<16x512xf32> -> vector<16x512xf32>
    %195 = arith.addf %191, %194 : vector<16x512xf32>
    %196 = vector.extract_strided_slice %195 {offsets = [0, 0], sizes = [16, 128], strides = [1, 1]} : vector<16x512xf32> to vector<16x128xf32>
    %cst_82 = arith.constant 5.000000e-01 : f32
    %197 = vector.broadcast %cst_82 : f32 to vector<16x128xf32>
    %198 = arith.mulf %197, %196 : vector<16x128xf32>
    %199 = math.tanh %198 : vector<16x128xf32>
    %cst_83 = arith.constant 1.000000e+00 : f32
    %200 = vector.broadcast %cst_83 : f32 to vector<16x128xf32>
    %201 = arith.addf %199, %200 : vector<16x128xf32>
    %cst_84 = arith.constant 5.000000e-01 : f32
    %202 = vector.broadcast %cst_84 : f32 to vector<16x128xf32>
    %203 = arith.mulf %202, %201 : vector<16x128xf32>
    %204 = vector.extract_strided_slice %195 {offsets = [0, 128], sizes = [16, 128], strides = [1, 1]} : vector<16x512xf32> to vector<16x128xf32>
    %cst_85 = arith.constant 5.000000e-01 : f32
    %205 = vector.broadcast %cst_85 : f32 to vector<16x128xf32>
    %206 = arith.mulf %205, %204 : vector<16x128xf32>
    %207 = math.tanh %206 : vector<16x128xf32>
    %cst_86 = arith.constant 1.000000e+00 : f32
    %208 = vector.broadcast %cst_86 : f32 to vector<16x128xf32>
    %209 = arith.addf %207, %208 : vector<16x128xf32>
    %cst_87 = arith.constant 5.000000e-01 : f32
    %210 = vector.broadcast %cst_87 : f32 to vector<16x128xf32>
    %211 = arith.mulf %210, %209 : vector<16x128xf32>
    %212 = vector.extract_strided_slice %195 {offsets = [0, 256], sizes = [16, 128], strides = [1, 1]} : vector<16x512xf32> to vector<16x128xf32>
    %213 = math.tanh %212 : vector<16x128xf32>
    %214 = vector.extract_strided_slice %195 {offsets = [0, 384], sizes = [16, 128], strides = [1, 1]} : vector<16x512xf32> to vector<16x128xf32>
    %cst_88 = arith.constant 5.000000e-01 : f32
    %215 = vector.broadcast %cst_88 : f32 to vector<16x128xf32>
    %216 = arith.mulf %215, %214 : vector<16x128xf32>
    %217 = math.tanh %216 : vector<16x128xf32>
    %cst_89 = arith.constant 1.000000e+00 : f32
    %218 = vector.broadcast %cst_89 : f32 to vector<16x128xf32>
    %219 = arith.addf %217, %218 : vector<16x128xf32>
    %cst_90 = arith.constant 5.000000e-01 : f32
    %220 = vector.broadcast %cst_90 : f32 to vector<16x128xf32>
    %221 = arith.mulf %220, %219 : vector<16x128xf32>
    %222 = arith.mulf %211, %180 : vector<16x128xf32>
    %223 = arith.mulf %203, %213 : vector<16x128xf32>
    %224 = arith.addf %222, %223 : vector<16x128xf32>
    %225 = math.tanh %224 : vector<16x128xf32>
    %226 = arith.mulf %221, %225 : vector<16x128xf32>
    %227 = arith.truncf %226 : vector<16x128xf32> to vector<16x128xbf16>
    %228 = arith.index_cast %c4_i32 : i32 to index
    %c0_91 = arith.constant 0 : index
    %c0_92 = arith.constant 0 : index
    %229 = vector.load %arg6[%228, %c0_91, %c0_92] : memref<8x16x128xbf16, #tpu.memory_space<vmem>>, vector<1x16x128xbf16>
    %230 = vector.shape_cast %229 : vector<1x16x128xbf16> to vector<16x128xbf16>
    %231 = vector.shape_cast %227 : vector<16x128xbf16> to vector<1x16x128xbf16>
    tpu.vector_store %arg6[%228, %c0_91, %c0_92], %231 {strides = array<i32>} : memref<8x16x128xbf16, #tpu.memory_space<vmem>>, vector<1x16x128xbf16>,
    %c5_i32 = arith.constant 5 : i32
    %232 = arith.index_cast %c5_i32 : i32 to index
    %c0_93 = arith.constant 0 : index
    %c0_94 = arith.constant 0 : index
    %233 = vector.load %arg9[%232, %c0_93, %c0_94] : memref<8x16x512xbf16, #tpu.memory_space<vmem>>, vector<1x16x512xbf16>
    %234 = vector.shape_cast %233 : vector<1x16x512xbf16> to vector<16x512xbf16>
    %235 = arith.extf %234 : vector<16x512xbf16> to vector<16x512xf32>
    %236 = arith.truncf %226 : vector<16x128xf32> to vector<16x128xbf16>
    %c0_95 = arith.constant 0 : index
    %c0_96 = arith.constant 0 : index
    %237 = vector.load %arg4[%c0_95, %c0_96] : memref<128x512xbf16, #tpu.memory_space<vmem>>, vector<128x512xbf16>
    %cst_97 = arith.constant dense<0.000000e+00> : vector<16x512xf32>
    %238 = tpu.matmul %236, %237, %cst_97 {dimension_numbers = #tpu.dot_dimension_numbers<[1], [0], [0], [1], [0, 0, 1, 1], [], []>} : vector<16x128xbf16>, vector<128x512xbf16>, vector<16x512xf32> -> vector<16x512xf32>
    %239 = arith.addf %235, %238 : vector<16x512xf32>
    %240 = vector.extract_strided_slice %239 {offsets = [0, 0], sizes = [16, 128], strides = [1, 1]} : vector<16x512xf32> to vector<16x128xf32>
    %cst_98 = arith.constant 5.000000e-01 : f32
    %241 = vector.broadcast %cst_98 : f32 to vector<16x128xf32>
    %242 = arith.mulf %241, %240 : vector<16x128xf32>
    %243 = math.tanh %242 : vector<16x128xf32>
    %cst_99 = arith.constant 1.000000e+00 : f32
    %244 = vector.broadcast %cst_99 : f32 to vector<16x128xf32>
    %245 = arith.addf %243, %244 : vector<16x128xf32>
    %cst_100 = arith.constant 5.000000e-01 : f32
    %246 = vector.broadcast %cst_100 : f32 to vector<16x128xf32>
    %247 = arith.mulf %246, %245 : vector<16x128xf32>
    %248 = vector.extract_strided_slice %239 {offsets = [0, 128], sizes = [16, 128], strides = [1, 1]} : vector<16x512xf32> to vector<16x128xf32>
    %cst_101 = arith.constant 5.000000e-01 : f32
    %249 = vector.broadcast %cst_101 : f32 to vector<16x128xf32>
    %250 = arith.mulf %249, %248 : vector<16x128xf32>
    %251 = math.tanh %250 : vector<16x128xf32>
    %cst_102 = arith.constant 1.000000e+00 : f32
    %252 = vector.broadcast %cst_102 : f32 to vector<16x128xf32>
    %253 = arith.addf %251, %252 : vector<16x128xf32>
    %cst_103 = arith.constant 5.000000e-01 : f32
    %254 = vector.broadcast %cst_103 : f32 to vector<16x128xf32>
    %255 = arith.mulf %254, %253 : vector<16x128xf32>
    %256 = vector.extract_strided_slice %239 {offsets = [0, 256], sizes = [16, 128], strides = [1, 1]} : vector<16x512xf32> to vector<16x128xf32>
    %257 = math.tanh %256 : vector<16x128xf32>
    %258 = vector.extract_strided_slice %239 {offsets = [0, 384], sizes = [16, 128], strides = [1, 1]} : vector<16x512xf32> to vector<16x128xf32>
    %cst_104 = arith.constant 5.000000e-01 : f32
    %259 = vector.broadcast %cst_104 : f32 to vector<16x128xf32>
    %260 = arith.mulf %259, %258 : vector<16x128xf32>
    %261 = math.tanh %260 : vector<16x128xf32>
    %cst_105 = arith.constant 1.000000e+00 : f32
    %262 = vector.broadcast %cst_105 : f32 to vector<16x128xf32>
    %263 = arith.addf %261, %262 : vector<16x128xf32>
    %cst_106 = arith.constant 5.000000e-01 : f32
    %264 = vector.broadcast %cst_106 : f32 to vector<16x128xf32>
    %265 = arith.mulf %264, %263 : vector<16x128xf32>
    %266 = arith.mulf %255, %224 : vector<16x128xf32>
    %267 = arith.mulf %247, %257 : vector<16x128xf32>
    %268 = arith.addf %266, %267 : vector<16x128xf32>
    %269 = math.tanh %268 : vector<16x128xf32>
    %270 = arith.mulf %265, %269 : vector<16x128xf32>
    %271 = arith.truncf %270 : vector<16x128xf32> to vector<16x128xbf16>
    %272 = arith.index_cast %c5_i32 : i32 to index
    %c0_107 = arith.constant 0 : index
    %c0_108 = arith.constant 0 : index
    %273 = vector.load %arg6[%272, %c0_107, %c0_108] : memref<8x16x128xbf16, #tpu.memory_space<vmem>>, vector<1x16x128xbf16>
    %274 = vector.shape_cast %273 : vector<1x16x128xbf16> to vector<16x128xbf16>
    %275 = vector.shape_cast %271 : vector<16x128xbf16> to vector<1x16x128xbf16>
    tpu.vector_store %arg6[%272, %c0_107, %c0_108], %275 {strides = array<i32>} : memref<8x16x128xbf16, #tpu.memory_space<vmem>>, vector<1x16x128xbf16>,
    %c6_i32 = arith.constant 6 : i32
    %276 = arith.index_cast %c6_i32 : i32 to index
    %c0_109 = arith.constant 0 : index
    %c0_110 = arith.constant 0 : index
    %277 = vector.load %arg9[%276, %c0_109, %c0_110] : memref<8x16x512xbf16, #tpu.memory_space<vmem>>, vector<1x16x512xbf16>
    %278 = vector.shape_cast %277 : vector<1x16x512xbf16> to vector<16x512xbf16>
    %279 = arith.extf %278 : vector<16x512xbf16> to vector<16x512xf32>
    %280 = arith.truncf %270 : vector<16x128xf32> to vector<16x128xbf16>
    %c0_111 = arith.constant 0 : index
    %c0_112 = arith.constant 0 : index
    %281 = vector.load %arg4[%c0_111, %c0_112] : memref<128x512xbf16, #tpu.memory_space<vmem>>, vector<128x512xbf16>
    %cst_113 = arith.constant dense<0.000000e+00> : vector<16x512xf32>
    %282 = tpu.matmul %280, %281, %cst_113 {dimension_numbers = #tpu.dot_dimension_numbers<[1], [0], [0], [1], [0, 0, 1, 1], [], []>} : vector<16x128xbf16>, vector<128x512xbf16>, vector<16x512xf32> -> vector<16x512xf32>
    %283 = arith.addf %279, %282 : vector<16x512xf32>
    %284 = vector.extract_strided_slice %283 {offsets = [0, 0], sizes = [16, 128], strides = [1, 1]} : vector<16x512xf32> to vector<16x128xf32>
    %cst_114 = arith.constant 5.000000e-01 : f32
    %285 = vector.broadcast %cst_114 : f32 to vector<16x128xf32>
    %286 = arith.mulf %285, %284 : vector<16x128xf32>
    %287 = math.tanh %286 : vector<16x128xf32>
    %cst_115 = arith.constant 1.000000e+00 : f32
    %288 = vector.broadcast %cst_115 : f32 to vector<16x128xf32>
    %289 = arith.addf %287, %288 : vector<16x128xf32>
    %cst_116 = arith.constant 5.000000e-01 : f32
    %290 = vector.broadcast %cst_116 : f32 to vector<16x128xf32>
    %291 = arith.mulf %290, %289 : vector<16x128xf32>
    %292 = vector.extract_strided_slice %283 {offsets = [0, 128], sizes = [16, 128], strides = [1, 1]} : vector<16x512xf32> to vector<16x128xf32>
    %cst_117 = arith.constant 5.000000e-01 : f32
    %293 = vector.broadcast %cst_117 : f32 to vector<16x128xf32>
    %294 = arith.mulf %293, %292 : vector<16x128xf32>
    %295 = math.tanh %294 : vector<16x128xf32>
    %cst_118 = arith.constant 1.000000e+00 : f32
    %296 = vector.broadcast %cst_118 : f32 to vector<16x128xf32>
    %297 = arith.addf %295, %296 : vector<16x128xf32>
    %cst_119 = arith.constant 5.000000e-01 : f32
    %298 = vector.broadcast %cst_119 : f32 to vector<16x128xf32>
    %299 = arith.mulf %298, %297 : vector<16x128xf32>
    %300 = vector.extract_strided_slice %283 {offsets = [0, 256], sizes = [16, 128], strides = [1, 1]} : vector<16x512xf32> to vector<16x128xf32>
    %301 = math.tanh %300 : vector<16x128xf32>
    %302 = vector.extract_strided_slice %283 {offsets = [0, 384], sizes = [16, 128], strides = [1, 1]} : vector<16x512xf32> to vector<16x128xf32>
    %cst_120 = arith.constant 5.000000e-01 : f32
    %303 = vector.broadcast %cst_120 : f32 to vector<16x128xf32>
    %304 = arith.mulf %303, %302 : vector<16x128xf32>
    %305 = math.tanh %304 : vector<16x128xf32>
    %cst_121 = arith.constant 1.000000e+00 : f32
    %306 = vector.broadcast %cst_121 : f32 to vector<16x128xf32>
    %307 = arith.addf %305, %306 : vector<16x128xf32>
    %cst_122 = arith.constant 5.000000e-01 : f32
    %308 = vector.broadcast %cst_122 : f32 to vector<16x128xf32>
    %309 = arith.mulf %308, %307 : vector<16x128xf32>
    %310 = arith.mulf %299, %268 : vector<16x128xf32>
    %311 = arith.mulf %291, %301 : vector<16x128xf32>
    %312 = arith.addf %310, %311 : vector<16x128xf32>
    %313 = math.tanh %312 : vector<16x128xf32>
    %314 = arith.mulf %309, %313 : vector<16x128xf32>
    %315 = arith.truncf %314 : vector<16x128xf32> to vector<16x128xbf16>
    %316 = arith.index_cast %c6_i32 : i32 to index
    %c0_123 = arith.constant 0 : index
    %c0_124 = arith.constant 0 : index
    %317 = vector.load %arg6[%316, %c0_123, %c0_124] : memref<8x16x128xbf16, #tpu.memory_space<vmem>>, vector<1x16x128xbf16>
    %318 = vector.shape_cast %317 : vector<1x16x128xbf16> to vector<16x128xbf16>
    %319 = vector.shape_cast %315 : vector<16x128xbf16> to vector<1x16x128xbf16>
    tpu.vector_store %arg6[%316, %c0_123, %c0_124], %319 {strides = array<i32>} : memref<8x16x128xbf16, #tpu.memory_space<vmem>>, vector<1x16x128xbf16>,
    %c7_i32 = arith.constant 7 : i32
    %320 = arith.index_cast %c7_i32 : i32 to index
    %c0_125 = arith.constant 0 : index
    %c0_126 = arith.constant 0 : index
    %321 = vector.load %arg9[%320, %c0_125, %c0_126] : memref<8x16x512xbf16, #tpu.memory_space<vmem>>, vector<1x16x512xbf16>
    %322 = vector.shape_cast %321 : vector<1x16x512xbf16> to vector<16x512xbf16>
    %323 = arith.extf %322 : vector<16x512xbf16> to vector<16x512xf32>
    %324 = arith.truncf %314 : vector<16x128xf32> to vector<16x128xbf16>
    %c0_127 = arith.constant 0 : index
    %c0_128 = arith.constant 0 : index
    %325 = vector.load %arg4[%c0_127, %c0_128] : memref<128x512xbf16, #tpu.memory_space<vmem>>, vector<128x512xbf16>
    %cst_129 = arith.constant dense<0.000000e+00> : vector<16x512xf32>
    %326 = tpu.matmul %324, %325, %cst_129 {dimension_numbers = #tpu.dot_dimension_numbers<[1], [0], [0], [1], [0, 0, 1, 1], [], []>} : vector<16x128xbf16>, vector<128x512xbf16>, vector<16x512xf32> -> vector<16x512xf32>
    %327 = arith.addf %323, %326 : vector<16x512xf32>
    %328 = vector.extract_strided_slice %327 {offsets = [0, 0], sizes = [16, 128], strides = [1, 1]} : vector<16x512xf32> to vector<16x128xf32>
    %cst_130 = arith.constant 5.000000e-01 : f32
    %329 = vector.broadcast %cst_130 : f32 to vector<16x128xf32>
    %330 = arith.mulf %329, %328 : vector<16x128xf32>
    %331 = math.tanh %330 : vector<16x128xf32>
    %cst_131 = arith.constant 1.000000e+00 : f32
    %332 = vector.broadcast %cst_131 : f32 to vector<16x128xf32>
    %333 = arith.addf %331, %332 : vector<16x128xf32>
    %cst_132 = arith.constant 5.000000e-01 : f32
    %334 = vector.broadcast %cst_132 : f32 to vector<16x128xf32>
    %335 = arith.mulf %334, %333 : vector<16x128xf32>
    %336 = vector.extract_strided_slice %327 {offsets = [0, 128], sizes = [16, 128], strides = [1, 1]} : vector<16x512xf32> to vector<16x128xf32>
    %cst_133 = arith.constant 5.000000e-01 : f32
    %337 = vector.broadcast %cst_133 : f32 to vector<16x128xf32>
    %338 = arith.mulf %337, %336 : vector<16x128xf32>
    %339 = math.tanh %338 : vector<16x128xf32>
    %cst_134 = arith.constant 1.000000e+00 : f32
    %340 = vector.broadcast %cst_134 : f32 to vector<16x128xf32>
    %341 = arith.addf %339, %340 : vector<16x128xf32>
    %cst_135 = arith.constant 5.000000e-01 : f32
    %342 = vector.broadcast %cst_135 : f32 to vector<16x128xf32>
    %343 = arith.mulf %342, %341 : vector<16x128xf32>
    %344 = vector.extract_strided_slice %327 {offsets = [0, 256], sizes = [16, 128], strides = [1, 1]} : vector<16x512xf32> to vector<16x128xf32>
    %345 = math.tanh %344 : vector<16x128xf32>
    %346 = vector.extract_strided_slice %327 {offsets = [0, 384], sizes = [16, 128], strides = [1, 1]} : vector<16x512xf32> to vector<16x128xf32>
    %cst_136 = arith.constant 5.000000e-01 : f32
    %347 = vector.broadcast %cst_136 : f32 to vector<16x128xf32>
    %348 = arith.mulf %347, %346 : vector<16x128xf32>
    %349 = math.tanh %348 : vector<16x128xf32>
    %cst_137 = arith.constant 1.000000e+00 : f32
    %350 = vector.broadcast %cst_137 : f32 to vector<16x128xf32>
    %351 = arith.addf %349, %350 : vector<16x128xf32>
    %cst_138 = arith.constant 5.000000e-01 : f32
    %352 = vector.broadcast %cst_138 : f32 to vector<16x128xf32>
    %353 = arith.mulf %352, %351 : vector<16x128xf32>
    %354 = arith.mulf %343, %312 : vector<16x128xf32>
    %355 = arith.mulf %335, %345 : vector<16x128xf32>
    %356 = arith.addf %354, %355 : vector<16x128xf32>
    %357 = math.tanh %356 : vector<16x128xf32>
    %358 = arith.mulf %353, %357 : vector<16x128xf32>
    %359 = arith.truncf %358 : vector<16x128xf32> to vector<16x128xbf16>
    %360 = arith.index_cast %c7_i32 : i32 to index
    %c0_139 = arith.constant 0 : index
    %c0_140 = arith.constant 0 : index
    %361 = vector.load %arg6[%360, %c0_139, %c0_140] : memref<8x16x128xbf16, #tpu.memory_space<vmem>>, vector<1x16x128xbf16>
    %362 = vector.shape_cast %361 : vector<1x16x128xbf16> to vector<16x128xbf16>
    %363 = vector.shape_cast %359 : vector<16x128xbf16> to vector<1x16x128xbf16>
    tpu.vector_store %arg6[%360, %c0_139, %c0_140], %363 {strides = array<i32>} : memref<8x16x128xbf16, #tpu.memory_space<vmem>>, vector<1x16x128xbf16>,
    %c8_i32 = arith.constant 8 : i32
    %c0_141 = arith.constant 0 : index
    %c0_142 = arith.constant 0 : index
    %364 = vector.load %arg7[%c0_141, %c0_142] : memref<16x128xf32, #tpu.memory_space<vmem>>, vector<16x128xf32>
    tpu.vector_store %arg7[%c0_141, %c0_142], %358 {strides = array<i32>} : memref<16x128xf32, #tpu.memory_space<vmem>>, vector<16x128xf32>,
    %c0_143 = arith.constant 0 : index
    %c0_144 = arith.constant 0 : index
    %365 = vector.load %arg8[%c0_143, %c0_144] : memref<16x128xf32, #tpu.memory_space<vmem>>, vector<16x128xf32>
    tpu.vector_store %arg8[%c0_143, %c0_144], %356 {strides = array<i32>} : memref<16x128xf32, #tpu.memory_space<vmem>>, vector<16x128xf32>,
    return
  }
}

</mosaic_0001>

<llo_original>
// kernel: tpu_custom_call.1
$region0: #{tpu_custom_call.1}
  #allocation0 [shape = 'u32[]', space=smem, size = 0x4, offset = 0x4, fixed_abs, tag = 'smem constant byte address 0x4 - core index']
  #allocation1 [shape = 'u32[72,128]{1,0:T(1,128)}', space=vmem, size = 0x9000, scoped, tag = 'internal scratch']
  #allocation2 [shape = 'bf16[8,16,512]{2,1,0:T(8,128)(2,1)}', space=vmem, size = 0x20000, scoped, tag = 'scratch operand']
  %s0 = inlined_call_operand.hbm [shape: bf16[8,16,128], index: 0, kind: input, shape index: {}]
  %s1 = inlined_call_operand.hbm [shape: f32[16,128], index: 1, kind: input, shape index: {}]
  %s2 = inlined_call_operand.hbm [shape: f32[16,128], index: 2, kind: input, shape index: {}]
  %s3 = inlined_call_operand.hbm [shape: bf16[128,512], index: 3, kind: input, shape index: {}]
  %s4 = inlined_call_operand.hbm [shape: bf16[128,512], index: 4, kind: input, shape index: {}]
  %s5 = inlined_call_operand.vmem [shape: f32[1,512], index: 5, kind: input, shape index: {}]
  %s6 = inlined_call_operand.hbm [shape: bf16[8,16,128], index: 6, kind: output, shape index: {0}]
  %s7 = inlined_call_operand.hbm [shape: f32[16,128], index: 7, kind: output, shape index: {1}]
  %s8 = inlined_call_operand.hbm [shape: f32[16,128], index: 8, kind: output, shape index: {2}]
  %9 = xla_tuple %s6, %s7, %s8
  %s10 = sld [smem:[#allocation0]]
  $region70: #{tpu_custom_call.1} parent=0
    _
  %s12 = ssub.s32 1, %s10
  %s13 = scalar_select 0, %s12, %s10
  $region1: #{tpu_custom_call.1} parent=0
    #allocation3 [shape = 'u8[32768]{0}', space=vmem, size = 0x8000, scoped, tag = 'input window, operand 0, single buffered']
    #allocation4 [shape = 's32[1]{0}', space=sflag, size = 0x4, scoped, tag = 'scoped memory for tpu_custom_call.1']
    #allocation5 [shape = 's32[1]{0}', space=sflag, size = 0x4, scoped, tag = 'scoped memory for tpu_custom_call.1']
    #allocation6 [shape = 'u8[8192]{0}', space=vmem, size = 0x2000, scoped, tag = 'input window, operand 1, single buffered']
    #allocation7 [shape = 's32[1]{0}', space=sflag, size = 0x4, scoped, tag = 'scoped memory for tpu_custom_call.1']
    #allocation8 [shape = 'u8[8192]{0}', space=vmem, size = 0x2000, scoped, tag = 'input window, operand 2, single buffered']
    #allocation9 [shape = 'u8[131072]{0}', space=vmem, size = 0x20000, scoped, tag = 'input window, operand 3, single buffered']
    #allocation10 [shape = 's32[1]{0}', space=sflag, size = 0x4, scoped, tag = 'scoped memory for tpu_custom_call.1']
    #allocation11 [shape = 'u8[131072]{0}', space=vmem, size = 0x20000, scoped, tag = 'input window, operand 4, single buffered']
    #allocation12 [shape = 'u8[32768]{0}', space=vmem, size = 0x8000, scoped, tag = 'output window, operand 0, single buffered']
    #allocation13 [shape = 'u8[8192]{0}', space=vmem, size = 0x2000, scoped, tag = 'output window, operand 1, single buffered']
    #allocation14 [shape = 's32[1]{0}', space=sflag, size = 0x4, scoped, tag = 'scoped memory for tpu_custom_call.1']
    #allocation15 [shape = 'u8[8192]{0}', space=vmem, size = 0x2000, scoped, tag = 'output window, operand 2, single buffered']
    %14 = vsyncpa [#allocation4], 0
    %15 = vsyncpa [#allocation7], 0
    %16 = vsyncpa [#allocation10], 0
    %17 = vsyncpa [#allocation5], 0
    %18 = vsyncpa [#allocation14], 0
    // Predicated region
    $region2: #{tpu_custom_call.1} parent=1 // pred_check
      _
    $region3: #{tpu_custom_call.1} parent=1 // pred_check_branch
      %20 = sbr.rel (0) target = $region5
    $region4: #{tpu_custom_call.1} parent=1 // pred_region
      %22 = vsyncadd [#allocation4], 0
      %s23 = sshll.u32 %s0, 4
      %s24 = int_to_ptr.hbm [resolvable:$true] %s23
      %s25 = sshll.u32 [#allocation3], 4
      %s26 = int_to_ptr.vmem [resolvable:$true] %s25
      %31 = dma.hbm_to_vmem [thread:$0]  %s24, 1024, %s26, [#allocation4], 64, 64, 4
    $region5: #{tpu_custom_call.1} parent=1 // pred_fallthru
      _
    // Predicated region
    $region6: #{tpu_custom_call.1} parent=1 // pred_check
      _
    $region7: #{tpu_custom_call.1} parent=1 // pred_check_branch
      %33 = sbr.rel (0) target = $region9
    $region8: #{tpu_custom_call.1} parent=1 // pred_region
      %35 = vsyncadd [#allocation7], 0
      %s36 = sshll.u32 %s1, 4
      %s37 = int_to_ptr.hbm [resolvable:$true] %s36
      %s38 = sshll.u32 [#allocation6], 4
      %s39 = int_to_ptr.vmem [resolvable:$true] %s38
      %44 = dma.hbm_to_vmem [thread:$0]  %s37, 256, %s39, [#allocation7], 128, 128, 8
    $region9: #{tpu_custom_call.1} parent=1 // pred_fallthru
      _
    // Predicated region
    $region10: #{tpu_custom_call.1} parent=1 // pred_check
      _
    $region11: #{tpu_custom_call.1} parent=1 // pred_check_branch
      %46 = sbr.rel (0) target = $region13
    $region12: #{tpu_custom_call.1} parent=1 // pred_region
      %48 = vsyncadd [#allocation7], 0
      %s49 = sshll.u32 %s2, 4
      %s50 = int_to_ptr.hbm [resolvable:$true] %s49
      %s51 = sshll.u32 [#allocation8], 4
      %s52 = int_to_ptr.vmem [resolvable:$true] %s51
      %57 = dma.hbm_to_vmem [thread:$0]  %s50, 256, %s52, [#allocation7], 128, 128, 8
    $region13: #{tpu_custom_call.1} parent=1 // pred_fallthru
      _
    // Predicated region
    $region14: #{tpu_custom_call.1} parent=1 // pred_check
      _
    $region15: #{tpu_custom_call.1} parent=1 // pred_check_branch
      %59 = sbr.rel (0) target = $region17
    $region16: #{tpu_custom_call.1} parent=1 // pred_region
      %61 = vsyncadd [#allocation10], 0
      %s62 = sshll.u32 %s3, 4
      %s63 = int_to_ptr.hbm [resolvable:$true] %s62
      %s64 = sshll.u32 [#allocation9], 4
      %s65 = int_to_ptr.vmem [resolvable:$true] %s64
      %70 = dma.hbm_to_vmem [thread:$0]  %s63, 4096, %s65, [#allocation10], 256, 256, 16
    $region17: #{tpu_custom_call.1} parent=1 // pred_fallthru
      _
    // Predicated region
    $region18: #{tpu_custom_call.1} parent=1 // pred_check
      _
    $region19: #{tpu_custom_call.1} parent=1 // pred_check_branch
      %72 = sbr.rel (0) target = $region21
    $region20: #{tpu_custom_call.1} parent=1 // pred_region
      %74 = vsyncadd [#allocation10], 0
      %s75 = sshll.u32 %s4, 4
      %s76 = int_to_ptr.hbm [resolvable:$true] %s75
      %s77 = sshll.u32 [#allocation11], 4
      %s78 = int_to_ptr.vmem [resolvable:$true] %s77
      %83 = dma.hbm_to_vmem [thread:$0]  %s76, 4096, %s78, [#allocation10], 256, 256, 16
    $region21: #{tpu_custom_call.1} parent=1 // pred_fallthru
      _
    // Predicated region
    $region22: #{tpu_custom_call.1} parent=1 // pred_check
      _
    $region23: #{tpu_custom_call.1} parent=1 // pred_check_branch
      %85 = sbr.rel (0) target = $region25
    $region24: #{tpu_custom_call.1} parent=1 // pred_region
      _
    $region25: #{tpu_custom_call.1} parent=1 // pred_fallthru
      _
    // Predicated region
    $region26: #{tpu_custom_call.1} parent=1 // pred_check
      _
    $region27: #{tpu_custom_call.1} parent=1 // pred_check_branch
      %87 = sbr.rel (0) target = $region29
    $region28: #{tpu_custom_call.1} parent=1 // pred_region
      %89 = dma.done [#allocation4], 1024
    $region29: #{tpu_custom_call.1} parent=1 // pred_fallthru
      _
    // Predicated region
    $region30: #{tpu_custom_call.1} parent=1 // pred_check
      _
    $region31: #{tpu_custom_call.1} parent=1 // pred_check_branch
      %91 = sbr.rel (0) target = $region33
    $region32: #{tpu_custom_call.1} parent=1 // pred_region
      %93 = dma.done [#allocation7], 256
    $region33: #{tpu_custom_call.1} parent=1 // pred_fallthru
      _
    // Predicated region
    $region34: #{tpu_custom_call.1} parent=1 // pred_check
      _
    $region35: #{tpu_custom_call.1} parent=1 // pred_check_branch
      %95 = sbr.rel (0) target = $region37
    $region36: #{tpu_custom_call.1} parent=1 // pred_region
      %97 = dma.done [#allocation7], 256
    $region37: #{tpu_custom_call.1} parent=1 // pred_fallthru
      _
    // Predicated region
    $region38: #{tpu_custom_call.1} parent=1 // pred_check
      _
    $region39: #{tpu_custom_call.1} parent=1 // pred_check_branch
      %99 = sbr.rel (0) target = $region41
    $region40: #{tpu_custom_call.1} parent=1 // pred_region
      %101 = dma.done [#allocation10], 4096
    $region41: #{tpu_custom_call.1} parent=1 // pred_fallthru
      _
    // Predicated region
    $region42: #{tpu_custom_call.1} parent=1 // pred_check
      _
    $region43: #{tpu_custom_call.1} parent=1 // pred_check_branch
      %103 = sbr.rel (0) target = $region45
    $region44: #{tpu_custom_call.1} parent=1 // pred_region
      %105 = dma.done [#allocation10], 4096
    $region45: #{tpu_custom_call.1} parent=1 // pred_fallthru
      _
    %v106 = vld [vmem:[#allocation3] sm:$0xf]
    %v107 = vld [vmem:[#allocation3 + $0x4] sm:$0xf]
    %v108 = vld [vmem:[#allocation3 + $0x8] sm:$0xf]
    %v109 = vld [vmem:[#allocation3 + $0xc] sm:$0xf]
    %v110 = vld [vmem:[#allocation3 + $0x10] sm:$0xf]
    %v111 = vld [vmem:[#allocation3 + $0x14] sm:$0xf]
    %v112 = vld [vmem:[#allocation3 + $0x18] sm:$0xf]
    %v113 = vld [vmem:[#allocation3 + $0x1c] sm:$0xf]
    %v114 = vld [vmem:[#allocation3 + $0x20] sm:$0xf]
    %v115 = vld [vmem:[#allocation3 + $0x24] sm:$0xf]
    %v116 = vld [vmem:[#allocation3 + $0x28] sm:$0xf]
    %v117 = vld [vmem:[#allocation3 + $0x2c] sm:$0xf]
    %v118 = vld [vmem:[#allocation3 + $0x30] sm:$0xf]
    %v119 = vld [vmem:[#allocation3 + $0x34] sm:$0xf]
    %v120 = vld [vmem:[#allocation3 + $0x38] sm:$0xf]
    %v121 = vld [vmem:[#allocation3 + $0x3c] sm:$0xf]
    %v122 = vld [vmem:[#allocation9] sm:$0xff]
    %v123 = vld [vmem:[#allocation9 + $0x8] sm:$0xff]
    %v124 = vld [vmem:[#allocation9 + $0x10] sm:$0xff]
    %v125 = vld [vmem:[#allocation9 + $0x18] sm:$0xff]
    %v126 = vld [vmem:[#allocation9 + $0x20] sm:$0xff]
    %v127 = vld [vmem:[#allocation9 + $0x28] sm:$0xff]
    %v128 = vld [vmem:[#allocation9 + $0x30] sm:$0xff]
    %v129 = vld [vmem:[#allocation9 + $0x38] sm:$0xff]
    %v130 = vld [vmem:[#allocation9 + $0x40] sm:$0xff]
    %v131 = vld [vmem:[#allocation9 + $0x48] sm:$0xff]
    %v132 = vld [vmem:[#allocation9 + $0x50] sm:$0xff]
    %v133 = vld [vmem:[#allocation9 + $0x58] sm:$0xff]
    %v134 = vld [vmem:[#allocation9 + $0x60] sm:$0xff]
    %v135 = vld [vmem:[#allocation9 + $0x68] sm:$0xff]
    %v136 = vld [vmem:[#allocation9 + $0x70] sm:$0xff]
    %v137 = vld [vmem:[#allocation9 + $0x78] sm:$0xff]
    %v138 = vld [vmem:[#allocation9 + $0x80] sm:$0xff]
    %v139 = vld [vmem:[#allocation9 + $0x88] sm:$0xff]
    %v140 = vld [vmem:[#allocation9 + $0x90] sm:$0xff]
    %v141 = vld [vmem:[#allocation9 + $0x98] sm:$0xff]
    %v142 = vld [vmem:[#allocation9 + $0xa0] sm:$0xff]
    %v143 = vld [vmem:[#allocation9 + $0xa8] sm:$0xff]
    %v144 = vld [vmem:[#allocation9 + $0xb0] sm:$0xff]
    %v145 = vld [vmem:[#allocation9 + $0xb8] sm:$0xff]
    %v146 = vld [vmem:[#allocation9 + $0xc0] sm:$0xff]
    %v147 = vld [vmem:[#allocation9 + $0xc8] sm:$0xff]
    %v148 = vld [vmem:[#allocation9 + $0xd0] sm:$0xff]
    %v149 = vld [vmem:[#allocation9 + $0xd8] sm:$0xff]
    %v150 = vld [vmem:[#allocation9 + $0xe0] sm:$0xff]
    %v151 = vld [vmem:[#allocation9 + $0xe8] sm:$0xff]
    %v152 = vld [vmem:[#allocation9 + $0xf0] sm:$0xff]
    %v153 = vld [vmem:[#allocation9 + $0xf8] sm:$0xff]
    %v154 = vld [vmem:[%s5] sm:$0xf]
    %v156 = vperm.slane %v154, 0
    %v157 = vperm.slane %v154, 1
    %v158 = vperm.slane %v154, 2
    %v159 = vperm.slane %v154, 3
    %v180 = vunpack.c.l.b16 %v106
    %v181 = vunpack.c.l.b16 %v107
    %v182 = vunpack.c.l.b16 %v108
    %v183 = vunpack.c.l.b16 %v109
    %v184 = vunpack.c.l.b16 %v110
    %v185 = vunpack.c.l.b16 %v111
    %v186 = vunpack.c.l.b16 %v112
    %v187 = vunpack.c.l.b16 %v113
    %v188 = vunpack.c.l.b16 %v114
    %v189 = vunpack.c.l.b16 %v115
    %v190 = vunpack.c.l.b16 %v116
    %v191 = vunpack.c.l.b16 %v117
    %v192 = vunpack.c.l.b16 %v118
    %v193 = vunpack.c.l.b16 %v119
    %v194 = vunpack.c.l.b16 %v120
    %v195 = vunpack.c.l.b16 %v121
    %v196 = vpack.c.b16 %v181, %v180
    %v197 = vpack.c.b16 %v183, %v182
    %v198 = vpack.c.b16 %v185, %v184
    %v199 = vpack.c.b16 %v187, %v186
    %v200 = vpack.c.b16 %v189, %v188
    %v201 = vpack.c.b16 %v191, %v190
    %v202 = vpack.c.b16 %v193, %v192
    %v203 = vpack.c.b16 %v195, %v194
    %v244 = vunpack.c.l.b16 %v122
    %v245 = vunpack.c.h.b16 %v122
    %v246 = vunpack.c.l.b16 %v123
    %v247 = vunpack.c.h.b16 %v123
    %v248 = vunpack.c.l.b16 %v124
    %v249 = vunpack.c.h.b16 %v124
    %v250 = vunpack.c.l.b16 %v125
    %v251 = vunpack.c.h.b16 %v125
    %v252 = vunpack.c.l.b16 %v126
    %v253 = vunpack.c.h.b16 %v126
    %v254 = vunpack.c.l.b16 %v127
    %v255 = vunpack.c.h.b16 %v127
    %v256 = vunpack.c.l.b16 %v128
    %v257 = vunpack.c.h.b16 %v128
    %v258 = vunpack.c.l.b16 %v129
    %v259 = vunpack.c.h.b16 %v129
    %v260 = vunpack.c.l.b16 %v130
    %v261 = vunpack.c.h.b16 %v130
    %v262 = vunpack.c.l.b16 %v131
    %v263 = vunpack.c.h.b16 %v131
    %v264 = vunpack.c.l.b16 %v132
    %v265 = vunpack.c.h.b16 %v132
    %v266 = vunpack.c.l.b16 %v133
    %v267 = vunpack.c.h.b16 %v133
    %v268 = vunpack.c.l.b16 %v134
    %v269 = vunpack.c.h.b16 %v134
    %v270 = vunpack.c.l.b16 %v135
    %v271 = vunpack.c.h.b16 %v135
    %v272 = vunpack.c.l.b16 %v136
    %v273 = vunpack.c.h.b16 %v136
    %v274 = vunpack.c.l.b16 %v137
    %v275 = vunpack.c.h.b16 %v137
    %v276 = vunpack.c.l.b16 %v138
    %v277 = vunpack.c.h.b16 %v138
    %v278 = vunpack.c.l.b16 %v139
    %v279 = vunpack.c.h.b16 %v139
    %v280 = vunpack.c.l.b16 %v140
    %v281 = vunpack.c.h.b16 %v140
    %v282 = vunpack.c.l.b16 %v141
    %v283 = vunpack.c.h.b16 %v141
    %v284 = vunpack.c.l.b16 %v142
    %v285 = vunpack.c.h.b16 %v142
    %v286 = vunpack.c.l.b16 %v143
    %v287 = vunpack.c.h.b16 %v143
    %v288 = vunpack.c.l.b16 %v144
    %v289 = vunpack.c.h.b16 %v144
    %v290 = vunpack.c.l.b16 %v145
    %v291 = vunpack.c.h.b16 %v145
    %v292 = vunpack.c.l.b16 %v146
    %v293 = vunpack.c.h.b16 %v146
    %v294 = vunpack.c.l.b16 %v147
    %v295 = vunpack.c.h.b16 %v147
    %v296 = vunpack.c.l.b16 %v148
    %v297 = vunpack.c.h.b16 %v148
    %v298 = vunpack.c.l.b16 %v149
    %v299 = vunpack.c.h.b16 %v149
    %v300 = vunpack.c.l.b16 %v150
    %v301 = vunpack.c.h.b16 %v150
    %v302 = vunpack.c.l.b16 %v151
    %v303 = vunpack.c.h.b16 %v151
    %v304 = vunpack.c.l.b16 %v152
    %v305 = vunpack.c.h.b16 %v152
    %v306 = vunpack.c.l.b16 %v153
    %v307 = vunpack.c.h.b16 %v153
    %v308 = vpack.c.b16 %v248, %v244
    %v309 = vpack.c.b16 %v249, %v245
    %v310 = vpack.c.b16 %v250, %v246
    %v311 = vpack.c.b16 %v251, %v247
    %v312 = vpack.c.b16 %v256, %v252
    %v313 = vpack.c.b16 %v257, %v253
    %v314 = vpack.c.b16 %v258, %v254
    %v315 = vpack.c.b16 %v259, %v255
    %v316 = vpack.c.b16 %v264, %v260
    %v317 = vpack.c.b16 %v265, %v261
    %v318 = vpack.c.b16 %v266, %v262
    %v319 = vpack.c.b16 %v267, %v263
    %v320 = vpack.c.b16 %v272, %v268
    %v321 = vpack.c.b16 %v273, %v269
    %v322 = vpack.c.b16 %v274, %v270
    %v323 = vpack.c.b16 %v275, %v271
    %v324 = vpack.c.b16 %v280, %v276
    %v325 = vpack.c.b16 %v281, %v277
    %v326 = vpack.c.b16 %v282, %v278
    %v327 = vpack.c.b16 %v283, %v279
    %v328 = vpack.c.b16 %v288, %v284
    %v329 = vpack.c.b16 %v289, %v285
    %v330 = vpack.c.b16 %v290, %v286
    %v331 = vpack.c.b16 %v291, %v287
    %v332 = vpack.c.b16 %v296, %v292
    %v333 = vpack.c.b16 %v297, %v293
    %v334 = vpack.c.b16 %v298, %v294
    %v335 = vpack.c.b16 %v299, %v295
    %v336 = vpack.c.b16 %v304, %v300
    %v337 = vpack.c.b16 %v305, %v301
    %v338 = vpack.c.b16 %v306, %v302
    %v339 = vpack.c.b16 %v307, %v303
    %372 = vmatpush.bf16.msra.mxu0 %v336
    %373 = vmatpush.bf16.msra.mxu0 %v332
    %374 = vmatpush.bf16.msra.mxu0 %v328
    %375 = vmatpush.bf16.msra.mxu0 %v324
    %376 = vmatpush.bf16.msra.mxu0 %v320
    %377 = vmatpush.bf16.msra.mxu0 %v316
    %378 = vmatpush.bf16.msra.mxu0 %v312
    %379 = vmatpush.bf16.msra.mxu0 %v308
    %380 = vmatmul.bf16.gmra.mxu0 %v196
    %v381 = vpop.f32.mrf.mxu0
    %v382 = vadd.f32 %v156, %v381
    %v383 = vpop.f32.mrf.mxu0
    %v384 = vadd.f32 %v156, %v383
    %385 = vmatmul.bf16.gmra.mxu0 %v197
    %v386 = vpop.f32.mrf.mxu0
    %v387 = vadd.f32 %v156, %v386
    %v388 = vpop.f32.mrf.mxu0
    %v389 = vadd.f32 %v156, %v388
    %390 = vmatmul.bf16.gmra.mxu0 %v198
    %v391 = vpop.f32.mrf.mxu0
    %v392 = vadd.f32 %v156, %v391
    %v393 = vpop.f32.mrf.mxu0
    %v394 = vadd.f32 %v156, %v393
    %395 = vmatmul.bf16.gmra.mxu0 %v199
    %v396 = vpop.f32.mrf.mxu0
    %v397 = vadd.f32 %v156, %v396
    %v398 = vpop.f32.mrf.mxu0
    %v399 = vadd.f32 %v156, %v398
    %400 = vmatmul.bf16.gmra.mxu0 %v200
    %v401 = vpop.f32.mrf.mxu0
    %v402 = vadd.f32 %v156, %v401
    %v403 = vpop.f32.mrf.mxu0
    %v404 = vadd.f32 %v156, %v403
    %405 = vmatmul.bf16.gmra.mxu0 %v201
    %v406 = vpop.f32.mrf.mxu0
    %v407 = vadd.f32 %v156, %v406
    %v408 = vpop.f32.mrf.mxu0
    %v409 = vadd.f32 %v156, %v408
    %410 = vmatmul.bf16.gmra.mxu0 %v202
    %v411 = vpop.f32.mrf.mxu0
    %v412 = vadd.f32 %v156, %v411
    %v413 = vpop.f32.mrf.mxu0
    %v414 = vadd.f32 %v156, %v413
    %415 = vmatmul.bf16.gmra.mxu0 %v203
    %v416 = vpop.f32.mrf.mxu0
    %v417 = vadd.f32 %v156, %v416
    %v418 = vpop.f32.mrf.mxu0
    %v419 = vadd.f32 %v156, %v418
    %420 = vdwg.mxu0
    %421 = vmatpush.bf16.msra.mxu0 %v337
    %422 = vmatpush.bf16.msra.mxu0 %v333
    %423 = vmatpush.bf16.msra.mxu0 %v329
    %424 = vmatpush.bf16.msra.mxu0 %v325
    %425 = vmatpush.bf16.msra.mxu0 %v321
    %426 = vmatpush.bf16.msra.mxu0 %v317
    %427 = vmatpush.bf16.msra.mxu0 %v313
    %428 = vmatpush.bf16.msra.mxu0 %v309
    %429 = vmatmul.bf16.gmra.mxu0 %v196
    %v430 = vpop.f32.mrf.mxu0
    %v431 = vadd.f32 %v157, %v430
    %v432 = vpop.f32.mrf.mxu0
    %v433 = vadd.f32 %v157, %v432
    %434 = vmatmul.bf16.gmra.mxu0 %v197
    %v435 = vpop.f32.mrf.mxu0
    %v436 = vadd.f32 %v157, %v435
    %v437 = vpop.f32.mrf.mxu0
    %v438 = vadd.f32 %v157, %v437
    %439 = vmatmul.bf16.gmra.mxu0 %v198
    %v440 = vpop.f32.mrf.mxu0
    %v441 = vadd.f32 %v157, %v440
    %v442 = vpop.f32.mrf.mxu0
    %v443 = vadd.f32 %v157, %v442
    %444 = vmatmul.bf16.gmra.mxu0 %v199
    %v445 = vpop.f32.mrf.mxu0
    %v446 = vadd.f32 %v157, %v445
    %v447 = vpop.f32.mrf.mxu0
    %v448 = vadd.f32 %v157, %v447
    %449 = vmatmul.bf16.gmra.mxu0 %v200
    %v450 = vpop.f32.mrf.mxu0
    %v451 = vadd.f32 %v157, %v450
    %v452 = vpop.f32.mrf.mxu0
    %v453 = vadd.f32 %v157, %v452
    %454 = vmatmul.bf16.gmra.mxu0 %v201
    %v455 = vpop.f32.mrf.mxu0
    %v456 = vadd.f32 %v157, %v455
    %v457 = vpop.f32.mrf.mxu0
    %v458 = vadd.f32 %v157, %v457
    %459 = vmatmul.bf16.gmra.mxu0 %v202
    %v460 = vpop.f32.mrf.mxu0
    %v461 = vadd.f32 %v157, %v460
    %v462 = vpop.f32.mrf.mxu0
    %v463 = vadd.f32 %v157, %v462
    %464 = vmatmul.bf16.gmra.mxu0 %v203
    %v465 = vpop.f32.mrf.mxu0
    %v466 = vadd.f32 %v157, %v465
    %v467 = vpop.f32.mrf.mxu0
    %v468 = vadd.f32 %v157, %v467
    %469 = vdwg.mxu0
    %470 = vmatpush.bf16.msra.mxu0 %v338
    %471 = vmatpush.bf16.msra.mxu0 %v334
    %472 = vmatpush.bf16.msra.mxu0 %v330
    %473 = vmatpush.bf16.msra.mxu0 %v326
    %474 = vmatpush.bf16.msra.mxu0 %v322
    %475 = vmatpush.bf16.msra.mxu0 %v318
    %476 = vmatpush.bf16.msra.mxu0 %v314
    %477 = vmatpush.bf16.msra.mxu0 %v310
    %478 = vmatmul.bf16.gmra.mxu0 %v196
    %v479 = vpop.f32.mrf.mxu0
    %v480 = vadd.f32 %v158, %v479
    %v481 = vpop.f32.mrf.mxu0
    %v482 = vadd.f32 %v158, %v481
    %483 = vmatmul.bf16.gmra.mxu0 %v197
    %v484 = vpop.f32.mrf.mxu0
    %v485 = vadd.f32 %v158, %v484
    %v486 = vpop.f32.mrf.mxu0
    %v487 = vadd.f32 %v158, %v486
    %488 = vmatmul.bf16.gmra.mxu0 %v198
    %v489 = vpop.f32.mrf.mxu0
    %v490 = vadd.f32 %v158, %v489
    %v491 = vpop.f32.mrf.mxu0
    %v492 = vadd.f32 %v158, %v491
    %493 = vmatmul.bf16.gmra.mxu0 %v199
    %v494 = vpop.f32.mrf.mxu0
    %v495 = vadd.f32 %v158, %v494
    %v496 = vpop.f32.mrf.mxu0
    %v497 = vadd.f32 %v158, %v496
    %498 = vmatmul.bf16.gmra.mxu0 %v200
    %v499 = vpop.f32.mrf.mxu0
    %v500 = vadd.f32 %v158, %v499
    %v501 = vpop.f32.mrf.mxu0
    %v502 = vadd.f32 %v158, %v501
    %503 = vmatmul.bf16.gmra.mxu0 %v201
    %v504 = vpop.f32.mrf.mxu0
    %v505 = vadd.f32 %v158, %v504
    %v506 = vpop.f32.mrf.mxu0
    %v507 = vadd.f32 %v158, %v506
    %508 = vmatmul.bf16.gmra.mxu0 %v202
    %v509 = vpop.f32.mrf.mxu0
    %v510 = vadd.f32 %v158, %v509
    %v511 = vpop.f32.mrf.mxu0
    %v512 = vadd.f32 %v158, %v511
    %513 = vmatmul.bf16.gmra.mxu0 %v203
    %v514 = vpop.f32.mrf.mxu0
    %v515 = vadd.f32 %v158, %v514
    %v516 = vpop.f32.mrf.mxu0
    %v517 = vadd.f32 %v158, %v516
    %518 = vdwg.mxu0
    %519 = vmatpush.bf16.msra.mxu0 %v339
    %520 = vmatpush.bf16.msra.mxu0 %v335
    %521 = vmatpush.bf16.msra.mxu0 %v331
    %522 = vmatpush.bf16.msra.mxu0 %v327
    %523 = vmatpush.bf16.msra.mxu0 %v323
    %524 = vmatpush.bf16.msra.mxu0 %v319
    %525 = vmatpush.bf16.msra.mxu0 %v315
    %526 = vmatpush.bf16.msra.mxu0 %v311
    %527 = vmatmul.bf16.gmra.mxu0 %v196
    %v528 = vpop.f32.mrf.mxu0
    %v529 = vadd.f32 %v159, %v528
    %v530 = vpop.f32.mrf.mxu0
    %v531 = vadd.f32 %v159, %v530
    %532 = vmatmul.bf16.gmra.mxu0 %v197
    %v533 = vpop.f32.mrf.mxu0
    %v534 = vadd.f32 %v159, %v533
    %v535 = vpop.f32.mrf.mxu0
    %v536 = vadd.f32 %v159, %v535
    %537 = vmatmul.bf16.gmra.mxu0 %v198
    %v538 = vpop.f32.mrf.mxu0
    %v539 = vadd.f32 %v159, %v538
    %v540 = vpop.f32.mrf.mxu0
    %v541 = vadd.f32 %v159, %v540
    %542 = vmatmul.bf16.gmra.mxu0 %v199
    %v543 = vpop.f32.mrf.mxu0
    %v544 = vadd.f32 %v159, %v543
    %v545 = vpop.f32.mrf.mxu0
    %v546 = vadd.f32 %v159, %v545
    %547 = vmatmul.bf16.gmra.mxu0 %v200
    %v548 = vpop.f32.mrf.mxu0
    %v549 = vadd.f32 %v159, %v548
    %v550 = vpop.f32.mrf.mxu0
    %v551 = vadd.f32 %v159, %v550
    %552 = vmatmul.bf16.gmra.mxu0 %v201
    %v553 = vpop.f32.mrf.mxu0
    %v554 = vadd.f32 %v159, %v553
    %v555 = vpop.f32.mrf.mxu0
    %v556 = vadd.f32 %v159, %v555
    %557 = vmatmul.bf16.gmra.mxu0 %v202
    %v558 = vpop.f32.mrf.mxu0
    %v559 = vadd.f32 %v159, %v558
    %v560 = vpop.f32.mrf.mxu0
    %v561 = vadd.f32 %v159, %v560
    %562 = vmatmul.bf16.gmra.mxu0 %v203
    %v563 = vpop.f32.mrf.mxu0
    %v564 = vadd.f32 %v159, %v563
    %v565 = vpop.f32.mrf.mxu0
    %v566 = vadd.f32 %v159, %v565
    %567 = vdwg.mxu0
    %v568 = vpack.c.bf16 %v431, %v382
    %v569 = vpack.c.bf16 %v529, %v480
    %v570 = vpack.c.bf16 %v433, %v384
    %v571 = vpack.c.bf16 %v531, %v482
    %v572 = vpack.c.bf16 %v436, %v387
    %v573 = vpack.c.bf16 %v534, %v485
    %v574 = vpack.c.bf16 %v438, %v389
    %v575 = vpack.c.bf16 %v536, %v487
    %v576 = vpack.c.bf16 %v441, %v392
    %v577 = vpack.c.bf16 %v539, %v490
    %v578 = vpack.c.bf16 %v443, %v394
    %v579 = vpack.c.bf16 %v541, %v492
    %v580 = vpack.c.bf16 %v446, %v397
    %v581 = vpack.c.bf16 %v544, %v495
    %v582 = vpack.c.bf16 %v448, %v399
    %v583 = vpack.c.bf16 %v546, %v497
    %v584 = vpack.c.bf16 %v451, %v402
    %v585 = vpack.c.bf16 %v549, %v500
    %v586 = vpack.c.bf16 %v453, %v404
    %v587 = vpack.c.bf16 %v551, %v502
    %v588 = vpack.c.bf16 %v456, %v407
    %v589 = vpack.c.bf16 %v554, %v505
    %v590 = vpack.c.bf16 %v458, %v409
    %v591 = vpack.c.bf16 %v556, %v507
    %v592 = vpack.c.bf16 %v461, %v412
    %v593 = vpack.c.bf16 %v559, %v510
    %v594 = vpack.c.bf16 %v463, %v414
    %v595 = vpack.c.bf16 %v561, %v512
    %v596 = vpack.c.bf16 %v466, %v417
    %v597 = vpack.c.bf16 %v564, %v515
    %v598 = vpack.c.bf16 %v468, %v419
    %v599 = vpack.c.bf16 %v566, %v517
    %600 = vst [vmem:[#allocation2] sm:$0xff] %v568
    %601 = vst [vmem:[#allocation2 + $0x8] sm:$0xff] %v569
    %602 = vst [vmem:[#allocation2 + $0x10] sm:$0xff] %v570
    %603 = vst [vmem:[#allocation2 + $0x18] sm:$0xff] %v571
    %604 = vst [vmem:[#allocation2 + $0x20] sm:$0xff] %v572
    %605 = vst [vmem:[#allocation2 + $0x28] sm:$0xff] %v573
    %606 = vst [vmem:[#allocation2 + $0x30] sm:$0xff] %v574
    %607 = vst [vmem:[#allocation2 + $0x38] sm:$0xff] %v575
    %608 = vst [vmem:[#allocation2 + $0x40] sm:$0xff] %v576
    %609 = vst [vmem:[#allocation2 + $0x48] sm:$0xff] %v577
    %610 = vst [vmem:[#allocation2 + $0x50] sm:$0xff] %v578
    %611 = vst [vmem:[#allocation2 + $0x58] sm:$0xff] %v579
    %612 = vst [vmem:[#allocation2 + $0x60] sm:$0xff] %v580
    %613 = vst [vmem:[#allocation2 + $0x68] sm:$0xff] %v581
    %614 = vst [vmem:[#allocation2 + $0x70] sm:$0xff] %v582
    %615 = vst [vmem:[#allocation2 + $0x78] sm:$0xff] %v583
    %616 = vst [vmem:[#allocation2 + $0x80] sm:$0xff] %v584
    %617 = vst [vmem:[#allocation2 + $0x88] sm:$0xff] %v585
    %618 = vst [vmem:[#allocation2 + $0x90] sm:$0xff] %v586
    %619 = vst [vmem:[#allocation2 + $0x98] sm:$0xff] %v587
    %620 = vst [vmem:[#allocation2 + $0xa0] sm:$0xff] %v588
    %621 = vst [vmem:[#allocation2 + $0xa8] sm:$0xff] %v589
    %622 = vst [vmem:[#allocation2 + $0xb0] sm:$0xff] %v590
    %623 = vst [vmem:[#allocation2 + $0xb8] sm:$0xff] %v591
    %624 = vst [vmem:[#allocation2 + $0xc0] sm:$0xff] %v592
    %625 = vst [vmem:[#allocation2 + $0xc8] sm:$0xff] %v593
    %626 = vst [vmem:[#allocation2 + $0xd0] sm:$0xff] %v594
    %627 = vst [vmem:[#allocation2 + $0xd8] sm:$0xff] %v595
    %628 = vst [vmem:[#allocation2 + $0xe0] sm:$0xff] %v596
    %629 = vst [vmem:[#allocation2 + $0xe8] sm:$0xff] %v597
    %630 = vst [vmem:[#allocation2 + $0xf0] sm:$0xff] %v598
    %631 = vst [vmem:[#allocation2 + $0xf8] sm:$0xff] %v599
    %v632 = vld [vmem:[#allocation6] sm:$0xff]
    %v633 = vld [vmem:[#allocation6 + $0x8] sm:$0xff]
    %v634 = vld [vmem:[#allocation8] sm:$0xff]
    %v635 = vld [vmem:[#allocation8 + $0x8] sm:$0xff]
    %v636 = vld [vmem:[#allocation2] sm:$0xff]
    %v637 = vld [vmem:[#allocation2 + $0x8] sm:$0xff]
    %v638 = vld [vmem:[#allocation2 + $0x10] sm:$0xff]
    %v639 = vld [vmem:[#allocation2 + $0x18] sm:$0xff]
    %v640 = vunpack.c.l.bf16 %v636
    %v641 = vunpack.c.h.bf16 %v636
    %v642 = vunpack.c.l.bf16 %v637
    %v643 = vunpack.c.h.bf16 %v637
    %v644 = vunpack.c.l.bf16 %v638
    %v645 = vunpack.c.h.bf16 %v638
    %v646 = vunpack.c.l.bf16 %v639
    %v647 = vunpack.c.h.bf16 %v639
    %v648 = vpack.c.bf16 %v633, %v632
    %v649 = vld [vmem:[#allocation11] sm:$0xff]
    %v650 = vld [vmem:[#allocation11 + $0x8] sm:$0xff]
    %v651 = vld [vmem:[#allocation11 + $0x10] sm:$0xff]
    %v652 = vld [vmem:[#allocation11 + $0x18] sm:$0xff]
    %v653 = vld [vmem:[#allocation11 + $0x20] sm:$0xff]
    %v654 = vld [vmem:[#allocation11 + $0x28] sm:$0xff]
    %v655 = vld [vmem:[#allocation11 + $0x30] sm:$0xff]
    %v656 = vld [vmem:[#allocation11 + $0x38] sm:$0xff]
    %v657 = vld [vmem:[#allocation11 + $0x40] sm:$0xff]
    %v658 = vld [vmem:[#allocation11 + $0x48] sm:$0xff]
    %v659 = vld [vmem:[#allocation11 + $0x50] sm:$0xff]
    %v660 = vld [vmem:[#allocation11 + $0x58] sm:$0xff]
    %v661 = vld [vmem:[#allocation11 + $0x60] sm:$0xff]
    %v662 = vld [vmem:[#allocation11 + $0x68] sm:$0xff]
    %v663 = vld [vmem:[#allocation11 + $0x70] sm:$0xff]
    %v664 = vld [vmem:[#allocation11 + $0x78] sm:$0xff]
    %v665 = vld [vmem:[#allocation11 + $0x80] sm:$0xff]
    %v666 = vld [vmem:[#allocation11 + $0x88] sm:$0xff]
    %v667 = vld [vmem:[#allocation11 + $0x90] sm:$0xff]
    %v668 = vld [vmem:[#allocation11 + $0x98] sm:$0xff]
    %v669 = vld [vmem:[#allocation11 + $0xa0] sm:$0xff]
    %v670 = vld [vmem:[#allocation11 + $0xa8] sm:$0xff]
    %v671 = vld [vmem:[#allocation11 + $0xb0] sm:$0xff]
    %v672 = vld [vmem:[#allocation11 + $0xb8] sm:$0xff]
    %v673 = vld [vmem:[#allocation11 + $0xc0] sm:$0xff]
    %v674 = vld [vmem:[#allocation11 + $0xc8] sm:$0xff]
    %v675 = vld [vmem:[#allocation11 + $0xd0] sm:$0xff]
    %v676 = vld [vmem:[#allocation11 + $0xd8] sm:$0xff]
    %v677 = vld [vmem:[#allocation11 + $0xe0] sm:$0xff]
    %v678 = vld [vmem:[#allocation11 + $0xe8] sm:$0xff]
    %v679 = vld [vmem:[#allocation11 + $0xf0] sm:$0xff]
    %v680 = vld [vmem:[#allocation11 + $0xf8] sm:$0xff]
    %v713 = vunpack.c.l.b16 %v649
    %v714 = vunpack.c.h.b16 %v649
    %v715 = vunpack.c.l.b16 %v650
    %v716 = vunpack.c.h.b16 %v650
    %v717 = vunpack.c.l.b16 %v651
    %v718 = vunpack.c.h.b16 %v651
    %v719 = vunpack.c.l.b16 %v652
    %v720 = vunpack.c.h.b16 %v652
    %v721 = vunpack.c.l.b16 %v653
    %v722 = vunpack.c.h.b16 %v653
    %v723 = vunpack.c.l.b16 %v654
    %v724 = vunpack.c.h.b16 %v654
    %v725 = vunpack.c.l.b16 %v655
    %v726 = vunpack.c.h.b16 %v655
    %v727 = vunpack.c.l.b16 %v656
    %v728 = vunpack.c.h.b16 %v656
    %v729 = vunpack.c.l.b16 %v657
    %v730 = vunpack.c.h.b16 %v657
    %v731 = vunpack.c.l.b16 %v658
    %v732 = vunpack.c.h.b16 %v658
    %v733 = vunpack.c.l.b16 %v659
    %v734 = vunpack.c.h.b16 %v659
    %v735 = vunpack.c.l.b16 %v660
    %v736 = vunpack.c.h.b16 %v660
    %v737 = vunpack.c.l.b16 %v661
    %v738 = vunpack.c.h.b16 %v661
    %v739 = vunpack.c.l.b16 %v662
    %v740 = vunpack.c.h.b16 %v662
    %v741 = vunpack.c.l.b16 %v663
    %v742 = vunpack.c.h.b16 %v663
    %v743 = vunpack.c.l.b16 %v664
    %v744 = vunpack.c.h.b16 %v664
    %v745 = vunpack.c.l.b16 %v665
    %v746 = vunpack.c.h.b16 %v665
    %v747 = vunpack.c.l.b16 %v666
    %v748 = vunpack.c.h.b16 %v666
    %v749 = vunpack.c.l.b16 %v667
    %v750 = vunpack.c.h.b16 %v667
    %v751 = vunpack.c.l.b16 %v668
    %v752 = vunpack.c.h.b16 %v668
    %v753 = vunpack.c.l.b16 %v669
    %v754 = vunpack.c.h.b16 %v669
    %v755 = vunpack.c.l.b16 %v670
    %v756 = vunpack.c.h.b16 %v670
    %v757 = vunpack.c.l.b16 %v671
    %v758 = vunpack.c.h.b16 %v671
    %v759 = vunpack.c.l.b16 %v672
    %v760 = vunpack.c.h.b16 %v672
    %v761 = vunpack.c.l.b16 %v673
    %v762 = vunpack.c.h.b16 %v673
    %v763 = vunpack.c.l.b16 %v674
    %v764 = vunpack.c.h.b16 %v674
    %v765 = vunpack.c.l.b16 %v675
    %v766 = vunpack.c.h.b16 %v675
    %v767 = vunpack.c.l.b16 %v676
    %v768 = vunpack.c.h.b16 %v676
    %v769 = vunpack.c.l.b16 %v677
    %v770 = vunpack.c.h.b16 %v677
    %v771 = vunpack.c.l.b16 %v678
    %v772 = vunpack.c.h.b16 %v678
    %v773 = vunpack.c.l.b16 %v679
    %v774 = vunpack.c.h.b16 %v679
    %v775 = vunpack.c.l.b16 %v680
    %v776 = vunpack.c.h.b16 %v680
    %v777 = vpack.c.b16 %v717, %v713
    %v778 = vpack.c.b16 %v718, %v714
    %v779 = vpack.c.b16 %v719, %v715
    %v780 = vpack.c.b16 %v720, %v716
    %v781 = vpack.c.b16 %v725, %v721
    %v782 = vpack.c.b16 %v726, %v722
    %v783 = vpack.c.b16 %v727, %v723
    %v784 = vpack.c.b16 %v728, %v724
    %v785 = vpack.c.b16 %v733, %v729
    %v786 = vpack.c.b16 %v734, %v730
    %v787 = vpack.c.b16 %v735, %v731
    %v788 = vpack.c.b16 %v736, %v732
    %v789 = vpack.c.b16 %v741, %v737
    %v790 = vpack.c.b16 %v742, %v738
    %v791 = vpack.c.b16 %v743, %v739
    %v792 = vpack.c.b16 %v744, %v740
    %v793 = vpack.c.b16 %v749, %v745
    %v794 = vpack.c.b16 %v750, %v746
    %v795 = vpack.c.b16 %v751, %v747
    %v796 = vpack.c.b16 %v752, %v748
    %v797 = vpack.c.b16 %v757, %v753
    %v798 = vpack.c.b16 %v758, %v754
    %v799 = vpack.c.b16 %v759, %v755
    %v800 = vpack.c.b16 %v760, %v756
    %v801 = vpack.c.b16 %v765, %v761
    %v802 = vpack.c.b16 %v766, %v762
    %v803 = vpack.c.b16 %v767, %v763
    %v804 = vpack.c.b16 %v768, %v764
    %v805 = vpack.c.b16 %v773, %v769
    %v806 = vpack.c.b16 %v774, %v770
    %v807 = vpack.c.b16 %v775, %v771
    %v808 = vpack.c.b16 %v776, %v772
    %841 = vmatpush.bf16.msra.mxu0 %v805
    %842 = vmatpush.bf16.msra.mxu0 %v801
    %843 = vmatpush.bf16.msra.mxu0 %v797
    %844 = vmatpush.bf16.msra.mxu0 %v793
    %845 = vmatpush.bf16.msra.mxu0 %v789
    %846 = vmatpush.bf16.msra.mxu0 %v785
    %847 = vmatpush.bf16.msra.mxu0 %v781
    %848 = vmatpush.bf16.msra.mxu0 %v777
    %849 = vmatmul.bf16.gmra.mxu0 %v648
    %v850 = vpop.f32.mrf.mxu0
    %v851 = vadd.f32 0.0, %v850
    %v852 = vpop.f32.mrf.mxu0
    %v853 = vadd.f32 0.0, %v852
    %854 = vdwg.mxu0
    %855 = vmatpush.bf16.msra.mxu0 %v806
    %856 = vmatpush.bf16.msra.mxu0 %v802
    %857 = vmatpush.bf16.msra.mxu0 %v798
    %858 = vmatpush.bf16.msra.mxu0 %v794
    %859 = vmatpush.bf16.msra.mxu0 %v790
    %860 = vmatpush.bf16.msra.mxu0 %v786
    %861 = vmatpush.bf16.msra.mxu0 %v782
    %862 = vmatpush.bf16.msra.mxu0 %v778
    %863 = vmatmul.bf16.gmra.mxu0 %v648
    %v864 = vpop.f32.mrf.mxu0
    %v865 = vadd.f32 0.0, %v864
    %v866 = vpop.f32.mrf.mxu0
    %v867 = vadd.f32 0.0, %v866
    %868 = vdwg.mxu0
    %869 = vmatpush.bf16.msra.mxu0 %v807
    %870 = vmatpush.bf16.msra.mxu0 %v803
    %871 = vmatpush.bf16.msra.mxu0 %v799
    %872 = vmatpush.bf16.msra.mxu0 %v795
    %873 = vmatpush.bf16.msra.mxu0 %v791
    %874 = vmatpush.bf16.msra.mxu0 %v787
    %875 = vmatpush.bf16.msra.mxu0 %v783
    %876 = vmatpush.bf16.msra.mxu0 %v779
    %877 = vmatmul.bf16.gmra.mxu0 %v648
    %v878 = vpop.f32.mrf.mxu0
    %v879 = vadd.f32 0.0, %v878
    %v880 = vpop.f32.mrf.mxu0
    %v881 = vadd.f32 0.0, %v880
    %882 = vdwg.mxu0
    %883 = vmatpush.bf16.msra.mxu0 %v808
    %884 = vmatpush.bf16.msra.mxu0 %v804
    %885 = vmatpush.bf16.msra.mxu0 %v800
    %886 = vmatpush.bf16.msra.mxu0 %v796
    %887 = vmatpush.bf16.msra.mxu0 %v792
    %888 = vmatpush.bf16.msra.mxu0 %v788
    %889 = vmatpush.bf16.msra.mxu0 %v784
    %890 = vmatpush.bf16.msra.mxu0 %v780
    %891 = vmatmul.bf16.gmra.mxu0 %v648
    %v892 = vpop.f32.mrf.mxu0
    %v893 = vadd.f32 0.0, %v892
    %v894 = vpop.f32.mrf.mxu0
    %v895 = vadd.f32 0.0, %v894
    %896 = vdwg.mxu0
    %v897 = vadd.f32 %v640, %v851
    %v898 = vadd.f32 %v641, %v865
    %v899 = vadd.f32 %v642, %v879
    %v900 = vadd.f32 %v643, %v893
    %v901 = vadd.f32 %v644, %v853
    %v902 = vadd.f32 %v645, %v867
    %v903 = vadd.f32 %v646, %v881
    %v904 = vadd.f32 %v647, %v895
    %v905 = vmul.f32 %v897, 0.5
    %v906 = vmul.f32 %v901, 0.5
    %v907 = vtanh.pop %v905
    %v908 = vtanh.pop %v906
    %v909 = vadd.f32 %v907, 1.0
    %v910 = vadd.f32 %v908, 1.0
    %v911 = vmul.f32 %v909, 0.5
    %v912 = vmul.f32 %v910, 0.5
    %v913 = vmul.f32 %v898, 0.5
    %v914 = vmul.f32 %v902, 0.5
    %v915 = vtanh.pop %v913
    %v916 = vtanh.pop %v914
    %v917 = vadd.f32 %v915, 1.0
    %v918 = vadd.f32 %v916, 1.0
    %v919 = vmul.f32 %v917, 0.5
    %v920 = vmul.f32 %v918, 0.5
    %v921 = vtanh.pop %v899
    %v922 = vtanh.pop %v903
    %v923 = vmul.f32 %v900, 0.5
    %v924 = vmul.f32 %v904, 0.5
    %v925 = vtanh.pop %v923
    %v926 = vtanh.pop %v924
    %v927 = vadd.f32 %v925, 1.0
    %v928 = vadd.f32 %v926, 1.0
    %v929 = vmul.f32 %v927, 0.5
    %v930 = vmul.f32 %v928, 0.5
    %v931 = vmul.f32 %v919, %v634
    %v932 = vmul.f32 %v920, %v635
    %v933 = vmul.f32 %v911, %v921
    %v934 = vmul.f32 %v912, %v922
    %v935 = vadd.f32 %v931, %v933
    %v936 = vadd.f32 %v932, %v934
    %v937 = vtanh.pop %v935
    %v938 = vtanh.pop %v936
    %v939 = vmul.f32 %v929, %v937
    %v940 = vmul.f32 %v930, %v938
    %v941 = vpack.c.bf16 %v939, %v939
    %v942 = vpack.c.bf16 %v940, %v940
    %943 = vst [vmem:[#allocation12] sm:$0xf] %v941
    %944 = vst [vmem:[#allocation12 + $0x4] sm:$0xf] %v942
    %s945 = scalar_lea.vmem [#allocation2], 32
    %v946 = vld [vmem:[%s945] sm:$0xff]
    %v947 = vld [vmem:[%s945 + $0x8] sm:$0xff]
    %v948 = vld [vmem:[%s945 + $0x10] sm:$0xff]
    %v949 = vld [vmem:[%s945 + $0x18] sm:$0xff]
    %v950 = vunpack.c.l.bf16 %v946
    %v951 = vunpack.c.h.bf16 %v946
    %v952 = vunpack.c.l.bf16 %v947
    %v953 = vunpack.c.h.bf16 %v947
    %v954 = vunpack.c.l.bf16 %v948
    %v955 = vunpack.c.h.bf16 %v948
    %v956 = vunpack.c.l.bf16 %v949
    %v957 = vunpack.c.h.bf16 %v949
    %v958 = vld [vmem:[#allocation11] sm:$0xff]
    %v959 = vld [vmem:[#allocation11 + $0x8] sm:$0xff]
    %v960 = vld [vmem:[#allocation11 + $0x10] sm:$0xff]
    %v961 = vld [vmem:[#allocation11 + $0x18] sm:$0xff]
    %v962 = vld [vmem:[#allocation11 + $0x20] sm:$0xff]
    %v963 = vld [vmem:[#allocation11 + $0x28] sm:$0xff]
    %v964 = vld [vmem:[#allocation11 + $0x30] sm:$0xff]
    %v965 = vld [vmem:[#allocation11 + $0x38] sm:$0xff]
    %v966 = vld [vmem:[#allocation11 + $0x40] sm:$0xff]
    %v967 = vld [vmem:[#allocation11 + $0x48] sm:$0xff]
    %v968 = vld [vmem:[#allocation11 + $0x50] sm:$0xff]
    %v969 = vld [vmem:[#allocation11 + $0x58] sm:$0xff]
    %v970 = vld [vmem:[#allocation11 + $0x60] sm:$0xff]
    %v971 = vld [vmem:[#allocation11 + $0x68] sm:$0xff]
    %v972 = vld [vmem:[#allocation11 + $0x70] sm:$0xff]
    %v973 = vld [vmem:[#allocation11 + $0x78] sm:$0xff]
    %v974 = vld [vmem:[#allocation11 + $0x80] sm:$0xff]
    %v975 = vld [vmem:[#allocation11 + $0x88] sm:$0xff]
    %v976 = vld [vmem:[#allocation11 + $0x90] sm:$0xff]
    %v977 = vld [vmem:[#allocation11 + $0x98] sm:$0xff]
    %v978 = vld [vmem:[#allocation11 + $0xa0] sm:$0xff]
    %v979 = vld [vmem:[#allocation11 + $0xa8] sm:$0xff]
    %v980 = vld [vmem:[#allocation11 + $0xb0] sm:$0xff]
    %v981 = vld [vmem:[#allocation11 + $0xb8] sm:$0xff]
    %v982 = vld [vmem:[#allocation11 + $0xc0] sm:$0xff]
    %v983 = vld [vmem:[#allocation11 + $0xc8] sm:$0xff]
    %v984 = vld [vmem:[#allocation11 + $0xd0] sm:$0xff]
    %v985 = vld [vmem:[#allocation11 + $0xd8] sm:$0xff]
    %v986 = vld [vmem:[#allocation11 + $0xe0] sm:$0xff]
    %v987 = vld [vmem:[#allocation11 + $0xe8] sm:$0xff]
    %v988 = vld [vmem:[#allocation11 + $0xf0] sm:$0xff]
    %v989 = vld [vmem:[#allocation11 + $0xf8] sm:$0xff]
    %v992 = vunpack.c.l.b16 %v941
    %v993 = vunpack.c.l.b16 %v942
    %v994 = vpack.c.b16 %v993, %v992
    %v1028 = vunpack.c.l.b16 %v958
    %v1029 = vunpack.c.h.b16 %v958
    %v1030 = vunpack.c.l.b16 %v959
    %v1031 = vunpack.c.h.b16 %v959
    %v1032 = vunpack.c.l.b16 %v960
    %v1033 = vunpack.c.h.b16 %v960
    %v1034 = vunpack.c.l.b16 %v961
    %v1035 = vunpack.c.h.b16 %v961
    %v1036 = vunpack.c.l.b16 %v962
    %v1037 = vunpack.c.h.b16 %v962
    %v1038 = vunpack.c.l.b16 %v963
    %v1039 = vunpack.c.h.b16 %v963
    %v1040 = vunpack.c.l.b16 %v964
    %v1041 = vunpack.c.h.b16 %v964
    %v1042 = vunpack.c.l.b16 %v965
    %v1043 = vunpack.c.h.b16 %v965
    %v1044 = vunpack.c.l.b16 %v966
    %v1045 = vunpack.c.h.b16 %v966
    %v1046 = vunpack.c.l.b16 %v967
    %v1047 = vunpack.c.h.b16 %v967
    %v1048 = vunpack.c.l.b16 %v968
    %v1049 = vunpack.c.h.b16 %v968
    %v1050 = vunpack.c.l.b16 %v969
    %v1051 = vunpack.c.h.b16 %v969
    %v1052 = vunpack.c.l.b16 %v970
    %v1053 = vunpack.c.h.b16 %v970
    %v1054 = vunpack.c.l.b16 %v971
    %v1055 = vunpack.c.h.b16 %v971
    %v1056 = vunpack.c.l.b16 %v972
    %v1057 = vunpack.c.h.b16 %v972
    %v1058 = vunpack.c.l.b16 %v973
    %v1059 = vunpack.c.h.b16 %v973
    %v1060 = vunpack.c.l.b16 %v974
    %v1061 = vunpack.c.h.b16 %v974
    %v1062 = vunpack.c.l.b16 %v975
    %v1063 = vunpack.c.h.b16 %v975
    %v1064 = vunpack.c.l.b16 %v976
    %v1065 = vunpack.c.h.b16 %v976
    %v1066 = vunpack.c.l.b16 %v977
    %v1067 = vunpack.c.h.b16 %v977
    %v1068 = vunpack.c.l.b16 %v978
    %v1069 = vunpack.c.h.b16 %v978
    %v1070 = vunpack.c.l.b16 %v979
    %v1071 = vunpack.c.h.b16 %v979
    %v1072 = vunpack.c.l.b16 %v980
    %v1073 = vunpack.c.h.b16 %v980
    %v1074 = vunpack.c.l.b16 %v981
    %v1075 = vunpack.c.h.b16 %v981
    %v1076 = vunpack.c.l.b16 %v982
    %v1077 = vunpack.c.h.b16 %v982
    %v1078 = vunpack.c.l.b16 %v983
    %v1079 = vunpack.c.h.b16 %v983
    %v1080 = vunpack.c.l.b16 %v984
    %v1081 = vunpack.c.h.b16 %v984
    %v1082 = vunpack.c.l.b16 %v985
    %v1083 = vunpack.c.h.b16 %v985
    %v1084 = vunpack.c.l.b16 %v986
    %v1085 = vunpack.c.h.b16 %v986
    %v1086 = vunpack.c.l.b16 %v987
    %v1087 = vunpack.c.h.b16 %v987
    %v1088 = vunpack.c.l.b16 %v988
    %v1089 = vunpack.c.h.b16 %v988
    %v1090 = vunpack.c.l.b16 %v989
    %v1091 = vunpack.c.h.b16 %v989
    %v1092 = vpack.c.b16 %v1032, %v1028
    %v1093 = vpack.c.b16 %v1033, %v1029
    %v1094 = vpack.c.b16 %v1034, %v1030
    %v1095 = vpack.c.b16 %v1035, %v1031
    %v1096 = vpack.c.b16 %v1040, %v1036
    %v1097 = vpack.c.b16 %v1041, %v1037
    %v1098 = vpack.c.b16 %v1042, %v1038
    %v1099 = vpack.c.b16 %v1043, %v1039
    %v1100 = vpack.c.b16 %v1048, %v1044
    %v1101 = vpack.c.b16 %v1049, %v1045
    %v1102 = vpack.c.b16 %v1050, %v1046
    %v1103 = vpack.c.b16 %v1051, %v1047
    %v1104 = vpack.c.b16 %v1056, %v1052
    %v1105 = vpack.c.b16 %v1057, %v1053
    %v1106 = vpack.c.b16 %v1058, %v1054
    %v1107 = vpack.c.b16 %v1059, %v1055
    %v1108 = vpack.c.b16 %v1064, %v1060
    %v1109 = vpack.c.b16 %v1065, %v1061
    %v1110 = vpack.c.b16 %v1066, %v1062
    %v1111 = vpack.c.b16 %v1067, %v1063
    %v1112 = vpack.c.b16 %v1072, %v1068
    %v1113 = vpack.c.b16 %v1073, %v1069
    %v1114 = vpack.c.b16 %v1074, %v1070
    %v1115 = vpack.c.b16 %v1075, %v1071
    %v1116 = vpack.c.b16 %v1080, %v1076
    %v1117 = vpack.c.b16 %v1081, %v1077
    %v1118 = vpack.c.b16 %v1082, %v1078
    %v1119 = vpack.c.b16 %v1083, %v1079
    %v1120 = vpack.c.b16 %v1088, %v1084
    %v1121 = vpack.c.b16 %v1089, %v1085
    %v1122 = vpack.c.b16 %v1090, %v1086
    %v1123 = vpack.c.b16 %v1091, %v1087
    %1156 = vmatpush.bf16.msra.mxu0 %v1120
    %1157 = vmatpush.bf16.msra.mxu0 %v1116
    %1158 = vmatpush.bf16.msra.mxu0 %v1112
    %1159 = vmatpush.bf16.msra.mxu0 %v1108
    %1160 = vmatpush.bf16.msra.mxu0 %v1104
    %1161 = vmatpush.bf16.msra.mxu0 %v1100
    %1162 = vmatpush.bf16.msra.mxu0 %v1096
    %1163 = vmatpush.bf16.msra.mxu0 %v1092
    %1164 = vmatmul.bf16.gmra.mxu0 %v994
    %v1165 = vpop.f32.mrf.mxu0
    %v1166 = vadd.f32 0.0, %v1165
    %v1167 = vpop.f32.mrf.mxu0
    %v1168 = vadd.f32 0.0, %v1167
    %1169 = vdwg.mxu0
    %1170 = vmatpush.bf16.msra.mxu0 %v1121
    %1171 = vmatpush.bf16.msra.mxu0 %v1117
    %1172 = vmatpush.bf16.msra.mxu0 %v1113
    %1173 = vmatpush.bf16.msra.mxu0 %v1109
    %1174 = vmatpush.bf16.msra.mxu0 %v1105
    %1175 = vmatpush.bf16.msra.mxu0 %v1101
    %1176 = vmatpush.bf16.msra.mxu0 %v1097
    %1177 = vmatpush.bf16.msra.mxu0 %v1093
    %1178 = vmatmul.bf16.gmra.mxu0 %v994
    %v1179 = vpop.f32.mrf.mxu0
    %v1180 = vadd.f32 0.0, %v1179
    %v1181 = vpop.f32.mrf.mxu0
    %v1182 = vadd.f32 0.0, %v1181
    %1183 = vdwg.mxu0
    %1184 = vmatpush.bf16.msra.mxu0 %v1122
    %1185 = vmatpush.bf16.msra.mxu0 %v1118
    %1186 = vmatpush.bf16.msra.mxu0 %v1114
    %1187 = vmatpush.bf16.msra.mxu0 %v1110
    %1188 = vmatpush.bf16.msra.mxu0 %v1106
    %1189 = vmatpush.bf16.msra.mxu0 %v1102
    %1190 = vmatpush.bf16.msra.mxu0 %v1098
    %1191 = vmatpush.bf16.msra.mxu0 %v1094
    %1192 = vmatmul.bf16.gmra.mxu0 %v994
    %v1193 = vpop.f32.mrf.mxu0
    %v1194 = vadd.f32 0.0, %v1193
    %v1195 = vpop.f32.mrf.mxu0
    %v1196 = vadd.f32 0.0, %v1195
    %1197 = vdwg.mxu0
    %1198 = vmatpush.bf16.msra.mxu0 %v1123
    %1199 = vmatpush.bf16.msra.mxu0 %v1119
    %1200 = vmatpush.bf16.msra.mxu0 %v1115
    %1201 = vmatpush.bf16.msra.mxu0 %v1111
    %1202 = vmatpush.bf16.msra.mxu0 %v1107
    %1203 = vmatpush.bf16.msra.mxu0 %v1103
    %1204 = vmatpush.bf16.msra.mxu0 %v1099
    %1205 = vmatpush.bf16.msra.mxu0 %v1095
    %1206 = vmatmul.bf16.gmra.mxu0 %v994
    %v1207 = vpop.f32.mrf.mxu0
    %v1208 = vadd.f32 0.0, %v1207
    %v1209 = vpop.f32.mrf.mxu0
    %v1210 = vadd.f32 0.0, %v1209
    %1211 = vdwg.mxu0
    %v1212 = vadd.f32 %v950, %v1166
    %v1213 = vadd.f32 %v951, %v1180
    %v1214 = vadd.f32 %v952, %v1194
    %v1215 = vadd.f32 %v953, %v1208
    %v1216 = vadd.f32 %v954, %v1168
    %v1217 = vadd.f32 %v955, %v1182
    %v1218 = vadd.f32 %v956, %v1196
    %v1219 = vadd.f32 %v957, %v1210
    %v1220 = vmul.f32 %v1212, 0.5
    %v1221 = vmul.f32 %v1216, 0.5
    %v1222 = vtanh.pop %v1220
    %v1223 = vtanh.pop %v1221
    %v1224 = vadd.f32 %v1222, 1.0
    %v1225 = vadd.f32 %v1223, 1.0
    %v1226 = vmul.f32 %v1224, 0.5
    %v1227 = vmul.f32 %v1225, 0.5
    %v1228 = vmul.f32 %v1213, 0.5
    %v1229 = vmul.f32 %v1217, 0.5
    %v1230 = vtanh.pop %v1228
    %v1231 = vtanh.pop %v1229
    %v1232 = vadd.f32 %v1230, 1.0
    %v1233 = vadd.f32 %v1231, 1.0
    %v1234 = vmul.f32 %v1232, 0.5
    %v1235 = vmul.f32 %v1233, 0.5
    %v1236 = vtanh.pop %v1214
    %v1237 = vtanh.pop %v1218
    %v1238 = vmul.f32 %v1215, 0.5
    %v1239 = vmul.f32 %v1219, 0.5
    %v1240 = vtanh.pop %v1238
    %v1241 = vtanh.pop %v1239
    %v1242 = vadd.f32 %v1240, 1.0
    %v1243 = vadd.f32 %v1241, 1.0
    %v1244 = vmul.f32 %v1242, 0.5
    %v1245 = vmul.f32 %v1243, 0.5
    %v1246 = vmul.f32 %v1234, %v935
    %v1247 = vmul.f32 %v1235, %v936
    %v1248 = vmul.f32 %v1226, %v1236
    %v1249 = vmul.f32 %v1227, %v1237
    %v1250 = vadd.f32 %v1246, %v1248
    %v1251 = vadd.f32 %v1247, %v1249
    %v1252 = vtanh.pop %v1250
    %v1253 = vtanh.pop %v1251
    %v1254 = vmul.f32 %v1244, %v1252
    %v1255 = vmul.f32 %v1245, %v1253
    %v1256 = vpack.c.bf16 %v1254, %v1254
    %v1257 = vpack.c.bf16 %v1255, %v1255
    %s1258 = scalar_lea.vmem [#allocation12], 8
    %1259 = vst [vmem:[%s1258] sm:$0xf] %v1256
    %1260 = vst [vmem:[%s1258 + $0x4] sm:$0xf] %v1257
    %s1261 = scalar_lea.vmem [#allocation2], 64
    %v1262 = vld [vmem:[%s1261] sm:$0xff]
    %v1263 = vld [vmem:[%s1261 + $0x8] sm:$0xff]
    %v1264 = vld [vmem:[%s1261 + $0x10] sm:$0xff]
    %v1265 = vld [vmem:[%s1261 + $0x18] sm:$0xff]
    %v1266 = vunpack.c.l.bf16 %v1262
    %v1267 = vunpack.c.h.bf16 %v1262
    %v1268 = vunpack.c.l.bf16 %v1263
    %v1269 = vunpack.c.h.bf16 %v1263
    %v1270 = vunpack.c.l.bf16 %v1264
    %v1271 = vunpack.c.h.bf16 %v1264
    %v1272 = vunpack.c.l.bf16 %v1265
    %v1273 = vunpack.c.h.bf16 %v1265
    %v1274 = vld [vmem:[#allocation11] sm:$0xff]
    %v1275 = vld [vmem:[#allocation11 + $0x8] sm:$0xff]
    %v1276 = vld [vmem:[#allocation11 + $0x10] sm:$0xff]
    %v1277 = vld [vmem:[#allocation11 + $0x18] sm:$0xff]
    %v1278 = vld [vmem:[#allocation11 + $0x20] sm:$0xff]
    %v1279 = vld [vmem:[#allocation11 + $0x28] sm:$0xff]
    %v1280 = vld [vmem:[#allocation11 + $0x30] sm:$0xff]
    %v1281 = vld [vmem:[#allocation11 + $0x38] sm:$0xff]
    %v1282 = vld [vmem:[#allocation11 + $0x40] sm:$0xff]
    %v1283 = vld [vmem:[#allocation11 + $0x48] sm:$0xff]
    %v1284 = vld [vmem:[#allocation11 + $0x50] sm:$0xff]
    %v1285 = vld [vmem:[#allocation11 + $0x58] sm:$0xff]
    %v1286 = vld [vmem:[#allocation11 + $0x60] sm:$0xff]
    %v1287 = vld [vmem:[#allocation11 + $0x68] sm:$0xff]
    %v1288 = vld [vmem:[#allocation11 + $0x70] sm:$0xff]
    %v1289 = vld [vmem:[#allocation11 + $0x78] sm:$0xff]
    %v1290 = vld [vmem:[#allocation11 + $0x80] sm:$0xff]
    %v1291 = vld [vmem:[#allocation11 + $0x88] sm:$0xff]
    %v1292 = vld [vmem:[#allocation11 + $0x90] sm:$0xff]
    %v1293 = vld [vmem:[#allocation11 + $0x98] sm:$0xff]
    %v1294 = vld [vmem:[#allocation11 + $0xa0] sm:$0xff]
    %v1295 = vld [vmem:[#allocation11 + $0xa8] sm:$0xff]
    %v1296 = vld [vmem:[#allocation11 + $0xb0] sm:$0xff]
    %v1297 = vld [vmem:[#allocation11 + $0xb8] sm:$0xff]
    %v1298 = vld [vmem:[#allocation11 + $0xc0] sm:$0xff]
    %v1299 = vld [vmem:[#allocation11 + $0xc8] sm:$0xff]
    %v1300 = vld [vmem:[#allocation11 + $0xd0] sm:$0xff]
    %v1301 = vld [vmem:[#allocation11 + $0xd8] sm:$0xff]
    %v1302 = vld [vmem:[#allocation11 + $0xe0] sm:$0xff]
    %v1303 = vld [vmem:[#allocation11 + $0xe8] sm:$0xff]
    %v1304 = vld [vmem:[#allocation11 + $0xf0] sm:$0xff]
    %v1305 = vld [vmem:[#allocation11 + $0xf8] sm:$0xff]
    %v1308 = vunpack.c.l.b16 %v1256
    %v1309 = vunpack.c.l.b16 %v1257
    %v1310 = vpack.c.b16 %v1309, %v1308
    %v1344 = vunpack.c.l.b16 %v1274
    %v1345 = vunpack.c.h.b16 %v1274
    %v1346 = vunpack.c.l.b16 %v1275
    %v1347 = vunpack.c.h.b16 %v1275
    %v1348 = vunpack.c.l.b16 %v1276
    %v1349 = vunpack.c.h.b16 %v1276
    %v1350 = vunpack.c.l.b16 %v1277
    %v1351 = vunpack.c.h.b16 %v1277
    %v1352 = vunpack.c.l.b16 %v1278
    %v1353 = vunpack.c.h.b16 %v1278
    %v1354 = vunpack.c.l.b16 %v1279
    %v1355 = vunpack.c.h.b16 %v1279
    %v1356 = vunpack.c.l.b16 %v1280
    %v1357 = vunpack.c.h.b16 %v1280
    %v1358 = vunpack.c.l.b16 %v1281
    %v1359 = vunpack.c.h.b16 %v1281
    %v1360 = vunpack.c.l.b16 %v1282
    %v1361 = vunpack.c.h.b16 %v1282
    %v1362 = vunpack.c.l.b16 %v1283
    %v1363 = vunpack.c.h.b16 %v1283
    %v1364 = vunpack.c.l.b16 %v1284
    %v1365 = vunpack.c.h.b16 %v1284
    %v1366 = vunpack.c.l.b16 %v1285
    %v1367 = vunpack.c.h.b16 %v1285
    %v1368 = vunpack.c.l.b16 %v1286
    %v1369 = vunpack.c.h.b16 %v1286
    %v1370 = vunpack.c.l.b16 %v1287
    %v1371 = vunpack.c.h.b16 %v1287
    %v1372 = vunpack.c.l.b16 %v1288
    %v1373 = vunpack.c.h.b16 %v1288
    %v1374 = vunpack.c.l.b16 %v1289
    %v1375 = vunpack.c.h.b16 %v1289
    %v1376 = vunpack.c.l.b16 %v1290
    %v1377 = vunpack.c.h.b16 %v1290
    %v1378 = vunpack.c.l.b16 %v1291
    %v1379 = vunpack.c.h.b16 %v1291
    %v1380 = vunpack.c.l.b16 %v1292
    %v1381 = vunpack.c.h.b16 %v1292
    %v1382 = vunpack.c.l.b16 %v1293
    %v1383 = vunpack.c.h.b16 %v1293
    %v1384 = vunpack.c.l.b16 %v1294
    %v1385 = vunpack.c.h.b16 %v1294
    %v1386 = vunpack.c.l.b16 %v1295
    %v1387 = vunpack.c.h.b16 %v1295
    %v1388 = vunpack.c.l.b16 %v1296
    %v1389 = vunpack.c.h.b16 %v1296
    %v1390 = vunpack.c.l.b16 %v1297
    %v1391 = vunpack.c.h.b16 %v1297
    %v1392 = vunpack.c.l.b16 %v1298
    %v1393 = vunpack.c.h.b16 %v1298
    %v1394 = vunpack.c.l.b16 %v1299
    %v1395 = vunpack.c.h.b16 %v1299
    %v1396 = vunpack.c.l.b16 %v1300
    %v1397 = vunpack.c.h.b16 %v1300
    %v1398 = vunpack.c.l.b16 %v1301
    %v1399 = vunpack.c.h.b16 %v1301
    %v1400 = vunpack.c.l.b16 %v1302
    %v1401 = vunpack.c.h.b16 %v1302
    %v1402 = vunpack.c.l.b16 %v1303
    %v1403 = vunpack.c.h.b16 %v1303
    %v1404 = vunpack.c.l.b16 %v1304
    %v1405 = vunpack.c.h.b16 %v1304
    %v1406 = vunpack.c.l.b16 %v1305
    %v1407 = vunpack.c.h.b16 %v1305
    %v1408 = vpack.c.b16 %v1348, %v1344
    %v1409 = vpack.c.b16 %v1349, %v1345
    %v1410 = vpack.c.b16 %v1350, %v1346
    %v1411 = vpack.c.b16 %v1351, %v1347
    %v1412 = vpack.c.b16 %v1356, %v1352
    %v1413 = vpack.c.b16 %v1357, %v1353
    %v1414 = vpack.c.b16 %v1358, %v1354
    %v1415 = vpack.c.b16 %v1359, %v1355
    %v1416 = vpack.c.b16 %v1364, %v1360
    %v1417 = vpack.c.b16 %v1365, %v1361
    %v1418 = vpack.c.b16 %v1366, %v1362
    %v1419 = vpack.c.b16 %v1367, %v1363
    %v1420 = vpack.c.b16 %v1372, %v1368
    %v1421 = vpack.c.b16 %v1373, %v1369
    %v1422 = vpack.c.b16 %v1374, %v1370
    %v1423 = vpack.c.b16 %v1375, %v1371
    %v1424 = vpack.c.b16 %v1380, %v1376
    %v1425 = vpack.c.b16 %v1381, %v1377
    %v1426 = vpack.c.b16 %v1382, %v1378
    %v1427 = vpack.c.b16 %v1383, %v1379
    %v1428 = vpack.c.b16 %v1388, %v1384
    %v1429 = vpack.c.b16 %v1389, %v1385
    %v1430 = vpack.c.b16 %v1390, %v1386
    %v1431 = vpack.c.b16 %v1391, %v1387
    %v1432 = vpack.c.b16 %v1396, %v1392
    %v1433 = vpack.c.b16 %v1397, %v1393
    %v1434 = vpack.c.b16 %v1398, %v1394
    %v1435 = vpack.c.b16 %v1399, %v1395
    %v1436 = vpack.c.b16 %v1404, %v1400
    %v1437 = vpack.c.b16 %v1405, %v1401
    %v1438 = vpack.c.b16 %v1406, %v1402
    %v1439 = vpack.c.b16 %v1407, %v1403
    %1472 = vmatpush.bf16.msra.mxu0 %v1436
    %1473 = vmatpush.bf16.msra.mxu0 %v1432
    %1474 = vmatpush.bf16.msra.mxu0 %v1428
    %1475 = vmatpush.bf16.msra.mxu0 %v1424
    %1476 = vmatpush.bf16.msra.mxu0 %v1420
    %1477 = vmatpush.bf16.msra.mxu0 %v1416
    %1478 = vmatpush.bf16.msra.mxu0 %v1412
    %1479 = vmatpush.bf16.msra.mxu0 %v1408
    %1480 = vmatmul.bf16.gmra.mxu0 %v1310
    %v1481 = vpop.f32.mrf.mxu0
    %v1482 = vadd.f32 0.0, %v1481
    %v1483 = vpop.f32.mrf.mxu0
    %v1484 = vadd.f32 0.0, %v1483
    %1485 = vdwg.mxu0
    %1486 = vmatpush.bf16.msra.mxu0 %v1437
    %1487 = vmatpush.bf16.msra.mxu0 %v1433
    %1488 = vmatpush.bf16.msra.mxu0 %v1429
    %1489 = vmatpush.bf16.msra.mxu0 %v1425
    %1490 = vmatpush.bf16.msra.mxu0 %v1421
    %1491 = vmatpush.bf16.msra.mxu0 %v1417
    %1492 = vmatpush.bf16.msra.mxu0 %v1413
    %1493 = vmatpush.bf16.msra.mxu0 %v1409
    %1494 = vmatmul.bf16.gmra.mxu0 %v1310
    %v1495 = vpop.f32.mrf.mxu0
    %v1496 = vadd.f32 0.0, %v1495
    %v1497 = vpop.f32.mrf.mxu0
    %v1498 = vadd.f32 0.0, %v1497
    %1499 = vdwg.mxu0
    %1500 = vmatpush.bf16.msra.mxu0 %v1438
    %1501 = vmatpush.bf16.msra.mxu0 %v1434
    %1502 = vmatpush.bf16.msra.mxu0 %v1430
    %1503 = vmatpush.bf16.msra.mxu0 %v1426
    %1504 = vmatpush.bf16.msra.mxu0 %v1422
    %1505 = vmatpush.bf16.msra.mxu0 %v1418
    %1506 = vmatpush.bf16.msra.mxu0 %v1414
    %1507 = vmatpush.bf16.msra.mxu0 %v1410
    %1508 = vmatmul.bf16.gmra.mxu0 %v1310
    %v1509 = vpop.f32.mrf.mxu0
    %v1510 = vadd.f32 0.0, %v1509
    %v1511 = vpop.f32.mrf.mxu0
    %v1512 = vadd.f32 0.0, %v1511
    %1513 = vdwg.mxu0
    %1514 = vmatpush.bf16.msra.mxu0 %v1439
    %1515 = vmatpush.bf16.msra.mxu0 %v1435
    %1516 = vmatpush.bf16.msra.mxu0 %v1431
    %1517 = vmatpush.bf16.msra.mxu0 %v1427
    %1518 = vmatpush.bf16.msra.mxu0 %v1423
    %1519 = vmatpush.bf16.msra.mxu0 %v1419
    %1520 = vmatpush.bf16.msra.mxu0 %v1415
    %1521 = vmatpush.bf16.msra.mxu0 %v1411
    %1522 = vmatmul.bf16.gmra.mxu0 %v1310
    %v1523 = vpop.f32.mrf.mxu0
    %v1524 = vadd.f32 0.0, %v1523
    %v1525 = vpop.f32.mrf.mxu0
    %v1526 = vadd.f32 0.0, %v1525
    %1527 = vdwg.mxu0
    %v1528 = vadd.f32 %v1266, %v1482
    %v1529 = vadd.f32 %v1267, %v1496
    %v1530 = vadd.f32 %v1268, %v1510
    %v1531 = vadd.f32 %v1269, %v1524
    %v1532 = vadd.f32 %v1270, %v1484
    %v1533 = vadd.f32 %v1271, %v1498
    %v1534 = vadd.f32 %v1272, %v1512
    %v1535 = vadd.f32 %v1273, %v1526
    %v1536 = vmul.f32 %v1528, 0.5
    %v1537 = vmul.f32 %v1532, 0.5
    %v1538 = vtanh.pop %v1536
    %v1539 = vtanh.pop %v1537
    %v1540 = vadd.f32 %v1538, 1.0
    %v1541 = vadd.f32 %v1539, 1.0
    %v1542 = vmul.f32 %v1540, 0.5
    %v1543 = vmul.f32 %v1541, 0.5
    %v1544 = vmul.f32 %v1529, 0.5
    %v1545 = vmul.f32 %v1533, 0.5
    %v1546 = vtanh.pop %v1544
    %v1547 = vtanh.pop %v1545
    %v1548 = vadd.f32 %v1546, 1.0
    %v1549 = vadd.f32 %v1547, 1.0
    %v1550 = vmul.f32 %v1548, 0.5
    %v1551 = vmul.f32 %v1549, 0.5
    %v1552 = vtanh.pop %v1530
    %v1553 = vtanh.pop %v1534
    %v1554 = vmul.f32 %v1531, 0.5
    %v1555 = vmul.f32 %v1535, 0.5
    %v1556 = vtanh.pop %v1554
    %v1557 = vtanh.pop %v1555
    %v1558 = vadd.f32 %v1556, 1.0
    %v1559 = vadd.f32 %v1557, 1.0
    %v1560 = vmul.f32 %v1558, 0.5
    %v1561 = vmul.f32 %v1559, 0.5
    %v1562 = vmul.f32 %v1550, %v1250
    %v1563 = vmul.f32 %v1551, %v1251
    %v1564 = vmul.f32 %v1542, %v1552
    %v1565 = vmul.f32 %v1543, %v1553
    %v1566 = vadd.f32 %v1562, %v1564
    %v1567 = vadd.f32 %v1563, %v1565
    %v1568 = vtanh.pop %v1566
    %v1569 = vtanh.pop %v1567
    %v1570 = vmul.f32 %v1560, %v1568
    %v1571 = vmul.f32 %v1561, %v1569
    %v1572 = vpack.c.bf16 %v1570, %v1570
    %v1573 = vpack.c.bf16 %v1571, %v1571
    %s1574 = scalar_lea.vmem [#allocation12], 16
    %1575 = vst [vmem:[%s1574] sm:$0xf] %v1572
    %1576 = vst [vmem:[%s1574 + $0x4] sm:$0xf] %v1573
    %s1577 = scalar_lea.vmem [#allocation2], 96
    %v1578 = vld [vmem:[%s1577] sm:$0xff]
    %v1579 = vld [vmem:[%s1577 + $0x8] sm:$0xff]
    %v1580 = vld [vmem:[%s1577 + $0x10] sm:$0xff]
    %v1581 = vld [vmem:[%s1577 + $0x18] sm:$0xff]
    %v1582 = vunpack.c.l.bf16 %v1578
    %v1583 = vunpack.c.h.bf16 %v1578
    %v1584 = vunpack.c.l.bf16 %v1579
    %v1585 = vunpack.c.h.bf16 %v1579
    %v1586 = vunpack.c.l.bf16 %v1580
    %v1587 = vunpack.c.h.bf16 %v1580
    %v1588 = vunpack.c.l.bf16 %v1581
    %v1589 = vunpack.c.h.bf16 %v1581
    %v1590 = vld [vmem:[#allocation11] sm:$0xff]
    %v1591 = vld [vmem:[#allocation11 + $0x8] sm:$0xff]
    %v1592 = vld [vmem:[#allocation11 + $0x10] sm:$0xff]
    %v1593 = vld [vmem:[#allocation11 + $0x18] sm:$0xff]
    %v1594 = vld [vmem:[#allocation11 + $0x20] sm:$0xff]
    %v1595 = vld [vmem:[#allocation11 + $0x28] sm:$0xff]
    %v1596 = vld [vmem:[#allocation11 + $0x30] sm:$0xff]
    %v1597 = vld [vmem:[#allocation11 + $0x38] sm:$0xff]
    %v1598 = vld [vmem:[#allocation11 + $0x40] sm:$0xff]
    %v1599 = vld [vmem:[#allocation11 + $0x48] sm:$0xff]
    %v1600 = vld [vmem:[#allocation11 + $0x50] sm:$0xff]
    %v1601 = vld [vmem:[#allocation11 + $0x58] sm:$0xff]
    %v1602 = vld [vmem:[#allocation11 + $0x60] sm:$0xff]
    %v1603 = vld [vmem:[#allocation11 + $0x68] sm:$0xff]
    %v1604 = vld [vmem:[#allocation11 + $0x70] sm:$0xff]
    %v1605 = vld [vmem:[#allocation11 + $0x78] sm:$0xff]
    %v1606 = vld [vmem:[#allocation11 + $0x80] sm:$0xff]
    %v1607 = vld [vmem:[#allocation11 + $0x88] sm:$0xff]
    %v1608 = vld [vmem:[#allocation11 + $0x90] sm:$0xff]
    %v1609 = vld [vmem:[#allocation11 + $0x98] sm:$0xff]
    %v1610 = vld [vmem:[#allocation11 + $0xa0] sm:$0xff]
    %v1611 = vld [vmem:[#allocation11 + $0xa8] sm:$0xff]
    %v1612 = vld [vmem:[#allocation11 + $0xb0] sm:$0xff]
    %v1613 = vld [vmem:[#allocation11 + $0xb8] sm:$0xff]
    %v1614 = vld [vmem:[#allocation11 + $0xc0] sm:$0xff]
    %v1615 = vld [vmem:[#allocation11 + $0xc8] sm:$0xff]
    %v1616 = vld [vmem:[#allocation11 + $0xd0] sm:$0xff]
    %v1617 = vld [vmem:[#allocation11 + $0xd8] sm:$0xff]
    %v1618 = vld [vmem:[#allocation11 + $0xe0] sm:$0xff]
    %v1619 = vld [vmem:[#allocation11 + $0xe8] sm:$0xff]
    %v1620 = vld [vmem:[#allocation11 + $0xf0] sm:$0xff]
    %v1621 = vld [vmem:[#allocation11 + $0xf8] sm:$0xff]
    %v1624 = vunpack.c.l.b16 %v1572
    %v1625 = vunpack.c.l.b16 %v1573
    %v1626 = vpack.c.b16 %v1625, %v1624
    %v1660 = vunpack.c.l.b16 %v1590
    %v1661 = vunpack.c.h.b16 %v1590
    %v1662 = vunpack.c.l.b16 %v1591
    %v1663 = vunpack.c.h.b16 %v1591
    %v1664 = vunpack.c.l.b16 %v1592
    %v1665 = vunpack.c.h.b16 %v1592
    %v1666 = vunpack.c.l.b16 %v1593
    %v1667 = vunpack.c.h.b16 %v1593
    %v1668 = vunpack.c.l.b16 %v1594
    %v1669 = vunpack.c.h.b16 %v1594
    %v1670 = vunpack.c.l.b16 %v1595
    %v1671 = vunpack.c.h.b16 %v1595
    %v1672 = vunpack.c.l.b16 %v1596
    %v1673 = vunpack.c.h.b16 %v1596
    %v1674 = vunpack.c.l.b16 %v1597
    %v1675 = vunpack.c.h.b16 %v1597
    %v1676 = vunpack.c.l.b16 %v1598
    %v1677 = vunpack.c.h.b16 %v1598
    %v1678 = vunpack.c.l.b16 %v1599
    %v1679 = vunpack.c.h.b16 %v1599
    %v1680 = vunpack.c.l.b16 %v1600
    %v1681 = vunpack.c.h.b16 %v1600
    %v1682 = vunpack.c.l.b16 %v1601
    %v1683 = vunpack.c.h.b16 %v1601
    %v1684 = vunpack.c.l.b16 %v1602
    %v1685 = vunpack.c.h.b16 %v1602
    %v1686 = vunpack.c.l.b16 %v1603
    %v1687 = vunpack.c.h.b16 %v1603
    %v1688 = vunpack.c.l.b16 %v1604
    %v1689 = vunpack.c.h.b16 %v1604
    %v1690 = vunpack.c.l.b16 %v1605
    %v1691 = vunpack.c.h.b16 %v1605
    %v1692 = vunpack.c.l.b16 %v1606
    %v1693 = vunpack.c.h.b16 %v1606
    %v1694 = vunpack.c.l.b16 %v1607
    %v1695 = vunpack.c.h.b16 %v1607
    %v1696 = vunpack.c.l.b16 %v1608
    %v1697 = vunpack.c.h.b16 %v1608
    %v1698 = vunpack.c.l.b16 %v1609
    %v1699 = vunpack.c.h.b16 %v1609
    %v1700 = vunpack.c.l.b16 %v1610
    %v1701 = vunpack.c.h.b16 %v1610
    %v1702 = vunpack.c.l.b16 %v1611
    %v1703 = vunpack.c.h.b16 %v1611
    %v1704 = vunpack.c.l.b16 %v1612
    %v1705 = vunpack.c.h.b16 %v1612
    %v1706 = vunpack.c.l.b16 %v1613
    %v1707 = vunpack.c.h.b16 %v1613
    %v1708 = vunpack.c.l.b16 %v1614
    %v1709 = vunpack.c.h.b16 %v1614
    %v1710 = vunpack.c.l.b16 %v1615
    %v1711 = vunpack.c.h.b16 %v1615
    %v1712 = vunpack.c.l.b16 %v1616
    %v1713 = vunpack.c.h.b16 %v1616
    %v1714 = vunpack.c.l.b16 %v1617
    %v1715 = vunpack.c.h.b16 %v1617
    %v1716 = vunpack.c.l.b16 %v1618
    %v1717 = vunpack.c.h.b16 %v1618
    %v1718 = vunpack.c.l.b16 %v1619
    %v1719 = vunpack.c.h.b16 %v1619
    %v1720 = vunpack.c.l.b16 %v1620
    %v1721 = vunpack.c.h.b16 %v1620
    %v1722 = vunpack.c.l.b16 %v1621
    %v1723 = vunpack.c.h.b16 %v1621
    %v1724 = vpack.c.b16 %v1664, %v1660
    %v1725 = vpack.c.b16 %v1665, %v1661
    %v1726 = vpack.c.b16 %v1666, %v1662
    %v1727 = vpack.c.b16 %v1667, %v1663
    %v1728 = vpack.c.b16 %v1672, %v1668
    %v1729 = vpack.c.b16 %v1673, %v1669
    %v1730 = vpack.c.b16 %v1674, %v1670
    %v1731 = vpack.c.b16 %v1675, %v1671
    %v1732 = vpack.c.b16 %v1680, %v1676
    %v1733 = vpack.c.b16 %v1681, %v1677
    %v1734 = vpack.c.b16 %v1682, %v1678
    %v1735 = vpack.c.b16 %v1683, %v1679
    %v1736 = vpack.c.b16 %v1688, %v1684
    %v1737 = vpack.c.b16 %v1689, %v1685
    %v1738 = vpack.c.b16 %v1690, %v1686
    %v1739 = vpack.c.b16 %v1691, %v1687
    %v1740 = vpack.c.b16 %v1696, %v1692
    %v1741 = vpack.c.b16 %v1697, %v1693
    %v1742 = vpack.c.b16 %v1698, %v1694
    %v1743 = vpack.c.b16 %v1699, %v1695
    %v1744 = vpack.c.b16 %v1704, %v1700
    %v1745 = vpack.c.b16 %v1705, %v1701
    %v1746 = vpack.c.b16 %v1706, %v1702
    %v1747 = vpack.c.b16 %v1707, %v1703
    %v1748 = vpack.c.b16 %v1712, %v1708
    %v1749 = vpack.c.b16 %v1713, %v1709
    %v1750 = vpack.c.b16 %v1714, %v1710
    %v1751 = vpack.c.b16 %v1715, %v1711
    %v1752 = vpack.c.b16 %v1720, %v1716
    %v1753 = vpack.c.b16 %v1721, %v1717
    %v1754 = vpack.c.b16 %v1722, %v1718
    %v1755 = vpack.c.b16 %v1723, %v1719
    %1788 = vmatpush.bf16.msra.mxu0 %v1752
    %1789 = vmatpush.bf16.msra.mxu0 %v1748
    %1790 = vmatpush.bf16.msra.mxu0 %v1744
    %1791 = vmatpush.bf16.msra.mxu0 %v1740
    %1792 = vmatpush.bf16.msra.mxu0 %v1736
    %1793 = vmatpush.bf16.msra.mxu0 %v1732
    %1794 = vmatpush.bf16.msra.mxu0 %v1728
    %1795 = vmatpush.bf16.msra.mxu0 %v1724
    %1796 = vmatmul.bf16.gmra.mxu0 %v1626
    %v1797 = vpop.f32.mrf.mxu0
    %v1798 = vadd.f32 0.0, %v1797
    %v1799 = vpop.f32.mrf.mxu0
    %v1800 = vadd.f32 0.0, %v1799
    %1801 = vdwg.mxu0
    %1802 = vmatpush.bf16.msra.mxu0 %v1753
    %1803 = vmatpush.bf16.msra.mxu0 %v1749
    %1804 = vmatpush.bf16.msra.mxu0 %v1745
    %1805 = vmatpush.bf16.msra.mxu0 %v1741
    %1806 = vmatpush.bf16.msra.mxu0 %v1737
    %1807 = vmatpush.bf16.msra.mxu0 %v1733
    %1808 = vmatpush.bf16.msra.mxu0 %v1729
    %1809 = vmatpush.bf16.msra.mxu0 %v1725
    %1810 = vmatmul.bf16.gmra.mxu0 %v1626
    %v1811 = vpop.f32.mrf.mxu0
    %v1812 = vadd.f32 0.0, %v1811
    %v1813 = vpop.f32.mrf.mxu0
    %v1814 = vadd.f32 0.0, %v1813
    %1815 = vdwg.mxu0
    %1816 = vmatpush.bf16.msra.mxu0 %v1754
    %1817 = vmatpush.bf16.msra.mxu0 %v1750
    %1818 = vmatpush.bf16.msra.mxu0 %v1746
    %1819 = vmatpush.bf16.msra.mxu0 %v1742
    %1820 = vmatpush.bf16.msra.mxu0 %v1738
    %1821 = vmatpush.bf16.msra.mxu0 %v1734
    %1822 = vmatpush.bf16.msra.mxu0 %v1730
    %1823 = vmatpush.bf16.msra.mxu0 %v1726
    %1824 = vmatmul.bf16.gmra.mxu0 %v1626
    %v1825 = vpop.f32.mrf.mxu0
    %v1826 = vadd.f32 0.0, %v1825
    %v1827 = vpop.f32.mrf.mxu0
    %v1828 = vadd.f32 0.0, %v1827
    %1829 = vdwg.mxu0
    %1830 = vmatpush.bf16.msra.mxu0 %v1755
    %1831 = vmatpush.bf16.msra.mxu0 %v1751
    %1832 = vmatpush.bf16.msra.mxu0 %v1747
    %1833 = vmatpush.bf16.msra.mxu0 %v1743
    %1834 = vmatpush.bf16.msra.mxu0 %v1739
    %1835 = vmatpush.bf16.msra.mxu0 %v1735
    %1836 = vmatpush.bf16.msra.mxu0 %v1731
    %1837 = vmatpush.bf16.msra.mxu0 %v1727
    %1838 = vmatmul.bf16.gmra.mxu0 %v1626
    %v1839 = vpop.f32.mrf.mxu0
    %v1840 = vadd.f32 0.0, %v1839
    %v1841 = vpop.f32.mrf.mxu0
    %v1842 = vadd.f32 0.0, %v1841
    %1843 = vdwg.mxu0
    %v1844 = vadd.f32 %v1582, %v1798
    %v1845 = vadd.f32 %v1583, %v1812
    %v1846 = vadd.f32 %v1584, %v1826
    %v1847 = vadd.f32 %v1585, %v1840
    %v1848 = vadd.f32 %v1586, %v1800
    %v1849 = vadd.f32 %v1587, %v1814
    %v1850 = vadd.f32 %v1588, %v1828
    %v1851 = vadd.f32 %v1589, %v1842
    %v1852 = vmul.f32 %v1844, 0.5
    %v1853 = vmul.f32 %v1848, 0.5
    %v1854 = vtanh.pop %v1852
    %v1855 = vtanh.pop %v1853
    %v1856 = vadd.f32 %v1854, 1.0
    %v1857 = vadd.f32 %v1855, 1.0
    %v1858 = vmul.f32 %v1856, 0.5
    %v1859 = vmul.f32 %v1857, 0.5
    %v1860 = vmul.f32 %v1845, 0.5
    %v1861 = vmul.f32 %v1849, 0.5
    %v1862 = vtanh.pop %v1860
    %v1863 = vtanh.pop %v1861
    %v1864 = vadd.f32 %v1862, 1.0
    %v1865 = vadd.f32 %v1863, 1.0
    %v1866 = vmul.f32 %v1864, 0.5
    %v1867 = vmul.f32 %v1865, 0.5
    %v1868 = vtanh.pop %v1846
    %v1869 = vtanh.pop %v1850
    %v1870 = vmul.f32 %v1847, 0.5
    %v1871 = vmul.f32 %v1851, 0.5
    %v1872 = vtanh.pop %v1870
    %v1873 = vtanh.pop %v1871
    %v1874 = vadd.f32 %v1872, 1.0
    %v1875 = vadd.f32 %v1873, 1.0
    %v1876 = vmul.f32 %v1874, 0.5
    %v1877 = vmul.f32 %v1875, 0.5
    %v1878 = vmul.f32 %v1866, %v1566
    %v1879 = vmul.f32 %v1867, %v1567
    %v1880 = vmul.f32 %v1858, %v1868
    %v1881 = vmul.f32 %v1859, %v1869
    %v1882 = vadd.f32 %v1878, %v1880
    %v1883 = vadd.f32 %v1879, %v1881
    %v1884 = vtanh.pop %v1882
    %v1885 = vtanh.pop %v1883
    %v1886 = vmul.f32 %v1876, %v1884
    %v1887 = vmul.f32 %v1877, %v1885
    %v1888 = vpack.c.bf16 %v1886, %v1886
    %v1889 = vpack.c.bf16 %v1887, %v1887
    %s1890 = scalar_lea.vmem [#allocation12], 24
    %1891 = vst [vmem:[%s1890] sm:$0xf] %v1888
    %1892 = vst [vmem:[%s1890 + $0x4] sm:$0xf] %v1889
    %s1893 = scalar_lea.vmem [#allocation2], 128
    %v1894 = vld [vmem:[%s1893] sm:$0xff]
    %v1895 = vld [vmem:[%s1893 + $0x8] sm:$0xff]
    %v1896 = vld [vmem:[%s1893 + $0x10] sm:$0xff]
    %v1897 = vld [vmem:[%s1893 + $0x18] sm:$0xff]
    %v1898 = vunpack.c.l.bf16 %v1894
    %v1899 = vunpack.c.h.bf16 %v1894
    %v1900 = vunpack.c.l.bf16 %v1895
    %v1901 = vunpack.c.h.bf16 %v1895
    %v1902 = vunpack.c.l.bf16 %v1896
    %v1903 = vunpack.c.h.bf16 %v1896
    %v1904 = vunpack.c.l.bf16 %v1897
    %v1905 = vunpack.c.h.bf16 %v1897
    %v1906 = vld [vmem:[#allocation11] sm:$0xff]
    %v1907 = vld [vmem:[#allocation11 + $0x8] sm:$0xff]
    %v1908 = vld [vmem:[#allocation11 + $0x10] sm:$0xff]
    %v1909 = vld [vmem:[#allocation11 + $0x18] sm:$0xff]
    %v1910 = vld [vmem:[#allocation11 + $0x20] sm:$0xff]
    %v1911 = vld [vmem:[#allocation11 + $0x28] sm:$0xff]
    %v1912 = vld [vmem:[#allocation11 + $0x30] sm:$0xff]
    %v1913 = vld [vmem:[#allocation11 + $0x38] sm:$0xff]
    %v1914 = vld [vmem:[#allocation11 + $0x40] sm:$0xff]
    %v1915 = vld [vmem:[#allocation11 + $0x48] sm:$0xff]
    %v1916 = vld [vmem:[#allocation11 + $0x50] sm:$0xff]
    %v1917 = vld [vmem:[#allocation11 + $0x58] sm:$0xff]
    %v1918 = vld [vmem:[#allocation11 + $0x60] sm:$0xff]
    %v1919 = vld [vmem:[#allocation11 + $0x68] sm:$0xff]
    %v1920 = vld [vmem:[#allocation11 + $0x70] sm:$0xff]
    %v1921 = vld [vmem:[#allocation11 + $0x78] sm:$0xff]
    %v1922 = vld [vmem:[#allocation11 + $0x80] sm:$0xff]
    %v1923 = vld [vmem:[#allocation11 + $0x88] sm:$0xff]
    %v1924 = vld [vmem:[#allocation11 + $0x90] sm:$0xff]
    %v1925 = vld [vmem:[#allocation11 + $0x98] sm:$0xff]
    %v1926 = vld [vmem:[#allocation11 + $0xa0] sm:$0xff]
    %v1927 = vld [vmem:[#allocation11 + $0xa8] sm:$0xff]
    %v1928 = vld [vmem:[#allocation11 + $0xb0] sm:$0xff]
    %v1929 = vld [vmem:[#allocation11 + $0xb8] sm:$0xff]
    %v1930 = vld [vmem:[#allocation11 + $0xc0] sm:$0xff]
    %v1931 = vld [vmem:[#allocation11 + $0xc8] sm:$0xff]
    %v1932 = vld [vmem:[#allocation11 + $0xd0] sm:$0xff]
    %v1933 = vld [vmem:[#allocation11 + $0xd8] sm:$0xff]
    %v1934 = vld [vmem:[#allocation11 + $0xe0] sm:$0xff]
    %v1935 = vld [vmem:[#allocation11 + $0xe8] sm:$0xff]
    %v1936 = vld [vmem:[#allocation11 + $0xf0] sm:$0xff]
    %v1937 = vld [vmem:[#allocation11 + $0xf8] sm:$0xff]
    %v1940 = vunpack.c.l.b16 %v1888
    %v1941 = vunpack.c.l.b16 %v1889
    %v1942 = vpack.c.b16 %v1941, %v1940
    %v1976 = vunpack.c.l.b16 %v1906
    %v1977 = vunpack.c.h.b16 %v1906
    %v1978 = vunpack.c.l.b16 %v1907
    %v1979 = vunpack.c.h.b16 %v1907
    %v1980 = vunpack.c.l.b16 %v1908
    %v1981 = vunpack.c.h.b16 %v1908
    %v1982 = vunpack.c.l.b16 %v1909
    %v1983 = vunpack.c.h.b16 %v1909
    %v1984 = vunpack.c.l.b16 %v1910
    %v1985 = vunpack.c.h.b16 %v1910
    %v1986 = vunpack.c.l.b16 %v1911
    %v1987 = vunpack.c.h.b16 %v1911
    %v1988 = vunpack.c.l.b16 %v1912
    %v1989 = vunpack.c.h.b16 %v1912
    %v1990 = vunpack.c.l.b16 %v1913
    %v1991 = vunpack.c.h.b16 %v1913
    %v1992 = vunpack.c.l.b16 %v1914
    %v1993 = vunpack.c.h.b16 %v1914
    %v1994 = vunpack.c.l.b16 %v1915
    %v1995 = vunpack.c.h.b16 %v1915
    %v1996 = vunpack.c.l.b16 %v1916
    %v1997 = vunpack.c.h.b16 %v1916
    %v1998 = vunpack.c.l.b16 %v1917
    %v1999 = vunpack.c.h.b16 %v1917
    %v2000 = vunpack.c.l.b16 %v1918
    %v2001 = vunpack.c.h.b16 %v1918
    %v2002 = vunpack.c.l.b16 %v1919
    %v2003 = vunpack.c.h.b16 %v1919
    %v2004 = vunpack.c.l.b16 %v1920
    %v2005 = vunpack.c.h.b16 %v1920
    %v2006 = vunpack.c.l.b16 %v1921
    %v2007 = vunpack.c.h.b16 %v1921
    %v2008 = vunpack.c.l.b16 %v1922
    %v2009 = vunpack.c.h.b16 %v1922
    %v2010 = vunpack.c.l.b16 %v1923
    %v2011 = vunpack.c.h.b16 %v1923
    %v2012 = vunpack.c.l.b16 %v1924
    %v2013 = vunpack.c.h.b16 %v1924
    %v2014 = vunpack.c.l.b16 %v1925
    %v2015 = vunpack.c.h.b16 %v1925
    %v2016 = vunpack.c.l.b16 %v1926
    %v2017 = vunpack.c.h.b16 %v1926
    %v2018 = vunpack.c.l.b16 %v1927
    %v2019 = vunpack.c.h.b16 %v1927
    %v2020 = vunpack.c.l.b16 %v1928
    %v2021 = vunpack.c.h.b16 %v1928
    %v2022 = vunpack.c.l.b16 %v1929
    %v2023 = vunpack.c.h.b16 %v1929
    %v2024 = vunpack.c.l.b16 %v1930
    %v2025 = vunpack.c.h.b16 %v1930
    %v2026 = vunpack.c.l.b16 %v1931
    %v2027 = vunpack.c.h.b16 %v1931
    %v2028 = vunpack.c.l.b16 %v1932
    %v2029 = vunpack.c.h.b16 %v1932
    %v2030 = vunpack.c.l.b16 %v1933
    %v2031 = vunpack.c.h.b16 %v1933
    %v2032 = vunpack.c.l.b16 %v1934
    %v2033 = vunpack.c.h.b16 %v1934
    %v2034 = vunpack.c.l.b16 %v1935
    %v2035 = vunpack.c.h.b16 %v1935
    %v2036 = vunpack.c.l.b16 %v1936
    %v2037 = vunpack.c.h.b16 %v1936
    %v2038 = vunpack.c.l.b16 %v1937
    %v2039 = vunpack.c.h.b16 %v1937
    %v2040 = vpack.c.b16 %v1980, %v1976
    %v2041 = vpack.c.b16 %v1981, %v1977
    %v2042 = vpack.c.b16 %v1982, %v1978
    %v2043 = vpack.c.b16 %v1983, %v1979
    %v2044 = vpack.c.b16 %v1988, %v1984
    %v2045 = vpack.c.b16 %v1989, %v1985
    %v2046 = vpack.c.b16 %v1990, %v1986
    %v2047 = vpack.c.b16 %v1991, %v1987
    %v2048 = vpack.c.b16 %v1996, %v1992
    %v2049 = vpack.c.b16 %v1997, %v1993
    %v2050 = vpack.c.b16 %v1998, %v1994
    %v2051 = vpack.c.b16 %v1999, %v1995
    %v2052 = vpack.c.b16 %v2004, %v2000
    %v2053 = vpack.c.b16 %v2005, %v2001
    %v2054 = vpack.c.b16 %v2006, %v2002
    %v2055 = vpack.c.b16 %v2007, %v2003
    %v2056 = vpack.c.b16 %v2012, %v2008
    %v2057 = vpack.c.b16 %v2013, %v2009
    %v2058 = vpack.c.b16 %v2014, %v2010
    %v2059 = vpack.c.b16 %v2015, %v2011
    %v2060 = vpack.c.b16 %v2020, %v2016
    %v2061 = vpack.c.b16 %v2021, %v2017
    %v2062 = vpack.c.b16 %v2022, %v2018
    %v2063 = vpack.c.b16 %v2023, %v2019
    %v2064 = vpack.c.b16 %v2028, %v2024
    %v2065 = vpack.c.b16 %v2029, %v2025
    %v2066 = vpack.c.b16 %v2030, %v2026
    %v2067 = vpack.c.b16 %v2031, %v2027
    %v2068 = vpack.c.b16 %v2036, %v2032
    %v2069 = vpack.c.b16 %v2037, %v2033
    %v2070 = vpack.c.b16 %v2038, %v2034
    %v2071 = vpack.c.b16 %v2039, %v2035
    %2104 = vmatpush.bf16.msra.mxu0 %v2068
    %2105 = vmatpush.bf16.msra.mxu0 %v2064
    %2106 = vmatpush.bf16.msra.mxu0 %v2060
    %2107 = vmatpush.bf16.msra.mxu0 %v2056
    %2108 = vmatpush.bf16.msra.mxu0 %v2052
    %2109 = vmatpush.bf16.msra.mxu0 %v2048
    %2110 = vmatpush.bf16.msra.mxu0 %v2044
    %2111 = vmatpush.bf16.msra.mxu0 %v2040
    %2112 = vmatmul.bf16.gmra.mxu0 %v1942
    %v2113 = vpop.f32.mrf.mxu0
    %v2114 = vadd.f32 0.0, %v2113
    %v2115 = vpop.f32.mrf.mxu0
    %v2116 = vadd.f32 0.0, %v2115
    %2117 = vdwg.mxu0
    %2118 = vmatpush.bf16.msra.mxu0 %v2069
    %2119 = vmatpush.bf16.msra.mxu0 %v2065
    %2120 = vmatpush.bf16.msra.mxu0 %v2061
    %2121 = vmatpush.bf16.msra.mxu0 %v2057
    %2122 = vmatpush.bf16.msra.mxu0 %v2053
    %2123 = vmatpush.bf16.msra.mxu0 %v2049
    %2124 = vmatpush.bf16.msra.mxu0 %v2045
    %2125 = vmatpush.bf16.msra.mxu0 %v2041
    %2126 = vmatmul.bf16.gmra.mxu0 %v1942
    %v2127 = vpop.f32.mrf.mxu0
    %v2128 = vadd.f32 0.0, %v2127
    %v2129 = vpop.f32.mrf.mxu0
    %v2130 = vadd.f32 0.0, %v2129
    %2131 = vdwg.mxu0
    %2132 = vmatpush.bf16.msra.mxu0 %v2070
    %2133 = vmatpush.bf16.msra.mxu0 %v2066
    %2134 = vmatpush.bf16.msra.mxu0 %v2062
    %2135 = vmatpush.bf16.msra.mxu0 %v2058
    %2136 = vmatpush.bf16.msra.mxu0 %v2054
    %2137 = vmatpush.bf16.msra.mxu0 %v2050
    %2138 = vmatpush.bf16.msra.mxu0 %v2046
    %2139 = vmatpush.bf16.msra.mxu0 %v2042
    %2140 = vmatmul.bf16.gmra.mxu0 %v1942
    %v2141 = vpop.f32.mrf.mxu0
    %v2142 = vadd.f32 0.0, %v2141
    %v2143 = vpop.f32.mrf.mxu0
    %v2144 = vadd.f32 0.0, %v2143
    %2145 = vdwg.mxu0
    %2146 = vmatpush.bf16.msra.mxu0 %v2071
    %2147 = vmatpush.bf16.msra.mxu0 %v2067
    %2148 = vmatpush.bf16.msra.mxu0 %v2063
    %2149 = vmatpush.bf16.msra.mxu0 %v2059
    %2150 = vmatpush.bf16.msra.mxu0 %v2055
    %2151 = vmatpush.bf16.msra.mxu0 %v2051
    %2152 = vmatpush.bf16.msra.mxu0 %v2047
    %2153 = vmatpush.bf16.msra.mxu0 %v2043
    %2154 = vmatmul.bf16.gmra.mxu0 %v1942
    %v2155 = vpop.f32.mrf.mxu0
    %v2156 = vadd.f32 0.0, %v2155
    %v2157 = vpop.f32.mrf.mxu0
    %v2158 = vadd.f32 0.0, %v2157
    %2159 = vdwg.mxu0
    %v2160 = vadd.f32 %v1898, %v2114
    %v2161 = vadd.f32 %v1899, %v2128
    %v2162 = vadd.f32 %v1900, %v2142
    %v2163 = vadd.f32 %v1901, %v2156
    %v2164 = vadd.f32 %v1902, %v2116
    %v2165 = vadd.f32 %v1903, %v2130
    %v2166 = vadd.f32 %v1904, %v2144
    %v2167 = vadd.f32 %v1905, %v2158
    %v2168 = vmul.f32 %v2160, 0.5
    %v2169 = vmul.f32 %v2164, 0.5
    %v2170 = vtanh.pop %v2168
    %v2171 = vtanh.pop %v2169
    %v2172 = vadd.f32 %v2170, 1.0
    %v2173 = vadd.f32 %v2171, 1.0
    %v2174 = vmul.f32 %v2172, 0.5
    %v2175 = vmul.f32 %v2173, 0.5
    %v2176 = vmul.f32 %v2161, 0.5
    %v2177 = vmul.f32 %v2165, 0.5
    %v2178 = vtanh.pop %v2176
    %v2179 = vtanh.pop %v2177
    %v2180 = vadd.f32 %v2178, 1.0
    %v2181 = vadd.f32 %v2179, 1.0
    %v2182 = vmul.f32 %v2180, 0.5
    %v2183 = vmul.f32 %v2181, 0.5
    %v2184 = vtanh.pop %v2162
    %v2185 = vtanh.pop %v2166
    %v2186 = vmul.f32 %v2163, 0.5
    %v2187 = vmul.f32 %v2167, 0.5
    %v2188 = vtanh.pop %v2186
    %v2189 = vtanh.pop %v2187
    %v2190 = vadd.f32 %v2188, 1.0
    %v2191 = vadd.f32 %v2189, 1.0
    %v2192 = vmul.f32 %v2190, 0.5
    %v2193 = vmul.f32 %v2191, 0.5
    %v2194 = vmul.f32 %v2182, %v1882
    %v2195 = vmul.f32 %v2183, %v1883
    %v2196 = vmul.f32 %v2174, %v2184
    %v2197 = vmul.f32 %v2175, %v2185
    %v2198 = vadd.f32 %v2194, %v2196
    %v2199 = vadd.f32 %v2195, %v2197
    %v2200 = vtanh.pop %v2198
    %v2201 = vtanh.pop %v2199
    %v2202 = vmul.f32 %v2192, %v2200
    %v2203 = vmul.f32 %v2193, %v2201
    %v2204 = vpack.c.bf16 %v2202, %v2202
    %v2205 = vpack.c.bf16 %v2203, %v2203
    %s2206 = scalar_lea.vmem [#allocation12], 32
    %2207 = vst [vmem:[%s2206] sm:$0xf] %v2204
    %2208 = vst [vmem:[%s2206 + $0x4] sm:$0xf] %v2205
    %s2209 = scalar_lea.vmem [#allocation2], 160
    %v2210 = vld [vmem:[%s2209] sm:$0xff]
    %v2211 = vld [vmem:[%s2209 + $0x8] sm:$0xff]
    %v2212 = vld [vmem:[%s2209 + $0x10] sm:$0xff]
    %v2213 = vld [vmem:[%s2209 + $0x18] sm:$0xff]
    %v2214 = vunpack.c.l.bf16 %v2210
    %v2215 = vunpack.c.h.bf16 %v2210
    %v2216 = vunpack.c.l.bf16 %v2211
    %v2217 = vunpack.c.h.bf16 %v2211
    %v2218 = vunpack.c.l.bf16 %v2212
    %v2219 = vunpack.c.h.bf16 %v2212
    %v2220 = vunpack.c.l.bf16 %v2213
    %v2221 = vunpack.c.h.bf16 %v2213
    %v2222 = vld [vmem:[#allocation11] sm:$0xff]
    %v2223 = vld [vmem:[#allocation11 + $0x8] sm:$0xff]
    %v2224 = vld [vmem:[#allocation11 + $0x10] sm:$0xff]
    %v2225 = vld [vmem:[#allocation11 + $0x18] sm:$0xff]
    %v2226 = vld [vmem:[#allocation11 + $0x20] sm:$0xff]
    %v2227 = vld [vmem:[#allocation11 + $0x28] sm:$0xff]
    %v2228 = vld [vmem:[#allocation11 + $0x30] sm:$0xff]
    %v2229 = vld [vmem:[#allocation11 + $0x38] sm:$0xff]
    %v2230 = vld [vmem:[#allocation11 + $0x40] sm:$0xff]
    %v2231 = vld [vmem:[#allocation11 + $0x48] sm:$0xff]
    %v2232 = vld [vmem:[#allocation11 + $0x50] sm:$0xff]
    %v2233 = vld [vmem:[#allocation11 + $0x58] sm:$0xff]
    %v2234 = vld [vmem:[#allocation11 + $0x60] sm:$0xff]
    %v2235 = vld [vmem:[#allocation11 + $0x68] sm:$0xff]
    %v2236 = vld [vmem:[#allocation11 + $0x70] sm:$0xff]
    %v2237 = vld [vmem:[#allocation11 + $0x78] sm:$0xff]
    %v2238 = vld [vmem:[#allocation11 + $0x80] sm:$0xff]
    %v2239 = vld [vmem:[#allocation11 + $0x88] sm:$0xff]
    %v2240 = vld [vmem:[#allocation11 + $0x90] sm:$0xff]
    %v2241 = vld [vmem:[#allocation11 + $0x98] sm:$0xff]
    %v2242 = vld [vmem:[#allocation11 + $0xa0] sm:$0xff]
    %v2243 = vld [vmem:[#allocation11 + $0xa8] sm:$0xff]
    %v2244 = vld [vmem:[#allocation11 + $0xb0] sm:$0xff]
    %v2245 = vld [vmem:[#allocation11 + $0xb8] sm:$0xff]
    %v2246 = vld [vmem:[#allocation11 + $0xc0] sm:$0xff]
    %v2247 = vld [vmem:[#allocation11 + $0xc8] sm:$0xff]
    %v2248 = vld [vmem:[#allocation11 + $0xd0] sm:$0xff]
    %v2249 = vld [vmem:[#allocation11 + $0xd8] sm:$0xff]
    %v2250 = vld [vmem:[#allocation11 + $0xe0] sm:$0xff]
    %v2251 = vld [vmem:[#allocation11 + $0xe8] sm:$0xff]
    %v2252 = vld [vmem:[#allocation11 + $0xf0] sm:$0xff]
    %v2253 = vld [vmem:[#allocation11 + $0xf8] sm:$0xff]
    %v2256 = vunpack.c.l.b16 %v2204
    %v2257 = vunpack.c.l.b16 %v2205
    %v2258 = vpack.c.b16 %v2257, %v2256
    %v2292 = vunpack.c.l.b16 %v2222
    %v2293 = vunpack.c.h.b16 %v2222
    %v2294 = vunpack.c.l.b16 %v2223
    %v2295 = vunpack.c.h.b16 %v2223
    %v2296 = vunpack.c.l.b16 %v2224
    %v2297 = vunpack.c.h.b16 %v2224
    %v2298 = vunpack.c.l.b16 %v2225
    %v2299 = vunpack.c.h.b16 %v2225
    %v2300 = vunpack.c.l.b16 %v2226
    %v2301 = vunpack.c.h.b16 %v2226
    %v2302 = vunpack.c.l.b16 %v2227
    %v2303 = vunpack.c.h.b16 %v2227
    %v2304 = vunpack.c.l.b16 %v2228
    %v2305 = vunpack.c.h.b16 %v2228
    %v2306 = vunpack.c.l.b16 %v2229
    %v2307 = vunpack.c.h.b16 %v2229
    %v2308 = vunpack.c.l.b16 %v2230
    %v2309 = vunpack.c.h.b16 %v2230
    %v2310 = vunpack.c.l.b16 %v2231
    %v2311 = vunpack.c.h.b16 %v2231
    %v2312 = vunpack.c.l.b16 %v2232
    %v2313 = vunpack.c.h.b16 %v2232
    %v2314 = vunpack.c.l.b16 %v2233
    %v2315 = vunpack.c.h.b16 %v2233
    %v2316 = vunpack.c.l.b16 %v2234
    %v2317 = vunpack.c.h.b16 %v2234
    %v2318 = vunpack.c.l.b16 %v2235
    %v2319 = vunpack.c.h.b16 %v2235
    %v2320 = vunpack.c.l.b16 %v2236
    %v2321 = vunpack.c.h.b16 %v2236
    %v2322 = vunpack.c.l.b16 %v2237
    %v2323 = vunpack.c.h.b16 %v2237
    %v2324 = vunpack.c.l.b16 %v2238
    %v2325 = vunpack.c.h.b16 %v2238
    %v2326 = vunpack.c.l.b16 %v2239
    %v2327 = vunpack.c.h.b16 %v2239
    %v2328 = vunpack.c.l.b16 %v2240
    %v2329 = vunpack.c.h.b16 %v2240
    %v2330 = vunpack.c.l.b16 %v2241
    %v2331 = vunpack.c.h.b16 %v2241
    %v2332 = vunpack.c.l.b16 %v2242
    %v2333 = vunpack.c.h.b16 %v2242
    %v2334 = vunpack.c.l.b16 %v2243
    %v2335 = vunpack.c.h.b16 %v2243
    %v2336 = vunpack.c.l.b16 %v2244
    %v2337 = vunpack.c.h.b16 %v2244
    %v2338 = vunpack.c.l.b16 %v2245
    %v2339 = vunpack.c.h.b16 %v2245
    %v2340 = vunpack.c.l.b16 %v2246
    %v2341 = vunpack.c.h.b16 %v2246
    %v2342 = vunpack.c.l.b16 %v2247
    %v2343 = vunpack.c.h.b16 %v2247
    %v2344 = vunpack.c.l.b16 %v2248
    %v2345 = vunpack.c.h.b16 %v2248
    %v2346 = vunpack.c.l.b16 %v2249
    %v2347 = vunpack.c.h.b16 %v2249
    %v2348 = vunpack.c.l.b16 %v2250
    %v2349 = vunpack.c.h.b16 %v2250
    %v2350 = vunpack.c.l.b16 %v2251
    %v2351 = vunpack.c.h.b16 %v2251
    %v2352 = vunpack.c.l.b16 %v2252
    %v2353 = vunpack.c.h.b16 %v2252
    %v2354 = vunpack.c.l.b16 %v2253
    %v2355 = vunpack.c.h.b16 %v2253
    %v2356 = vpack.c.b16 %v2296, %v2292
    %v2357 = vpack.c.b16 %v2297, %v2293
    %v2358 = vpack.c.b16 %v2298, %v2294
    %v2359 = vpack.c.b16 %v2299, %v2295
    %v2360 = vpack.c.b16 %v2304, %v2300
    %v2361 = vpack.c.b16 %v2305, %v2301
    %v2362 = vpack.c.b16 %v2306, %v2302
    %v2363 = vpack.c.b16 %v2307, %v2303
    %v2364 = vpack.c.b16 %v2312, %v2308
    %v2365 = vpack.c.b16 %v2313, %v2309
    %v2366 = vpack.c.b16 %v2314, %v2310
    %v2367 = vpack.c.b16 %v2315, %v2311
    %v2368 = vpack.c.b16 %v2320, %v2316
    %v2369 = vpack.c.b16 %v2321, %v2317
    %v2370 = vpack.c.b16 %v2322, %v2318
    %v2371 = vpack.c.b16 %v2323, %v2319
    %v2372 = vpack.c.b16 %v2328, %v2324
    %v2373 = vpack.c.b16 %v2329, %v2325
    %v2374 = vpack.c.b16 %v2330, %v2326
    %v2375 = vpack.c.b16 %v2331, %v2327
    %v2376 = vpack.c.b16 %v2336, %v2332
    %v2377 = vpack.c.b16 %v2337, %v2333
    %v2378 = vpack.c.b16 %v2338, %v2334
    %v2379 = vpack.c.b16 %v2339, %v2335
    %v2380 = vpack.c.b16 %v2344, %v2340
    %v2381 = vpack.c.b16 %v2345, %v2341
    %v2382 = vpack.c.b16 %v2346, %v2342
    %v2383 = vpack.c.b16 %v2347, %v2343
    %v2384 = vpack.c.b16 %v2352, %v2348
    %v2385 = vpack.c.b16 %v2353, %v2349
    %v2386 = vpack.c.b16 %v2354, %v2350
    %v2387 = vpack.c.b16 %v2355, %v2351
    %2420 = vmatpush.bf16.msra.mxu0 %v2384
    %2421 = vmatpush.bf16.msra.mxu0 %v2380
    %2422 = vmatpush.bf16.msra.mxu0 %v2376
    %2423 = vmatpush.bf16.msra.mxu0 %v2372
    %2424 = vmatpush.bf16.msra.mxu0 %v2368
    %2425 = vmatpush.bf16.msra.mxu0 %v2364
    %2426 = vmatpush.bf16.msra.mxu0 %v2360
    %2427 = vmatpush.bf16.msra.mxu0 %v2356
    %2428 = vmatmul.bf16.gmra.mxu0 %v2258
    %v2429 = vpop.f32.mrf.mxu0
    %v2430 = vadd.f32 0.0, %v2429
    %v2431 = vpop.f32.mrf.mxu0
    %v2432 = vadd.f32 0.0, %v2431
    %2433 = vdwg.mxu0
    %2434 = vmatpush.bf16.msra.mxu0 %v2385
    %2435 = vmatpush.bf16.msra.mxu0 %v2381
    %2436 = vmatpush.bf16.msra.mxu0 %v2377
    %2437 = vmatpush.bf16.msra.mxu0 %v2373
    %2438 = vmatpush.bf16.msra.mxu0 %v2369
    %2439 = vmatpush.bf16.msra.mxu0 %v2365
    %2440 = vmatpush.bf16.msra.mxu0 %v2361
    %2441 = vmatpush.bf16.msra.mxu0 %v2357
    %2442 = vmatmul.bf16.gmra.mxu0 %v2258
    %v2443 = vpop.f32.mrf.mxu0
    %v2444 = vadd.f32 0.0, %v2443
    %v2445 = vpop.f32.mrf.mxu0
    %v2446 = vadd.f32 0.0, %v2445
    %2447 = vdwg.mxu0
    %2448 = vmatpush.bf16.msra.mxu0 %v2386
    %2449 = vmatpush.bf16.msra.mxu0 %v2382
    %2450 = vmatpush.bf16.msra.mxu0 %v2378
    %2451 = vmatpush.bf16.msra.mxu0 %v2374
    %2452 = vmatpush.bf16.msra.mxu0 %v2370
    %2453 = vmatpush.bf16.msra.mxu0 %v2366
    %2454 = vmatpush.bf16.msra.mxu0 %v2362
    %2455 = vmatpush.bf16.msra.mxu0 %v2358
    %2456 = vmatmul.bf16.gmra.mxu0 %v2258
    %v2457 = vpop.f32.mrf.mxu0
    %v2458 = vadd.f32 0.0, %v2457
    %v2459 = vpop.f32.mrf.mxu0
    %v2460 = vadd.f32 0.0, %v2459
    %2461 = vdwg.mxu0
    %2462 = vmatpush.bf16.msra.mxu0 %v2387
    %2463 = vmatpush.bf16.msra.mxu0 %v2383
    %2464 = vmatpush.bf16.msra.mxu0 %v2379
    %2465 = vmatpush.bf16.msra.mxu0 %v2375
    %2466 = vmatpush.bf16.msra.mxu0 %v2371
    %2467 = vmatpush.bf16.msra.mxu0 %v2367
    %2468 = vmatpush.bf16.msra.mxu0 %v2363
    %2469 = vmatpush.bf16.msra.mxu0 %v2359
    %2470 = vmatmul.bf16.gmra.mxu0 %v2258
    %v2471 = vpop.f32.mrf.mxu0
    %v2472 = vadd.f32 0.0, %v2471
    %v2473 = vpop.f32.mrf.mxu0
    %v2474 = vadd.f32 0.0, %v2473
    %2475 = vdwg.mxu0
    %v2476 = vadd.f32 %v2214, %v2430
    %v2477 = vadd.f32 %v2215, %v2444
    %v2478 = vadd.f32 %v2216, %v2458
    %v2479 = vadd.f32 %v2217, %v2472
    %v2480 = vadd.f32 %v2218, %v2432
    %v2481 = vadd.f32 %v2219, %v2446
    %v2482 = vadd.f32 %v2220, %v2460
    %v2483 = vadd.f32 %v2221, %v2474
    %v2484 = vmul.f32 %v2476, 0.5
    %v2485 = vmul.f32 %v2480, 0.5
    %v2486 = vtanh.pop %v2484
    %v2487 = vtanh.pop %v2485
    %v2488 = vadd.f32 %v2486, 1.0
    %v2489 = vadd.f32 %v2487, 1.0
    %v2490 = vmul.f32 %v2488, 0.5
    %v2491 = vmul.f32 %v2489, 0.5
    %v2492 = vmul.f32 %v2477, 0.5
    %v2493 = vmul.f32 %v2481, 0.5
    %v2494 = vtanh.pop %v2492
    %v2495 = vtanh.pop %v2493
    %v2496 = vadd.f32 %v2494, 1.0
    %v2497 = vadd.f32 %v2495, 1.0
    %v2498 = vmul.f32 %v2496, 0.5
    %v2499 = vmul.f32 %v2497, 0.5
    %v2500 = vtanh.pop %v2478
    %v2501 = vtanh.pop %v2482
    %v2502 = vmul.f32 %v2479, 0.5
    %v2503 = vmul.f32 %v2483, 0.5
    %v2504 = vtanh.pop %v2502
    %v2505 = vtanh.pop %v2503
    %v2506 = vadd.f32 %v2504, 1.0
    %v2507 = vadd.f32 %v2505, 1.0
    %v2508 = vmul.f32 %v2506, 0.5
    %v2509 = vmul.f32 %v2507, 0.5
    %v2510 = vmul.f32 %v2498, %v2198
    %v2511 = vmul.f32 %v2499, %v2199
    %v2512 = vmul.f32 %v2490, %v2500
    %v2513 = vmul.f32 %v2491, %v2501
    %v2514 = vadd.f32 %v2510, %v2512
    %v2515 = vadd.f32 %v2511, %v2513
    %v2516 = vtanh.pop %v2514
    %v2517 = vtanh.pop %v2515
    %v2518 = vmul.f32 %v2508, %v2516
    %v2519 = vmul.f32 %v2509, %v2517
    %v2520 = vpack.c.bf16 %v2518, %v2518
    %v2521 = vpack.c.bf16 %v2519, %v2519
    %s2522 = scalar_lea.vmem [#allocation12], 40
    %2523 = vst [vmem:[%s2522] sm:$0xf] %v2520
    %2524 = vst [vmem:[%s2522 + $0x4] sm:$0xf] %v2521
    %s2525 = scalar_lea.vmem [#allocation2], 192
    %v2526 = vld [vmem:[%s2525] sm:$0xff]
    %v2527 = vld [vmem:[%s2525 + $0x8] sm:$0xff]
    %v2528 = vld [vmem:[%s2525 + $0x10] sm:$0xff]
    %v2529 = vld [vmem:[%s2525 + $0x18] sm:$0xff]
    %v2530 = vunpack.c.l.bf16 %v2526
    %v2531 = vunpack.c.h.bf16 %v2526
    %v2532 = vunpack.c.l.bf16 %v2527
    %v2533 = vunpack.c.h.bf16 %v2527
    %v2534 = vunpack.c.l.bf16 %v2528
    %v2535 = vunpack.c.h.bf16 %v2528
    %v2536 = vunpack.c.l.bf16 %v2529
    %v2537 = vunpack.c.h.bf16 %v2529
    %v2538 = vld [vmem:[#allocation11] sm:$0xff]
    %v2539 = vld [vmem:[#allocation11 + $0x8] sm:$0xff]
    %v2540 = vld [vmem:[#allocation11 + $0x10] sm:$0xff]
    %v2541 = vld [vmem:[#allocation11 + $0x18] sm:$0xff]
    %v2542 = vld [vmem:[#allocation11 + $0x20] sm:$0xff]
    %v2543 = vld [vmem:[#allocation11 + $0x28] sm:$0xff]
    %v2544 = vld [vmem:[#allocation11 + $0x30] sm:$0xff]
    %v2545 = vld [vmem:[#allocation11 + $0x38] sm:$0xff]
    %v2546 = vld [vmem:[#allocation11 + $0x40] sm:$0xff]
    %v2547 = vld [vmem:[#allocation11 + $0x48] sm:$0xff]
    %v2548 = vld [vmem:[#allocation11 + $0x50] sm:$0xff]
    %v2549 = vld [vmem:[#allocation11 + $0x58] sm:$0xff]
    %v2550 = vld [vmem:[#allocation11 + $0x60] sm:$0xff]
    %v2551 = vld [vmem:[#allocation11 + $0x68] sm:$0xff]
    %v2552 = vld [vmem:[#allocation11 + $0x70] sm:$0xff]
    %v2553 = vld [vmem:[#allocation11 + $0x78] sm:$0xff]
    %v2554 = vld [vmem:[#allocation11 + $0x80] sm:$0xff]
    %v2555 = vld [vmem:[#allocation11 + $0x88] sm:$0xff]
    %v2556 = vld [vmem:[#allocation11 + $0x90] sm:$0xff]
    %v2557 = vld [vmem:[#allocation11 + $0x98] sm:$0xff]
    %v2558 = vld [vmem:[#allocation11 + $0xa0] sm:$0xff]
    %v2559 = vld [vmem:[#allocation11 + $0xa8] sm:$0xff]
    %v2560 = vld [vmem:[#allocation11 + $0xb0] sm:$0xff]
    %v2561 = vld [vmem:[#allocation11 + $0xb8] sm:$0xff]
    %v2562 = vld [vmem:[#allocation11 + $0xc0] sm:$0xff]
    %v2563 = vld [vmem:[#allocation11 + $0xc8] sm:$0xff]
    %v2564 = vld [vmem:[#allocation11 + $0xd0] sm:$0xff]
    %v2565 = vld [vmem:[#allocation11 + $0xd8] sm:$0xff]
    %v2566 = vld [vmem:[#allocation11 + $0xe0] sm:$0xff]
    %v2567 = vld [vmem:[#allocation11 + $0xe8] sm:$0xff]
    %v2568 = vld [vmem:[#allocation11 + $0xf0] sm:$0xff]
    %v2569 = vld [vmem:[#allocation11 + $0xf8] sm:$0xff]
    %v2572 = vunpack.c.l.b16 %v2520
    %v2573 = vunpack.c.l.b16 %v2521
    %v2574 = vpack.c.b16 %v2573, %v2572
    %v2608 = vunpack.c.l.b16 %v2538
    %v2609 = vunpack.c.h.b16 %v2538
    %v2610 = vunpack.c.l.b16 %v2539
    %v2611 = vunpack.c.h.b16 %v2539
    %v2612 = vunpack.c.l.b16 %v2540
    %v2613 = vunpack.c.h.b16 %v2540
    %v2614 = vunpack.c.l.b16 %v2541
    %v2615 = vunpack.c.h.b16 %v2541
    %v2616 = vunpack.c.l.b16 %v2542
    %v2617 = vunpack.c.h.b16 %v2542
    %v2618 = vunpack.c.l.b16 %v2543
    %v2619 = vunpack.c.h.b16 %v2543
    %v2620 = vunpack.c.l.b16 %v2544
    %v2621 = vunpack.c.h.b16 %v2544
    %v2622 = vunpack.c.l.b16 %v2545
    %v2623 = vunpack.c.h.b16 %v2545
    %v2624 = vunpack.c.l.b16 %v2546
    %v2625 = vunpack.c.h.b16 %v2546
    %v2626 = vunpack.c.l.b16 %v2547
    %v2627 = vunpack.c.h.b16 %v2547
    %v2628 = vunpack.c.l.b16 %v2548
    %v2629 = vunpack.c.h.b16 %v2548
    %v2630 = vunpack.c.l.b16 %v2549
    %v2631 = vunpack.c.h.b16 %v2549
    %v2632 = vunpack.c.l.b16 %v2550
    %v2633 = vunpack.c.h.b16 %v2550
    %v2634 = vunpack.c.l.b16 %v2551
    %v2635 = vunpack.c.h.b16 %v2551
    %v2636 = vunpack.c.l.b16 %v2552
    %v2637 = vunpack.c.h.b16 %v2552
    %v2638 = vunpack.c.l.b16 %v2553
    %v2639 = vunpack.c.h.b16 %v2553
    %v2640 = vunpack.c.l.b16 %v2554
    %v2641 = vunpack.c.h.b16 %v2554
    %v2642 = vunpack.c.l.b16 %v2555
    %v2643 = vunpack.c.h.b16 %v2555
    %v2644 = vunpack.c.l.b16 %v2556
    %v2645 = vunpack.c.h.b16 %v2556
    %v2646 = vunpack.c.l.b16 %v2557
    %v2647 = vunpack.c.h.b16 %v2557
    %v2648 = vunpack.c.l.b16 %v2558
    %v2649 = vunpack.c.h.b16 %v2558
    %v2650 = vunpack.c.l.b16 %v2559
    %v2651 = vunpack.c.h.b16 %v2559
    %v2652 = vunpack.c.l.b16 %v2560
    %v2653 = vunpack.c.h.b16 %v2560
    %v2654 = vunpack.c.l.b16 %v2561
    %v2655 = vunpack.c.h.b16 %v2561
    %v2656 = vunpack.c.l.b16 %v2562
    %v2657 = vunpack.c.h.b16 %v2562
    %v2658 = vunpack.c.l.b16 %v2563
    %v2659 = vunpack.c.h.b16 %v2563
    %v2660 = vunpack.c.l.b16 %v2564
    %v2661 = vunpack.c.h.b16 %v2564
    %v2662 = vunpack.c.l.b16 %v2565
    %v2663 = vunpack.c.h.b16 %v2565
    %v2664 = vunpack.c.l.b16 %v2566
    %v2665 = vunpack.c.h.b16 %v2566
    %v2666 = vunpack.c.l.b16 %v2567
    %v2667 = vunpack.c.h.b16 %v2567
    %v2668 = vunpack.c.l.b16 %v2568
    %v2669 = vunpack.c.h.b16 %v2568
    %v2670 = vunpack.c.l.b16 %v2569
    %v2671 = vunpack.c.h.b16 %v2569
    %v2672 = vpack.c.b16 %v2612, %v2608
    %v2673 = vpack.c.b16 %v2613, %v2609
    %v2674 = vpack.c.b16 %v2614, %v2610
    %v2675 = vpack.c.b16 %v2615, %v2611
    %v2676 = vpack.c.b16 %v2620, %v2616
    %v2677 = vpack.c.b16 %v2621, %v2617
    %v2678 = vpack.c.b16 %v2622, %v2618
    %v2679 = vpack.c.b16 %v2623, %v2619
    %v2680 = vpack.c.b16 %v2628, %v2624
    %v2681 = vpack.c.b16 %v2629, %v2625
    %v2682 = vpack.c.b16 %v2630, %v2626
    %v2683 = vpack.c.b16 %v2631, %v2627
    %v2684 = vpack.c.b16 %v2636, %v2632
    %v2685 = vpack.c.b16 %v2637, %v2633
    %v2686 = vpack.c.b16 %v2638, %v2634
    %v2687 = vpack.c.b16 %v2639, %v2635
    %v2688 = vpack.c.b16 %v2644, %v2640
    %v2689 = vpack.c.b16 %v2645, %v2641
    %v2690 = vpack.c.b16 %v2646, %v2642
    %v2691 = vpack.c.b16 %v2647, %v2643
    %v2692 = vpack.c.b16 %v2652, %v2648
    %v2693 = vpack.c.b16 %v2653, %v2649
    %v2694 = vpack.c.b16 %v2654, %v2650
    %v2695 = vpack.c.b16 %v2655, %v2651
    %v2696 = vpack.c.b16 %v2660, %v2656
    %v2697 = vpack.c.b16 %v2661, %v2657
    %v2698 = vpack.c.b16 %v2662, %v2658
    %v2699 = vpack.c.b16 %v2663, %v2659
    %v2700 = vpack.c.b16 %v2668, %v2664
    %v2701 = vpack.c.b16 %v2669, %v2665
    %v2702 = vpack.c.b16 %v2670, %v2666
    %v2703 = vpack.c.b16 %v2671, %v2667
    %2736 = vmatpush.bf16.msra.mxu0 %v2700
    %2737 = vmatpush.bf16.msra.mxu0 %v2696
    %2738 = vmatpush.bf16.msra.mxu0 %v2692
    %2739 = vmatpush.bf16.msra.mxu0 %v2688
    %2740 = vmatpush.bf16.msra.mxu0 %v2684
    %2741 = vmatpush.bf16.msra.mxu0 %v2680
    %2742 = vmatpush.bf16.msra.mxu0 %v2676
    %2743 = vmatpush.bf16.msra.mxu0 %v2672
    %2744 = vmatmul.bf16.gmra.mxu0 %v2574
    %v2745 = vpop.f32.mrf.mxu0
    %v2746 = vadd.f32 0.0, %v2745
    %v2747 = vpop.f32.mrf.mxu0
    %v2748 = vadd.f32 0.0, %v2747
    %2749 = vdwg.mxu0
    %2750 = vmatpush.bf16.msra.mxu0 %v2701
    %2751 = vmatpush.bf16.msra.mxu0 %v2697
    %2752 = vmatpush.bf16.msra.mxu0 %v2693
    %2753 = vmatpush.bf16.msra.mxu0 %v2689
    %2754 = vmatpush.bf16.msra.mxu0 %v2685
    %2755 = vmatpush.bf16.msra.mxu0 %v2681
    %2756 = vmatpush.bf16.msra.mxu0 %v2677
    %2757 = vmatpush.bf16.msra.mxu0 %v2673
    %2758 = vmatmul.bf16.gmra.mxu0 %v2574
    %v2759 = vpop.f32.mrf.mxu0
    %v2760 = vadd.f32 0.0, %v2759
    %v2761 = vpop.f32.mrf.mxu0
    %v2762 = vadd.f32 0.0, %v2761
    %2763 = vdwg.mxu0
    %2764 = vmatpush.bf16.msra.mxu0 %v2702
    %2765 = vmatpush.bf16.msra.mxu0 %v2698
    %2766 = vmatpush.bf16.msra.mxu0 %v2694
    %2767 = vmatpush.bf16.msra.mxu0 %v2690
    %2768 = vmatpush.bf16.msra.mxu0 %v2686
    %2769 = vmatpush.bf16.msra.mxu0 %v2682
    %2770 = vmatpush.bf16.msra.mxu0 %v2678
    %2771 = vmatpush.bf16.msra.mxu0 %v2674
    %2772 = vmatmul.bf16.gmra.mxu0 %v2574
    %v2773 = vpop.f32.mrf.mxu0
    %v2774 = vadd.f32 0.0, %v2773
    %v2775 = vpop.f32.mrf.mxu0
    %v2776 = vadd.f32 0.0, %v2775
    %2777 = vdwg.mxu0
    %2778 = vmatpush.bf16.msra.mxu0 %v2703
    %2779 = vmatpush.bf16.msra.mxu0 %v2699
    %2780 = vmatpush.bf16.msra.mxu0 %v2695
    %2781 = vmatpush.bf16.msra.mxu0 %v2691
    %2782 = vmatpush.bf16.msra.mxu0 %v2687
    %2783 = vmatpush.bf16.msra.mxu0 %v2683
    %2784 = vmatpush.bf16.msra.mxu0 %v2679
    %2785 = vmatpush.bf16.msra.mxu0 %v2675
    %2786 = vmatmul.bf16.gmra.mxu0 %v2574
    %v2787 = vpop.f32.mrf.mxu0
    %v2788 = vadd.f32 0.0, %v2787
    %v2789 = vpop.f32.mrf.mxu0
    %v2790 = vadd.f32 0.0, %v2789
    %2791 = vdwg.mxu0
    %v2792 = vadd.f32 %v2530, %v2746
    %v2793 = vadd.f32 %v2531, %v2760
    %v2794 = vadd.f32 %v2532, %v2774
    %v2795 = vadd.f32 %v2533, %v2788
    %v2796 = vadd.f32 %v2534, %v2748
    %v2797 = vadd.f32 %v2535, %v2762
    %v2798 = vadd.f32 %v2536, %v2776
    %v2799 = vadd.f32 %v2537, %v2790
    %v2800 = vmul.f32 %v2792, 0.5
    %v2801 = vmul.f32 %v2796, 0.5
    %v2802 = vtanh.pop %v2800
    %v2803 = vtanh.pop %v2801
    %v2804 = vadd.f32 %v2802, 1.0
    %v2805 = vadd.f32 %v2803, 1.0
    %v2806 = vmul.f32 %v2804, 0.5
    %v2807 = vmul.f32 %v2805, 0.5
    %v2808 = vmul.f32 %v2793, 0.5
    %v2809 = vmul.f32 %v2797, 0.5
    %v2810 = vtanh.pop %v2808
    %v2811 = vtanh.pop %v2809
    %v2812 = vadd.f32 %v2810, 1.0
    %v2813 = vadd.f32 %v2811, 1.0
    %v2814 = vmul.f32 %v2812, 0.5
    %v2815 = vmul.f32 %v2813, 0.5
    %v2816 = vtanh.pop %v2794
    %v2817 = vtanh.pop %v2798
    %v2818 = vmul.f32 %v2795, 0.5
    %v2819 = vmul.f32 %v2799, 0.5
    %v2820 = vtanh.pop %v2818
    %v2821 = vtanh.pop %v2819
    %v2822 = vadd.f32 %v2820, 1.0
    %v2823 = vadd.f32 %v2821, 1.0
    %v2824 = vmul.f32 %v2822, 0.5
    %v2825 = vmul.f32 %v2823, 0.5
    %v2826 = vmul.f32 %v2814, %v2514
    %v2827 = vmul.f32 %v2815, %v2515
    %v2828 = vmul.f32 %v2806, %v2816
    %v2829 = vmul.f32 %v2807, %v2817
    %v2830 = vadd.f32 %v2826, %v2828
    %v2831 = vadd.f32 %v2827, %v2829
    %v2832 = vtanh.pop %v2830
    %v2833 = vtanh.pop %v2831
    %v2834 = vmul.f32 %v2824, %v2832
    %v2835 = vmul.f32 %v2825, %v2833
    %v2836 = vpack.c.bf16 %v2834, %v2834
    %v2837 = vpack.c.bf16 %v2835, %v2835
    %s2838 = scalar_lea.vmem [#allocation12], 48
    %2839 = vst [vmem:[%s2838] sm:$0xf] %v2836
    %2840 = vst [vmem:[%s2838 + $0x4] sm:$0xf] %v2837
    %s2841 = scalar_lea.vmem [#allocation2], 224
    %v2842 = vld [vmem:[%s2841] sm:$0xff]
    %v2843 = vld [vmem:[%s2841 + $0x8] sm:$0xff]
    %v2844 = vld [vmem:[%s2841 + $0x10] sm:$0xff]
    %v2845 = vld [vmem:[%s2841 + $0x18] sm:$0xff]
    %v2846 = vunpack.c.l.bf16 %v2842
    %v2847 = vunpack.c.h.bf16 %v2842
    %v2848 = vunpack.c.l.bf16 %v2843
    %v2849 = vunpack.c.h.bf16 %v2843
    %v2850 = vunpack.c.l.bf16 %v2844
    %v2851 = vunpack.c.h.bf16 %v2844
    %v2852 = vunpack.c.l.bf16 %v2845
    %v2853 = vunpack.c.h.bf16 %v2845
    %v2854 = vld [vmem:[#allocation11] sm:$0xff]
    %v2855 = vld [vmem:[#allocation11 + $0x8] sm:$0xff]
    %v2856 = vld [vmem:[#allocation11 + $0x10] sm:$0xff]
    %v2857 = vld [vmem:[#allocation11 + $0x18] sm:$0xff]
    %v2858 = vld [vmem:[#allocation11 + $0x20] sm:$0xff]
    %v2859 = vld [vmem:[#allocation11 + $0x28] sm:$0xff]
    %v2860 = vld [vmem:[#allocation11 + $0x30] sm:$0xff]
    %v2861 = vld [vmem:[#allocation11 + $0x38] sm:$0xff]
    %v2862 = vld [vmem:[#allocation11 + $0x40] sm:$0xff]
    %v2863 = vld [vmem:[#allocation11 + $0x48] sm:$0xff]
    %v2864 = vld [vmem:[#allocation11 + $0x50] sm:$0xff]
    %v2865 = vld [vmem:[#allocation11 + $0x58] sm:$0xff]
    %v2866 = vld [vmem:[#allocation11 + $0x60] sm:$0xff]
    %v2867 = vld [vmem:[#allocation11 + $0x68] sm:$0xff]
    %v2868 = vld [vmem:[#allocation11 + $0x70] sm:$0xff]
    %v2869 = vld [vmem:[#allocation11 + $0x78] sm:$0xff]
    %v2870 = vld [vmem:[#allocation11 + $0x80] sm:$0xff]
    %v2871 = vld [vmem:[#allocation11 + $0x88] sm:$0xff]
    %v2872 = vld [vmem:[#allocation11 + $0x90] sm:$0xff]
    %v2873 = vld [vmem:[#allocation11 + $0x98] sm:$0xff]
    %v2874 = vld [vmem:[#allocation11 + $0xa0] sm:$0xff]
    %v2875 = vld [vmem:[#allocation11 + $0xa8] sm:$0xff]
    %v2876 = vld [vmem:[#allocation11 + $0xb0] sm:$0xff]
    %v2877 = vld [vmem:[#allocation11 + $0xb8] sm:$0xff]
    %v2878 = vld [vmem:[#allocation11 + $0xc0] sm:$0xff]
    %v2879 = vld [vmem:[#allocation11 + $0xc8] sm:$0xff]
    %v2880 = vld [vmem:[#allocation11 + $0xd0] sm:$0xff]
    %v2881 = vld [vmem:[#allocation11 + $0xd8] sm:$0xff]
    %v2882 = vld [vmem:[#allocation11 + $0xe0] sm:$0xff]
    %v2883 = vld [vmem:[#allocation11 + $0xe8] sm:$0xff]
    %v2884 = vld [vmem:[#allocation11 + $0xf0] sm:$0xff]
    %v2885 = vld [vmem:[#allocation11 + $0xf8] sm:$0xff]
    %v2888 = vunpack.c.l.b16 %v2836
    %v2889 = vunpack.c.l.b16 %v2837
    %v2890 = vpack.c.b16 %v2889, %v2888
    %v2924 = vunpack.c.l.b16 %v2854
    %v2925 = vunpack.c.h.b16 %v2854
    %v2926 = vunpack.c.l.b16 %v2855
    %v2927 = vunpack.c.h.b16 %v2855
    %v2928 = vunpack.c.l.b16 %v2856
    %v2929 = vunpack.c.h.b16 %v2856
    %v2930 = vunpack.c.l.b16 %v2857
    %v2931 = vunpack.c.h.b16 %v2857
    %v2932 = vunpack.c.l.b16 %v2858
    %v2933 = vunpack.c.h.b16 %v2858
    %v2934 = vunpack.c.l.b16 %v2859
    %v2935 = vunpack.c.h.b16 %v2859
    %v2936 = vunpack.c.l.b16 %v2860
    %v2937 = vunpack.c.h.b16 %v2860
    %v2938 = vunpack.c.l.b16 %v2861
    %v2939 = vunpack.c.h.b16 %v2861
    %v2940 = vunpack.c.l.b16 %v2862
    %v2941 = vunpack.c.h.b16 %v2862
    %v2942 = vunpack.c.l.b16 %v2863
    %v2943 = vunpack.c.h.b16 %v2863
    %v2944 = vunpack.c.l.b16 %v2864
    %v2945 = vunpack.c.h.b16 %v2864
    %v2946 = vunpack.c.l.b16 %v2865
    %v2947 = vunpack.c.h.b16 %v2865
    %v2948 = vunpack.c.l.b16 %v2866
    %v2949 = vunpack.c.h.b16 %v2866
    %v2950 = vunpack.c.l.b16 %v2867
    %v2951 = vunpack.c.h.b16 %v2867
    %v2952 = vunpack.c.l.b16 %v2868
    %v2953 = vunpack.c.h.b16 %v2868
    %v2954 = vunpack.c.l.b16 %v2869
    %v2955 = vunpack.c.h.b16 %v2869
    %v2956 = vunpack.c.l.b16 %v2870
    %v2957 = vunpack.c.h.b16 %v2870
    %v2958 = vunpack.c.l.b16 %v2871
    %v2959 = vunpack.c.h.b16 %v2871
    %v2960 = vunpack.c.l.b16 %v2872
    %v2961 = vunpack.c.h.b16 %v2872
    %v2962 = vunpack.c.l.b16 %v2873
    %v2963 = vunpack.c.h.b16 %v2873
    %v2964 = vunpack.c.l.b16 %v2874
    %v2965 = vunpack.c.h.b16 %v2874
    %v2966 = vunpack.c.l.b16 %v2875
    %v2967 = vunpack.c.h.b16 %v2875
    %v2968 = vunpack.c.l.b16 %v2876
    %v2969 = vunpack.c.h.b16 %v2876
    %v2970 = vunpack.c.l.b16 %v2877
    %v2971 = vunpack.c.h.b16 %v2877
    %v2972 = vunpack.c.l.b16 %v2878
    %v2973 = vunpack.c.h.b16 %v2878
    %v2974 = vunpack.c.l.b16 %v2879
    %v2975 = vunpack.c.h.b16 %v2879
    %v2976 = vunpack.c.l.b16 %v2880
    %v2977 = vunpack.c.h.b16 %v2880
    %v2978 = vunpack.c.l.b16 %v2881
    %v2979 = vunpack.c.h.b16 %v2881
    %v2980 = vunpack.c.l.b16 %v2882
    %v2981 = vunpack.c.h.b16 %v2882
    %v2982 = vunpack.c.l.b16 %v2883
    %v2983 = vunpack.c.h.b16 %v2883
    %v2984 = vunpack.c.l.b16 %v2884
    %v2985 = vunpack.c.h.b16 %v2884
    %v2986 = vunpack.c.l.b16 %v2885
    %v2987 = vunpack.c.h.b16 %v2885
    %v2988 = vpack.c.b16 %v2928, %v2924
    %v2989 = vpack.c.b16 %v2929, %v2925
    %v2990 = vpack.c.b16 %v2930, %v2926
    %v2991 = vpack.c.b16 %v2931, %v2927
    %v2992 = vpack.c.b16 %v2936, %v2932
    %v2993 = vpack.c.b16 %v2937, %v2933
    %v2994 = vpack.c.b16 %v2938, %v2934
    %v2995 = vpack.c.b16 %v2939, %v2935
    %v2996 = vpack.c.b16 %v2944, %v2940
    %v2997 = vpack.c.b16 %v2945, %v2941
    %v2998 = vpack.c.b16 %v2946, %v2942
    %v2999 = vpack.c.b16 %v2947, %v2943
    %v3000 = vpack.c.b16 %v2952, %v2948
    %v3001 = vpack.c.b16 %v2953, %v2949
    %v3002 = vpack.c.b16 %v2954, %v2950
    %v3003 = vpack.c.b16 %v2955, %v2951
    %v3004 = vpack.c.b16 %v2960, %v2956
    %v3005 = vpack.c.b16 %v2961, %v2957
    %v3006 = vpack.c.b16 %v2962, %v2958
    %v3007 = vpack.c.b16 %v2963, %v2959
    %v3008 = vpack.c.b16 %v2968, %v2964
    %v3009 = vpack.c.b16 %v2969, %v2965
    %v3010 = vpack.c.b16 %v2970, %v2966
    %v3011 = vpack.c.b16 %v2971, %v2967
    %v3012 = vpack.c.b16 %v2976, %v2972
    %v3013 = vpack.c.b16 %v2977, %v2973
    %v3014 = vpack.c.b16 %v2978, %v2974
    %v3015 = vpack.c.b16 %v2979, %v2975
    %v3016 = vpack.c.b16 %v2984, %v2980
    %v3017 = vpack.c.b16 %v2985, %v2981
    %v3018 = vpack.c.b16 %v2986, %v2982
    %v3019 = vpack.c.b16 %v2987, %v2983
    %3052 = vmatpush.bf16.msra.mxu0 %v3016
    %3053 = vmatpush.bf16.msra.mxu0 %v3012
    %3054 = vmatpush.bf16.msra.mxu0 %v3008
    %3055 = vmatpush.bf16.msra.mxu0 %v3004
    %3056 = vmatpush.bf16.msra.mxu0 %v3000
    %3057 = vmatpush.bf16.msra.mxu0 %v2996
    %3058 = vmatpush.bf16.msra.mxu0 %v2992
    %3059 = vmatpush.bf16.msra.mxu0 %v2988
    %3060 = vmatmul.bf16.gmra.mxu0 %v2890
    %v3061 = vpop.f32.mrf.mxu0
    %v3062 = vadd.f32 0.0, %v3061
    %v3063 = vpop.f32.mrf.mxu0
    %v3064 = vadd.f32 0.0, %v3063
    %3065 = vdwg.mxu0
    %3066 = vmatpush.bf16.msra.mxu0 %v3017
    %3067 = vmatpush.bf16.msra.mxu0 %v3013
    %3068 = vmatpush.bf16.msra.mxu0 %v3009
    %3069 = vmatpush.bf16.msra.mxu0 %v3005
    %3070 = vmatpush.bf16.msra.mxu0 %v3001
    %3071 = vmatpush.bf16.msra.mxu0 %v2997
    %3072 = vmatpush.bf16.msra.mxu0 %v2993
    %3073 = vmatpush.bf16.msra.mxu0 %v2989
    %3074 = vmatmul.bf16.gmra.mxu0 %v2890
    %v3075 = vpop.f32.mrf.mxu0
    %v3076 = vadd.f32 0.0, %v3075
    %v3077 = vpop.f32.mrf.mxu0
    %v3078 = vadd.f32 0.0, %v3077
    %3079 = vdwg.mxu0
    %3080 = vmatpush.bf16.msra.mxu0 %v3018
    %3081 = vmatpush.bf16.msra.mxu0 %v3014
    %3082 = vmatpush.bf16.msra.mxu0 %v3010
    %3083 = vmatpush.bf16.msra.mxu0 %v3006
    %3084 = vmatpush.bf16.msra.mxu0 %v3002
    %3085 = vmatpush.bf16.msra.mxu0 %v2998
    %3086 = vmatpush.bf16.msra.mxu0 %v2994
    %3087 = vmatpush.bf16.msra.mxu0 %v2990
    %3088 = vmatmul.bf16.gmra.mxu0 %v2890
    %v3089 = vpop.f32.mrf.mxu0
    %v3090 = vadd.f32 0.0, %v3089
    %v3091 = vpop.f32.mrf.mxu0
    %v3092 = vadd.f32 0.0, %v3091
    %3093 = vdwg.mxu0
    %3094 = vmatpush.bf16.msra.mxu0 %v3019
    %3095 = vmatpush.bf16.msra.mxu0 %v3015
    %3096 = vmatpush.bf16.msra.mxu0 %v3011
    %3097 = vmatpush.bf16.msra.mxu0 %v3007
    %3098 = vmatpush.bf16.msra.mxu0 %v3003
    %3099 = vmatpush.bf16.msra.mxu0 %v2999
    %3100 = vmatpush.bf16.msra.mxu0 %v2995
    %3101 = vmatpush.bf16.msra.mxu0 %v2991
    %3102 = vmatmul.bf16.gmra.mxu0 %v2890
    %v3103 = vpop.f32.mrf.mxu0
    %v3104 = vadd.f32 0.0, %v3103
    %v3105 = vpop.f32.mrf.mxu0
    %v3106 = vadd.f32 0.0, %v3105
    %3107 = vdwg.mxu0
    %v3108 = vadd.f32 %v2846, %v3062
    %v3109 = vadd.f32 %v2847, %v3076
    %v3110 = vadd.f32 %v2848, %v3090
    %v3111 = vadd.f32 %v2849, %v3104
    %v3112 = vadd.f32 %v2850, %v3064
    %v3113 = vadd.f32 %v2851, %v3078
    %v3114 = vadd.f32 %v2852, %v3092
    %v3115 = vadd.f32 %v2853, %v3106
    %v3116 = vmul.f32 %v3108, 0.5
    %v3117 = vmul.f32 %v3112, 0.5
    %v3118 = vtanh.pop %v3116
    %v3119 = vtanh.pop %v3117
    %v3120 = vadd.f32 %v3118, 1.0
    %v3121 = vadd.f32 %v3119, 1.0
    %v3122 = vmul.f32 %v3120, 0.5
    %v3123 = vmul.f32 %v3121, 0.5
    %v3124 = vmul.f32 %v3109, 0.5
    %v3125 = vmul.f32 %v3113, 0.5
    %v3126 = vtanh.pop %v3124
    %v3127 = vtanh.pop %v3125
    %v3128 = vadd.f32 %v3126, 1.0
    %v3129 = vadd.f32 %v3127, 1.0
    %v3130 = vmul.f32 %v3128, 0.5
    %v3131 = vmul.f32 %v3129, 0.5
    %v3132 = vtanh.pop %v3110
    %v3133 = vtanh.pop %v3114
    %v3134 = vmul.f32 %v3111, 0.5
    %v3135 = vmul.f32 %v3115, 0.5
    %v3136 = vtanh.pop %v3134
    %v3137 = vtanh.pop %v3135
    %v3138 = vadd.f32 %v3136, 1.0
    %v3139 = vadd.f32 %v3137, 1.0
    %v3140 = vmul.f32 %v3138, 0.5
    %v3141 = vmul.f32 %v3139, 0.5
    %v3142 = vmul.f32 %v3130, %v2830
    %v3143 = vmul.f32 %v3131, %v2831
    %v3144 = vmul.f32 %v3122, %v3132
    %v3145 = vmul.f32 %v3123, %v3133
    %v3146 = vadd.f32 %v3142, %v3144
    %v3147 = vadd.f32 %v3143, %v3145
    %v3148 = vtanh.pop %v3146
    %v3149 = vtanh.pop %v3147
    %v3150 = vmul.f32 %v3140, %v3148
    %v3151 = vmul.f32 %v3141, %v3149
    %v3152 = vpack.c.bf16 %v3150, %v3150
    %v3153 = vpack.c.bf16 %v3151, %v3151
    %s3154 = scalar_lea.vmem [#allocation12], 56
    %3155 = vst [vmem:[%s3154] sm:$0xf] %v3152
    %3156 = vst [vmem:[%s3154 + $0x4] sm:$0xf] %v3153
    %3157 = vst [vmem:[#allocation13] sm:$0xff] %v3150
    %3158 = vst [vmem:[#allocation13 + $0x8] sm:$0xff] %v3151
    %3159 = vst [vmem:[#allocation15] sm:$0xff] %v3146
    %3160 = vst [vmem:[#allocation15 + $0x8] sm:$0xff] %v3147
    // Predicated region
    $region46: #{tpu_custom_call.1} parent=1 // pred_check
      _
    $region47: #{tpu_custom_call.1} parent=1 // pred_check_branch
      %3162 = sbr.rel (0) target = $region49
    $region48: #{tpu_custom_call.1} parent=1 // pred_region
      %3164 = vsyncadd [#allocation5], 0
      %s3165 = sshll.u32 [#allocation12], 4
      %s3166 = int_to_ptr.vmem [resolvable:$true] %s3165
      %s3167 = sshll.u32 %s6, 4
      %s3168 = int_to_ptr.hbm [resolvable:$true] %s3167
      %3173 = dma.vmem_to_hbm [thread:$0]  %s3166, 1024, %s3168, [#allocation5], 64, 64, 4
    $region49: #{tpu_custom_call.1} parent=1 // pred_fallthru
      _
    // Predicated region
    $region50: #{tpu_custom_call.1} parent=1 // pred_check
      _
    $region51: #{tpu_custom_call.1} parent=1 // pred_check_branch
      %3175 = sbr.rel (0) target = $region53
    $region52: #{tpu_custom_call.1} parent=1 // pred_region
      %3177 = vsyncadd [#allocation14], 0
      %s3178 = sshll.u32 [#allocation13], 4
      %s3179 = int_to_ptr.vmem [resolvable:$true] %s3178
      %s3180 = sshll.u32 %s7, 4
      %s3181 = int_to_ptr.hbm [resolvable:$true] %s3180
      %3186 = dma.vmem_to_hbm [thread:$0]  %s3179, 256, %s3181, [#allocation14], 128, 128, 8
    $region53: #{tpu_custom_call.1} parent=1 // pred_fallthru
      _
    // Predicated region
    $region54: #{tpu_custom_call.1} parent=1 // pred_check
      _
    $region55: #{tpu_custom_call.1} parent=1 // pred_check_branch
      %3188 = sbr.rel (0) target = $region57
    $region56: #{tpu_custom_call.1} parent=1 // pred_region
      %3190 = vsyncadd [#allocation14], 0
      %s3191 = sshll.u32 [#allocation15], 4
      %s3192 = int_to_ptr.vmem [resolvable:$true] %s3191
      %s3193 = sshll.u32 %s8, 4
      %s3194 = int_to_ptr.hbm [resolvable:$true] %s3193
      %3199 = dma.vmem_to_hbm [thread:$0]  %s3192, 256, %s3194, [#allocation14], 128, 128, 8
    $region57: #{tpu_custom_call.1} parent=1 // pred_fallthru
      _
    // Predicated region
    $region58: #{tpu_custom_call.1} parent=1 // pred_check
      _
    $region59: #{tpu_custom_call.1} parent=1 // pred_check_branch
      %3201 = sbr.rel (0) target = $region61
    $region60: #{tpu_custom_call.1} parent=1 // pred_region
      %3203 = dma.done [#allocation5], 1024
    $region61: #{tpu_custom_call.1} parent=1 // pred_fallthru
      _
    // Predicated region
    $region62: #{tpu_custom_call.1} parent=1 // pred_check
      _
    $region63: #{tpu_custom_call.1} parent=1 // pred_check_branch
      %3205 = sbr.rel (0) target = $region65
    $region64: #{tpu_custom_call.1} parent=1 // pred_region
      %3207 = dma.done [#allocation14], 256
    $region65: #{tpu_custom_call.1} parent=1 // pred_fallthru
      _
    // Predicated region
    $region66: #{tpu_custom_call.1} parent=1 // pred_check
      _
    $region67: #{tpu_custom_call.1} parent=1 // pred_check_branch
      %3209 = sbr.rel (0) target = $region69
    $region68: #{tpu_custom_call.1} parent=1 // pred_region
      %3211 = dma.done [#allocation14], 256
    $region69: #{tpu_custom_call.1} parent=1 // pred_fallthru
      _
    %3212 = vsyncpa [#allocation4], 1
    %3213 = vsyncpa [#allocation7], 1
    %3214 = vsyncpa [#allocation10], 1
    %3215 = vsyncpa [#allocation5], 1
    %3216 = vsyncpa [#allocation14], 1

</llo_original>
